<compile_context>
chip_gen: v6e
topology: v6e:2x2x1
jax: 0.10.0
libtpu: 0.0.40
codegen_flags: <defaults>
</compile_context>

<pallas_src>
import jax
import jax.numpy as jnp
from jax.experimental import pallas as pl
from jax.experimental.pallas import tpu as pltpu

LANE = 128  # per-branch padded feature width (input F, hidden H, output O all <= 128)


# ----------------------------- Pallas kernel -------------------------------- #
def dual_gcn_kernel(
    a_int_ref,   # (TM, Np)   bf16  A_hat_int row block
    a_sim_ref,   # (TM, Np)   bf16  A_hat_sim row block
    z1i_ref,     # (Np, L)    bf16  precomputed x_int @ W1_int (zero padded)
    z1s_ref,     # (Np, L)    bf16  precomputed x_sim @ W1_sim (zero padded)
    w2i_ref,     # (L, L)     bf16  layer-2 weight, interaction branch (padded)
    w2s_ref,     # (L, L)     bf16  layer-2 weight, similarity branch (padded)
    b1i_ref,     # (1, L)     f32
    b1s_ref,     # (1, L)     f32
    b2i_ref,     # (1, L)     f32
    b2s_ref,     # (1, L)     f32
    wfci_ref,    # (L, L)     bf16  final FC weight rows multiplying h_int
    wfcs_ref,    # (L, L)     bf16  final FC weight rows multiplying h_sim
    bfc_ref,     # (1, L)     f32
    out_ref,     # (TM, L)    f32   output row block (lane-dense)
    z2i_ref,     # (Np, L)    bf16  scratch: Z2_int = H1_int @ W2_int
    z2s_ref,     # (Np, L)    bf16  scratch: Z2_sim = H1_sim @ W2_sim
):
    p = pl.program_id(0)          # layer phase: 0 or 1
    i = pl.program_id(1)          # node row-block index
    tm = out_ref.shape[0]

    # ---- phase 0: H1 = relu(A @ Z1 + b1); build Z2 = H1 @ W2 incrementally ----
    @pl.when(p == 0)
    def _():
        agg_i = jnp.dot(a_int_ref[...], z1i_ref[...],
                        preferred_element_type=jnp.float32)
        agg_s = jnp.dot(a_sim_ref[...], z1s_ref[...],
                        preferred_element_type=jnp.float32)
        h1_i = jnp.maximum(agg_i + b1i_ref[...], 0.0).astype(jnp.bfloat16)
        h1_s = jnp.maximum(agg_s + b1s_ref[...], 0.0).astype(jnp.bfloat16)
        row0 = pl.multiple_of(i * tm, tm)
        z2i_ref[pl.ds(row0, tm), :] = jnp.dot(
            h1_i, w2i_ref[...], preferred_element_type=jnp.float32
        ).astype(z2i_ref.dtype)
        z2s_ref[pl.ds(row0, tm), :] = jnp.dot(
            h1_s, w2s_ref[...], preferred_element_type=jnp.float32
        ).astype(z2s_ref.dtype)

    # ---- phase 1: out = relu(A @ Z2 + b2) @ Wfc + bfc (per-branch halves) ----
    @pl.when(p == 1)
    def _():
        agg_i = jnp.dot(a_int_ref[...], z2i_ref[...],
                        preferred_element_type=jnp.float32)
        agg_s = jnp.dot(a_sim_ref[...], z2s_ref[...],
                        preferred_element_type=jnp.float32)
        h2_i = jnp.maximum(agg_i + b2i_ref[...], 0.0).astype(jnp.bfloat16)
        h2_s = jnp.maximum(agg_s + b2s_ref[...], 0.0).astype(jnp.bfloat16)
        out = (
            jnp.dot(h2_i, wfci_ref[...], preferred_element_type=jnp.float32)
            + jnp.dot(h2_s, wfcs_ref[...], preferred_element_type=jnp.float32)
            + bfc_ref[...]
        )
        out_ref[...] = out.astype(out_ref.dtype)


# ------------------------------ wrapper -------------------------------------- #
def _vmem_budget_bytes():
    """Scoped-VMEM budget: 3/4 of physical capacity, capped at 96 MiB.
    v5e/v6e (128 MiB phys) -> 96 MiB; v7x (64 MiB phys) -> 48 MiB."""
    cap = 64 * 1024 * 1024  # conservative default (= v7x) if the query fails
    try:
        cap = int(getattr(pltpu.get_tpu_info(), "vmem_capacity_bytes", cap))
    except Exception:
        pass
    return min(cap * 3 // 4, 96 * 1024 * 1024)


def _choose_block_rows(n_pad_hint, budget):
    """Largest row-block tile that fits the VMEM budget.

    Per-row-block cost (streamed A, double-buffered, bf16): 2 * 2 * 2 * tm * n_pad
    plus the double-buffered f32 output block:              2 * 4 * 128 * tm
    Grid-invariant residents (Z1: 2 arrays x 2 bufs x bf16; Z2 scratch: 2 x bf16)
    cost 1536 B/node; ~2 MiB of headroom covers weights / Mosaic internal scratch.
    """
    per_row_block = 8 * n_pad_hint + 1024
    fixed = 1536 * n_pad_hint + (2 << 20)
    avail = budget - fixed
    tm_fit = avail // per_row_block if avail > 0 else 0
    if tm_fit >= n_pad_hint:
        # Whole graph fits: single row block -> each A is DMA'd from HBM once total.
        return n_pad_hint
    tm = max(LANE, min(int(tm_fit), 4 * LANE))   # streaming regime: 128..512
    return max(LANE, (tm // LANE) * LANE)


def _round_up(x, m):
    return ((x + m - 1) // m) * m


def dual_graph_nn(a_int, a_sim, x_int, x_sim, params, *, block_rows=None):
    """Full DualGraphNN forward (both GCN branches + concat + Linear), one Pallas call."""
    n, feat = x_int.shape
    hid = params["w1i"].shape[1]
    out_dim = params["wfc"].shape[1]
    assert feat <= LANE and hid <= LANE and out_dim <= LANE

    budget = _vmem_budget_bytes()
    n_pad_hint = _round_up(max(n, LANE), LANE)
    if block_rows is not None:
        tm = _round_up(block_rows, LANE)
    else:
        tm = _choose_block_rows(n_pad_hint, budget)
    n_pad = _round_up(max(n, tm), tm)
    n_blocks = n_pad // tm

    f32, bf16 = jnp.float32, jnp.bfloat16

    def pad2(x, rows, cols, dtype):
        return (jnp.zeros((rows, cols), f32)
                .at[: x.shape[0], : x.shape[1]].set(x.astype(f32)).astype(dtype))

    # A_hat in bf16 (the dominant N^2 tensors); zero-padded rows/cols are inert.
    a_int_p = pad2(a_int, n_pad, n_pad, bf16)
    a_sim_p = pad2(a_sim, n_pad, n_pad, bf16)

    # Layer-1 feature transform precomputed per branch (same HBM bytes as x itself;
    # removes the serialized whole-graph matmul at the layer boundary).
    z1i = pad2(x_int.astype(f32) @ params["w1i"], n_pad, LANE, bf16)
    z1s = pad2(x_sim.astype(f32) @ params["w1s"], n_pad, LANE, bf16)

    w2i_p = pad2(params["w2i"], LANE, LANE, bf16)
    w2s_p = pad2(params["w2s"], LANE, LANE, bf16)
    wfci_p = pad2(params["wfc"][:hid], LANE, LANE, bf16)
    wfcs_p = pad2(params["wfc"][hid:], LANE, LANE, bf16)

    b1i_p = pad2(params["b1i"], 1, LANE, f32)
    b1s_p = pad2(params["b1s"], 1, LANE, f32)
    b2i_p = pad2(params["b2i"], 1, LANE, f32)
    b2s_p = pad2(params["b2s"], 1, LANE, f32)
    bfc_p = pad2(params["bfc"], 1, LANE, f32)

    row_spec = pl.BlockSpec((tm, n_pad), lambda p, i: (i, 0))

    def resident(shape):
        return pl.BlockSpec(shape, lambda p, i: (0, 0))

    out_padded = pl.pallas_call(
        dual_gcn_kernel,
        out_shape=jax.ShapeDtypeStruct((n_pad, LANE), jnp.float32),
        grid=(2, n_blocks),                                  # (layer phase, row block)
        in_specs=[
            row_spec,                                        # A_int rows
            row_spec,                                        # A_sim rows
            resident((n_pad, LANE)),                         # Z1 interaction
            resident((n_pad, LANE)),                         # Z1 similarity
            resident((LANE, LANE)),                          # W2 interaction
            resident((LANE, LANE)),                          # W2 similarity
            resident((1, LANE)),                             # b1 interaction
            resident((1, LANE)),                             # b1 similarity
            resident((1, LANE)),                             # b2 interaction
            resident((1, LANE)),                             # b2 similarity
            resident((LANE, LANE)),                          # Wfc (int half)
            resident((LANE, LANE)),                          # Wfc (sim half)
            resident((1, LANE)),                             # bfc
        ],
        out_specs=pl.BlockSpec((tm, LANE), lambda p, i: (i, 0)),
        scratch_shapes=[
            pltpu.VMEM((n_pad, LANE), jnp.bfloat16),         # Z2 interaction
            pltpu.VMEM((n_pad, LANE), jnp.bfloat16),         # Z2 similarity
        ],
        compiler_params=pltpu.CompilerParams(
            # Both axes MUST be "arbitrary": layer 2 of any row block depends on
            # layer 1 of ALL row blocks through the VMEM-resident Z2 scratch.
            dimension_semantics=("arbitrary", "arbitrary"),
            vmem_limit_bytes=budget,
        ),
    )(a_int_p, a_sim_p, z1i, z1s, w2i_p, w2s_p,
      b1i_p, b1s_p, b2i_p, b2s_p, wfci_p, wfcs_p, bfc_p)

    return out_padded[:n, :out_dim]


# ------------------------------ JAX glue ------------------------------------ #
def gcn_normalized_adjacency(edge_index, num_nodes):
    """Dense D^{-1/2}(A+I)D^{-1/2} matching torch_geometric GCNConv defaults."""
    src, dst = edge_index[0], edge_index[1]
    a = jnp.zeros((num_nodes, num_nodes), dtype=jnp.float32)
    a = a.at[dst, src].add(1.0)                      # message j -> i lands at A[i, j]
    a = a + jnp.eye(num_nodes, dtype=jnp.float32)    # add self-loops
    deg = jnp.sum(a, axis=1)
    d_inv_sqrt = jnp.where(deg > 0, 1.0 / jnp.sqrt(deg), 0.0)
    return a * d_inv_sqrt[:, None] * d_inv_sqrt[None, :]


def init_params(key, input_dim, hidden_dim, output_dim):
    ks = jax.random.split(key, 10)

    def glorot(k, shape):
        fan_in, fan_out = shape
        lim = jnp.sqrt(6.0 / (fan_in + fan_out))
        return jax.random.uniform(k, shape, jnp.float32, -lim, lim)

    def bias(k, dim):
        return jax.random.uniform(k, (1, dim), jnp.float32, -0.1, 0.1)

    return {
        "w1i": glorot(ks[0], (input_dim, hidden_dim)),  "b1i": bias(ks[1], hidden_dim),
        "w2i": glorot(ks[2], (hidden_dim, hidden_dim)), "b2i": bias(ks[3], hidden_dim),
        "w1s": glorot(ks[4], (input_dim, hidden_dim)),  "b1s": bias(ks[5], hidden_dim),
        "w2s": glorot(ks[6], (hidden_dim, hidden_dim)), "b2s": bias(ks[7], hidden_dim),
        "wfc": glorot(ks[8], (2 * hidden_dim, output_dim)), "bfc": bias(ks[9], output_dim),
    }


def reference_forward(a_int, a_sim, x_int, x_sim, p):
    def gcn(a, x, w, b):
        return a @ (x @ w) + b
    hi = jax.nn.relu(gcn(a_int, x_int, p["w1i"], p["b1i"]))
    hi = jax.nn.relu(gcn(a_int, hi, p["w2i"], p["b2i"]))
    hs = jax.nn.relu(gcn(a_sim, x_sim, p["w1s"], p["b1s"]))
    hs = jax.nn.relu(gcn(a_sim, hs, p["w2s"], p["b2s"]))
    h = jnp.concatenate([hi, hs], axis=1)
    return h @ p["wfc"] + p["bfc"]


if __name__ == "__main__":
    key = jax.random.PRNGKey(0)
    k_feat_i, k_feat_s, k_edge_i, k_edge_s, k_param = jax.random.split(key, 5)

    num_nodes = 200          # not a multiple of 128 -> exercises row/lane padding
    input_dim = 8
    hidden_dim = 32
    output_dim = 4
    num_edges = 1024

    x_inter = jax.random.normal(k_feat_i, (num_nodes, input_dim), jnp.float32)
    x_sim = jax.random.normal(k_feat_s, (num_nodes, input_dim), jnp.float32)

    edge_index_inter = jax.random.randint(k_edge_i, (2, num_edges), 0, num_nodes)
    edge_index_sim = jax.random.randint(k_edge_s, (2, num_edges), 0, num_nodes)

    a_inter = gcn_normalized_adjacency(edge_index_inter, num_nodes)
    a_simil = gcn_normalized_adjacency(edge_index_sim, num_nodes)

    params = init_params(k_param, input_dim, hidden_dim, output_dim)
    ref = reference_forward(a_inter, a_simil, x_inter, x_sim, params)

    # Auto-tiled path (small graph -> single VMEM-resident row block, A read once).
    out = jax.block_until_ready(
        dual_graph_nn(a_inter, a_simil, x_inter, x_sim, params))
    assert out.shape == (num_nodes, output_dim)
    err = float(jnp.max(jnp.abs(out - ref)))
    assert jnp.allclose(out, ref, atol=5e-2, rtol=5e-2), \
        f"resident path max abs err = {err}"

    # Forced small tile -> exercises the multi-block streaming path + Z2 scratch carry.
    out_s = jax.block_until_ready(
        dual_graph_nn(a_inter, a_simil, x_inter, x_sim, params, block_rows=128))
    err_s = float(jnp.max(jnp.abs(out_s - ref)))
    assert jnp.allclose(out_s, ref, atol=5e-2, rtol=5e-2), \
        f"streaming path max abs err = {err_s}"

    print("KERNEL_OK")
</pallas_src>

<mosaic_0001>
module attributes {stable_mosaic.version = 11 : i64} {
  func.func @dual_gcn_kernel(%arg0: i32, %arg1: i32, %arg2: memref<256x256xbf16, #tpu.memory_space<vmem>>, %arg3: memref<256x256xbf16, #tpu.memory_space<vmem>>, %arg4: memref<256x128xbf16, #tpu.memory_space<vmem>>, %arg5: memref<256x128xbf16, #tpu.memory_space<vmem>>, %arg6: memref<128x128xbf16, #tpu.memory_space<vmem>>, %arg7: memref<128x128xbf16, #tpu.memory_space<vmem>>, %arg8: memref<1x128xf32, #tpu.memory_space<vmem>>, %arg9: memref<1x128xf32, #tpu.memory_space<vmem>>, %arg10: memref<1x128xf32, #tpu.memory_space<vmem>>, %arg11: memref<1x128xf32, #tpu.memory_space<vmem>>, %arg12: memref<128x128xbf16, #tpu.memory_space<vmem>>, %arg13: memref<128x128xbf16, #tpu.memory_space<vmem>>, %arg14: memref<1x128xf32, #tpu.memory_space<vmem>>, %arg15: memref<256x128xf32, #tpu.memory_space<vmem>>, %arg16: memref<256x128xbf16, #tpu.memory_space<vmem>>, %arg17: memref<256x128xbf16, #tpu.memory_space<vmem>>) attributes {dimension_semantics = [#tpu.dimension_semantics<arbitrary>, #tpu.dimension_semantics<arbitrary>], iteration_bounds = array<i64: 2, 1>, scalar_prefetch = 0 : i64, scratch_operands = 2 : i64, tpu.core_type = #tpu.core_type<tc>, window_params = [{transform_indices = @transform_0, window_bounds = array<i64: 256, 256>}, {transform_indices = @transform_1, window_bounds = array<i64: 256, 256>}, {pipeline_mode = #tpu.pipeline_mode<synchronous>, transform_indices = @transform_2, window_bounds = array<i64: 256, 128>}, {pipeline_mode = #tpu.pipeline_mode<synchronous>, transform_indices = @transform_3, window_bounds = array<i64: 256, 128>}, {pipeline_mode = #tpu.pipeline_mode<synchronous>, transform_indices = @transform_4, window_bounds = array<i64: 128, 128>}, {pipeline_mode = #tpu.pipeline_mode<synchronous>, transform_indices = @transform_5, window_bounds = array<i64: 128, 128>}, {pipeline_mode = #tpu.pipeline_mode<synchronous>, transform_indices = @transform_6, window_bounds = array<i64: 1, 128>}, {pipeline_mode = #tpu.pipeline_mode<synchronous>, transform_indices = @transform_7, window_bounds = array<i64: 1, 128>}, {pipeline_mode = #tpu.pipeline_mode<synchronous>, transform_indices = @transform_8, window_bounds = array<i64: 1, 128>}, {pipeline_mode = #tpu.pipeline_mode<synchronous>, transform_indices = @transform_9, window_bounds = array<i64: 1, 128>}, {pipeline_mode = #tpu.pipeline_mode<synchronous>, transform_indices = @transform_10, window_bounds = array<i64: 128, 128>}, {pipeline_mode = #tpu.pipeline_mode<synchronous>, transform_indices = @transform_11, window_bounds = array<i64: 128, 128>}, {pipeline_mode = #tpu.pipeline_mode<synchronous>, transform_indices = @transform_12, window_bounds = array<i64: 1, 128>}, {transform_indices = @transform_13, window_bounds = array<i64: 256, 128>}]} {
    %c0_i32 = arith.constant 0 : i32
    %0 = arith.cmpi eq, %arg0, %c0_i32 : i32
    %1 = arith.extui %0 : i1 to i32
    %c0_i32_0 = arith.constant 0 : i32
    %2 = arith.cmpi ne, %1, %c0_i32_0 : i32
    scf.if %2 {
      %c0 = arith.constant 0 : index
      %c0_2 = arith.constant 0 : index
      %6 = vector.load %arg2[%c0, %c0_2] : memref<256x256xbf16, #tpu.memory_space<vmem>>, vector<256x256xbf16>
      %c0_3 = arith.constant 0 : index
      %c0_4 = arith.constant 0 : index
      %7 = vector.load %arg4[%c0_3, %c0_4] : memref<256x128xbf16, #tpu.memory_space<vmem>>, vector<256x128xbf16>
      %cst = arith.constant dense<0.000000e+00> : vector<256x128xf32>
      %8 = tpu.matmul %6, %7, %cst {dimension_numbers = #tpu.dot_dimension_numbers<[1], [0], [0], [1], [0, 0, 1, 1], [], []>} : vector<256x256xbf16>, vector<256x128xbf16>, vector<256x128xf32> -> vector<256x128xf32>
      %c0_5 = arith.constant 0 : index
      %c0_6 = arith.constant 0 : index
      %9 = vector.load %arg3[%c0_5, %c0_6] : memref<256x256xbf16, #tpu.memory_space<vmem>>, vector<256x256xbf16>
      %c0_7 = arith.constant 0 : index
      %c0_8 = arith.constant 0 : index
      %10 = vector.load %arg5[%c0_7, %c0_8] : memref<256x128xbf16, #tpu.memory_space<vmem>>, vector<256x128xbf16>
      %cst_9 = arith.constant dense<0.000000e+00> : vector<256x128xf32>
      %11 = tpu.matmul %9, %10, %cst_9 {dimension_numbers = #tpu.dot_dimension_numbers<[1], [0], [0], [1], [0, 0, 1, 1], [], []>} : vector<256x256xbf16>, vector<256x128xbf16>, vector<256x128xf32> -> vector<256x128xf32>
      %c0_10 = arith.constant 0 : index
      %c0_11 = arith.constant 0 : index
      %12 = vector.load %arg8[%c0_10, %c0_11] : memref<1x128xf32, #tpu.memory_space<vmem>>, vector<1x128xf32>
      %13 = vector.broadcast %12 : vector<1x128xf32> to vector<256x128xf32>
      %14 = arith.addf %8, %13 : vector<256x128xf32>
      %cst_12 = arith.constant 0.000000e+00 : f32
      %15 = vector.broadcast %cst_12 : f32 to vector<256x128xf32>
      %16 = arith.maximumf %14, %15 : vector<256x128xf32>
      %17 = arith.truncf %16 : vector<256x128xf32> to vector<256x128xbf16>
      %c0_13 = arith.constant 0 : index
      %c0_14 = arith.constant 0 : index
      %18 = vector.load %arg9[%c0_13, %c0_14] : memref<1x128xf32, #tpu.memory_space<vmem>>, vector<1x128xf32>
      %19 = vector.broadcast %18 : vector<1x128xf32> to vector<256x128xf32>
      %20 = arith.addf %11, %19 : vector<256x128xf32>
      %cst_15 = arith.constant 0.000000e+00 : f32
      %21 = vector.broadcast %cst_15 : f32 to vector<256x128xf32>
      %22 = arith.maximumf %20, %21 : vector<256x128xf32>
      %23 = arith.truncf %22 : vector<256x128xf32> to vector<256x128xbf16>
      %c256_i32 = arith.constant 256 : i32
      %24 = arith.muli %arg1, %c256_i32 : i32
      %25 = tpu.assume_multiple %24, 256 : i32
      %c0_16 = arith.constant 0 : index
      %c0_17 = arith.constant 0 : index
      %26 = vector.load %arg6[%c0_16, %c0_17] : memref<128x128xbf16, #tpu.memory_space<vmem>>, vector<128x128xbf16>
      %cst_18 = arith.constant dense<0.000000e+00> : vector<256x128xf32>
      %27 = tpu.matmul %17, %26, %cst_18 {dimension_numbers = #tpu.dot_dimension_numbers<[1], [0], [0], [1], [0, 0, 1, 1], [], []>} : vector<256x128xbf16>, vector<128x128xbf16>, vector<256x128xf32> -> vector<256x128xf32>
      %28 = arith.truncf %27 : vector<256x128xf32> to vector<256x128xbf16>
      %29 = arith.index_cast %25 : i32 to index
      %c0_19 = arith.constant 0 : index
      %30 = vector.load %arg16[%29, %c0_19] : memref<256x128xbf16, #tpu.memory_space<vmem>>, vector<256x128xbf16>
      tpu.vector_store %arg16[%29, %c0_19], %28 {strides = array<i32>} : memref<256x128xbf16, #tpu.memory_space<vmem>>, vector<256x128xbf16>,
      %c0_20 = arith.constant 0 : index
      %c0_21 = arith.constant 0 : index
      %31 = vector.load %arg7[%c0_20, %c0_21] : memref<128x128xbf16, #tpu.memory_space<vmem>>, vector<128x128xbf16>
      %cst_22 = arith.constant dense<0.000000e+00> : vector<256x128xf32>
      %32 = tpu.matmul %23, %31, %cst_22 {dimension_numbers = #tpu.dot_dimension_numbers<[1], [0], [0], [1], [0, 0, 1, 1], [], []>} : vector<256x128xbf16>, vector<128x128xbf16>, vector<256x128xf32> -> vector<256x128xf32>
      %33 = arith.truncf %32 : vector<256x128xf32> to vector<256x128xbf16>
      %34 = arith.index_cast %25 : i32 to index
      %c0_23 = arith.constant 0 : index
      %35 = vector.load %arg17[%34, %c0_23] : memref<256x128xbf16, #tpu.memory_space<vmem>>, vector<256x128xbf16>
      tpu.vector_store %arg17[%34, %c0_23], %33 {strides = array<i32>} : memref<256x128xbf16, #tpu.memory_space<vmem>>, vector<256x128xbf16>,
    } else {
    }
    %c1_i32 = arith.constant 1 : i32
    %3 = arith.cmpi eq, %arg0, %c1_i32 : i32
    %4 = arith.extui %3 : i1 to i32
    %c0_i32_1 = arith.constant 0 : i32
    %5 = arith.cmpi ne, %4, %c0_i32_1 : i32
    scf.if %5 {
      %c0 = arith.constant 0 : index
      %c0_2 = arith.constant 0 : index
      %6 = vector.load %arg2[%c0, %c0_2] : memref<256x256xbf16, #tpu.memory_space<vmem>>, vector<256x256xbf16>
      %c0_3 = arith.constant 0 : index
      %c0_4 = arith.constant 0 : index
      %7 = vector.load %arg16[%c0_3, %c0_4] : memref<256x128xbf16, #tpu.memory_space<vmem>>, vector<256x128xbf16>
      %cst = arith.constant dense<0.000000e+00> : vector<256x128xf32>
      %8 = tpu.matmul %6, %7, %cst {dimension_numbers = #tpu.dot_dimension_numbers<[1], [0], [0], [1], [0, 0, 1, 1], [], []>} : vector<256x256xbf16>, vector<256x128xbf16>, vector<256x128xf32> -> vector<256x128xf32>
      %c0_5 = arith.constant 0 : index
      %c0_6 = arith.constant 0 : index
      %9 = vector.load %arg3[%c0_5, %c0_6] : memref<256x256xbf16, #tpu.memory_space<vmem>>, vector<256x256xbf16>
      %c0_7 = arith.constant 0 : index
      %c0_8 = arith.constant 0 : index
      %10 = vector.load %arg17[%c0_7, %c0_8] : memref<256x128xbf16, #tpu.memory_space<vmem>>, vector<256x128xbf16>
      %cst_9 = arith.constant dense<0.000000e+00> : vector<256x128xf32>
      %11 = tpu.matmul %9, %10, %cst_9 {dimension_numbers = #tpu.dot_dimension_numbers<[1], [0], [0], [1], [0, 0, 1, 1], [], []>} : vector<256x256xbf16>, vector<256x128xbf16>, vector<256x128xf32> -> vector<256x128xf32>
      %c0_10 = arith.constant 0 : index
      %c0_11 = arith.constant 0 : index
      %12 = vector.load %arg10[%c0_10, %c0_11] : memref<1x128xf32, #tpu.memory_space<vmem>>, vector<1x128xf32>
      %13 = vector.broadcast %12 : vector<1x128xf32> to vector<256x128xf32>
      %14 = arith.addf %8, %13 : vector<256x128xf32>
      %cst_12 = arith.constant 0.000000e+00 : f32
      %15 = vector.broadcast %cst_12 : f32 to vector<256x128xf32>
      %16 = arith.maximumf %14, %15 : vector<256x128xf32>
      %17 = arith.truncf %16 : vector<256x128xf32> to vector<256x128xbf16>
      %c0_13 = arith.constant 0 : index
      %c0_14 = arith.constant 0 : index
      %18 = vector.load %arg11[%c0_13, %c0_14] : memref<1x128xf32, #tpu.memory_space<vmem>>, vector<1x128xf32>
      %19 = vector.broadcast %18 : vector<1x128xf32> to vector<256x128xf32>
      %20 = arith.addf %11, %19 : vector<256x128xf32>
      %cst_15 = arith.constant 0.000000e+00 : f32
      %21 = vector.broadcast %cst_15 : f32 to vector<256x128xf32>
      %22 = arith.maximumf %20, %21 : vector<256x128xf32>
      %23 = arith.truncf %22 : vector<256x128xf32> to vector<256x128xbf16>
      %c0_16 = arith.constant 0 : index
      %c0_17 = arith.constant 0 : index
      %24 = vector.load %arg12[%c0_16, %c0_17] : memref<128x128xbf16, #tpu.memory_space<vmem>>, vector<128x128xbf16>
      %cst_18 = arith.constant dense<0.000000e+00> : vector<256x128xf32>
      %25 = tpu.matmul %17, %24, %cst_18 {dimension_numbers = #tpu.dot_dimension_numbers<[1], [0], [0], [1], [0, 0, 1, 1], [], []>} : vector<256x128xbf16>, vector<128x128xbf16>, vector<256x128xf32> -> vector<256x128xf32>
      %c0_19 = arith.constant 0 : index
      %c0_20 = arith.constant 0 : index
      %26 = vector.load %arg13[%c0_19, %c0_20] : memref<128x128xbf16, #tpu.memory_space<vmem>>, vector<128x128xbf16>
      %cst_21 = arith.constant dense<0.000000e+00> : vector<256x128xf32>
      %27 = tpu.matmul %23, %26, %cst_21 {dimension_numbers = #tpu.dot_dimension_numbers<[1], [0], [0], [1], [0, 0, 1, 1], [], []>} : vector<256x128xbf16>, vector<128x128xbf16>, vector<256x128xf32> -> vector<256x128xf32>
      %28 = arith.addf %25, %27 : vector<256x128xf32>
      %c0_22 = arith.constant 0 : index
      %c0_23 = arith.constant 0 : index
      %29 = vector.load %arg14[%c0_22, %c0_23] : memref<1x128xf32, #tpu.memory_space<vmem>>, vector<1x128xf32>
      %30 = vector.broadcast %29 : vector<1x128xf32> to vector<256x128xf32>
      %31 = arith.addf %28, %30 : vector<256x128xf32>
      %c0_24 = arith.constant 0 : index
      %c0_25 = arith.constant 0 : index
      %32 = vector.load %arg15[%c0_24, %c0_25] : memref<256x128xf32, #tpu.memory_space<vmem>>, vector<256x128xf32>
      tpu.vector_store %arg15[%c0_24, %c0_25], %31 {strides = array<i32>} : memref<256x128xf32, #tpu.memory_space<vmem>>, vector<256x128xf32>,
    } else {
    }
    return
  }
  func.func @transform_0(%arg0: i32, %arg1: i32) -> (i32, i32) {
    %c0_i32 = arith.constant 0 : i32
    %c0_i32_0 = arith.constant 0 : i32
    return %arg1, %c0_i32 : i32, i32
  }
  func.func @transform_1(%arg0: i32, %arg1: i32) -> (i32, i32) {
    %c0_i32 = arith.constant 0 : i32
    %c0_i32_0 = arith.constant 0 : i32
    return %arg1, %c0_i32 : i32, i32
  }
  func.func @transform_2(%arg0: i32, %arg1: i32) -> (i32, i32) {
    %c0_i32 = arith.constant 0 : i32
    %c0_i32_0 = arith.constant 0 : i32
    %c0_i32_1 = arith.constant 0 : i32
    return %c0_i32, %c0_i32_0 : i32, i32
  }
  func.func @transform_3(%arg0: i32, %arg1: i32) -> (i32, i32) {
    %c0_i32 = arith.constant 0 : i32
    %c0_i32_0 = arith.constant 0 : i32
    %c0_i32_1 = arith.constant 0 : i32
    return %c0_i32, %c0_i32_0 : i32, i32
  }
  func.func @transform_4(%arg0: i32, %arg1: i32) -> (i32, i32) {
    %c0_i32 = arith.constant 0 : i32
    %c0_i32_0 = arith.constant 0 : i32
    %c0_i32_1 = arith.constant 0 : i32
    return %c0_i32, %c0_i32_0 : i32, i32
  }
  func.func @transform_5(%arg0: i32, %arg1: i32) -> (i32, i32) {
    %c0_i32 = arith.constant 0 : i32
    %c0_i32_0 = arith.constant 0 : i32
    %c0_i32_1 = arith.constant 0 : i32
    return %c0_i32, %c0_i32_0 : i32, i32
  }
  func.func @transform_6(%arg0: i32, %arg1: i32) -> (i32, i32) {
    %c0_i32 = arith.constant 0 : i32
    %c0_i32_0 = arith.constant 0 : i32
    %c0_i32_1 = arith.constant 0 : i32
    return %c0_i32, %c0_i32_0 : i32, i32
  }
  func.func @transform_7(%arg0: i32, %arg1: i32) -> (i32, i32) {
    %c0_i32 = arith.constant 0 : i32
    %c0_i32_0 = arith.constant 0 : i32
    %c0_i32_1 = arith.constant 0 : i32
    return %c0_i32, %c0_i32_0 : i32, i32
  }
  func.func @transform_8(%arg0: i32, %arg1: i32) -> (i32, i32) {
    %c0_i32 = arith.constant 0 : i32
    %c0_i32_0 = arith.constant 0 : i32
    %c0_i32_1 = arith.constant 0 : i32
    return %c0_i32, %c0_i32_0 : i32, i32
  }
  func.func @transform_9(%arg0: i32, %arg1: i32) -> (i32, i32) {
    %c0_i32 = arith.constant 0 : i32
    %c0_i32_0 = arith.constant 0 : i32
    %c0_i32_1 = arith.constant 0 : i32
    return %c0_i32, %c0_i32_0 : i32, i32
  }
  func.func @transform_10(%arg0: i32, %arg1: i32) -> (i32, i32) {
    %c0_i32 = arith.constant 0 : i32
    %c0_i32_0 = arith.constant 0 : i32
    %c0_i32_1 = arith.constant 0 : i32
    return %c0_i32, %c0_i32_0 : i32, i32
  }
  func.func @transform_11(%arg0: i32, %arg1: i32) -> (i32, i32) {
    %c0_i32 = arith.constant 0 : i32
    %c0_i32_0 = arith.constant 0 : i32
    %c0_i32_1 = arith.constant 0 : i32
    return %c0_i32, %c0_i32_0 : i32, i32
  }
  func.func @transform_12(%arg0: i32, %arg1: i32) -> (i32, i32) {
    %c0_i32 = arith.constant 0 : i32
    %c0_i32_0 = arith.constant 0 : i32
    %c0_i32_1 = arith.constant 0 : i32
    return %c0_i32, %c0_i32_0 : i32, i32
  }
  func.func @transform_13(%arg0: i32, %arg1: i32) -> (i32, i32) {
    %c0_i32 = arith.constant 0 : i32
    %c0_i32_0 = arith.constant 0 : i32
    return %arg1, %c0_i32 : i32, i32
  }
}

</mosaic_0001>

<llo_original>
// kernel: tpu_custom_call.1
$region0: #{tpu_custom_call.1}
  #allocation0 [shape = 'u32[]', space=smem, size = 0x4, offset = 0x4, fixed_abs, tag = 'smem constant byte address 0x4 - core index']
  #allocation1 [shape = 'u32[144,128]{1,0:T(1,128)}', space=vmem, size = 0x12000, scoped, tag = 'internal scratch']
  #allocation2 [shape = 'bf16[256,128]{1,0:T(8,128)(2,1)}', space=vmem, size = 0x10000, scoped, tag = 'scratch operand']
  #allocation3 [shape = 'bf16[256,128]{1,0:T(8,128)(2,1)}', space=vmem, size = 0x10000, scoped, tag = 'scratch operand']
  %s0 = inlined_call_operand.hbm [shape: bf16[256,256], index: 0, kind: input, shape index: {}]
  %s1 = inlined_call_operand.hbm [shape: bf16[256,256], index: 1, kind: input, shape index: {}]
  %s2 = inlined_call_operand.hbm [shape: bf16[256,128], index: 2, kind: input, shape index: {}]
  %s3 = inlined_call_operand.hbm [shape: bf16[256,128], index: 3, kind: input, shape index: {}]
  %s4 = inlined_call_operand.hbm [shape: bf16[128,128], index: 4, kind: input, shape index: {}]
  %s5 = inlined_call_operand.hbm [shape: bf16[128,128], index: 5, kind: input, shape index: {}]
  %s6 = inlined_call_operand.vmem [shape: f32[1,128], index: 6, kind: input, shape index: {}]
  %s7 = inlined_call_operand.vmem [shape: f32[1,128], index: 7, kind: input, shape index: {}]
  %s8 = inlined_call_operand.vmem [shape: f32[1,128], index: 8, kind: input, shape index: {}]
  %s9 = inlined_call_operand.vmem [shape: f32[1,128], index: 9, kind: input, shape index: {}]
  %s10 = inlined_call_operand.hbm [shape: bf16[128,128], index: 10, kind: input, shape index: {}]
  %s11 = inlined_call_operand.hbm [shape: bf16[128,128], index: 11, kind: input, shape index: {}]
  %s12 = inlined_call_operand.vmem [shape: f32[1,128], index: 12, kind: input, shape index: {}]
  %s13 = inlined_call_operand.hbm [shape: f32[256,128], index: 13, kind: output, shape index: {}]
  %s14 = sld [smem:[#allocation0]]
  $region125: #{tpu_custom_call.1} parent=0
    _
  %s16 = ssub.s32 1, %s14
  %s17 = scalar_select 0, %s16, %s14
  $region1: #{tpu_custom_call.1} parent=0
    #allocation4 [shape = 'u8[131072]{0}', space=vmem, size = 0x20000, scoped, tag = 'input window, operand 0, single buffered']
    #allocation5 [shape = 's32[2]{0}', space=sflag, size = 0x8, scoped, tag = 'scoped memory for tpu_custom_call.1']
    #allocation6 [shape = 's32[2]{0}', space=sflag, size = 0x8, scoped, tag = 'scoped memory for tpu_custom_call.1']
    #allocation7 [shape = 'u8[131072]{0}', space=vmem, size = 0x20000, scoped, tag = 'input window, operand 1, single buffered']
    #allocation8 [shape = 's32[1]{0}', space=sflag, size = 0x4, scoped, tag = 'scoped memory for tpu_custom_call.1']
    #allocation9 [shape = 'u8[65536]{0}', space=vmem, size = 0x10000, scoped, tag = 'input window, operand 2, single buffered']
    #allocation10 [shape = 'u8[65536]{0}', space=vmem, size = 0x10000, scoped, tag = 'input window, operand 3, single buffered']
    #allocation11 [shape = 's32[1]{0}', space=sflag, size = 0x4, scoped, tag = 'scoped memory for tpu_custom_call.1']
    #allocation12 [shape = 'u8[32768]{0}', space=vmem, size = 0x8000, scoped, tag = 'input window, operand 4, single buffered']
    #allocation13 [shape = 'u8[32768]{0}', space=vmem, size = 0x8000, scoped, tag = 'input window, operand 5, single buffered']
    #allocation14 [shape = 's32[1]{0}', space=sflag, size = 0x4, scoped, tag = 'scoped memory for tpu_custom_call.1']
    #allocation15 [shape = 'u8[32768]{0}', space=vmem, size = 0x8000, scoped, tag = 'input window, operand 10, single buffered']
    #allocation16 [shape = 'u8[32768]{0}', space=vmem, size = 0x8000, scoped, tag = 'input window, operand 11, single buffered']
    #allocation17 [shape = 's32[1]{0}', space=sflag, size = 0x4, scoped, tag = 'scoped memory for tpu_custom_call.1']
    #allocation18 [shape = 'u8[131072]{0}', space=vmem, size = 0x20000, scoped, tag = 'output window, operand 0, single buffered']
    %18 = vsyncpa [#allocation5], 0
    %19 = vsyncpa [#allocation8], 0
    %20 = vsyncpa [#allocation11], 0
    %21 = vsyncpa [#allocation14], 0
    %22 = vsyncpa [#allocation17], 0
    %23 = vsyncpa [#allocation6], 0
    loop: start=0, step=1, limit=4
    $region2: #{tpu_custom_call.1} parent=1 // loop_pre_header
      _
    $region3: #{tpu_custom_call.1} parent=1 // loop_header
      %s25 = sphi 0, %s29
      %p26 = scmp.ge.s32.totalorder %s25, 4
      %s32 = sphi 0, %s44
      %s33 = sphi 0, %s40
      %s34 = sphi 0, %s32
      %s35 = sphi 0, %s33
      %s36 = sphi 0, %s34
      %s37 = sphi 0, %s35
      %s47 = sphi 0, %s49
      %s50 = sphi 0, %s47
      %s51 = sphi 0, %s50
      %s67 = sphi 0, %s51
      %s73 = sphi 0, %s75
      %s76 = sphi 0, %s73
      %s77 = sphi 0, %s76
      %s93 = sphi 0, %s77
      %s97 = sphi 0, %s97
      %s99 = sphi 0, %s97
      %s100 = sphi 0, %s99
      %s114 = sphi 0, %s100
      %s118 = sphi 0, %s118
      %s120 = sphi 0, %s118
      %s121 = sphi 0, %s120
      %s135 = sphi 0, %s121
      %s139 = sphi 0, %s139
      %s141 = sphi 0, %s139
      %s142 = sphi 0, %s141
      %s156 = sphi 0, %s142
      %s160 = sphi 0, %s160
      %s162 = sphi 0, %s160
      %s163 = sphi 0, %s162
      %s177 = sphi 0, %s163
      %s181 = sphi 0, %s181
      %s183 = sphi 0, %s181
      %s184 = sphi 0, %s183
      %s198 = sphi 0, %s184
      %s202 = sphi 0, %s202
      %s204 = sphi 0, %s202
      %s205 = sphi 0, %s204
      %s219 = sphi 0, %s205
      %s223 = sphi 0, %s223
      %s225 = sphi 0, %s223
      %s226 = sphi 0, %s225
      %s240 = sphi 0, %s226
      %s244 = sphi 0, %s244
      %s246 = sphi 0, %s244
      %s247 = sphi 0, %s246
      %s261 = sphi 0, %s247
      %s265 = sphi 0, %s265
      %s267 = sphi 0, %s265
      %s268 = sphi 0, %s267
      %s282 = sphi 0, %s268
      %s286 = sphi 0, %s286
      %s288 = sphi 0, %s286
      %s289 = sphi 0, %s288
      %s303 = sphi 0, %s289
      %s307 = sphi 0, %s307
      %s309 = sphi 0, %s307
      %s310 = sphi 0, %s309
      %s324 = sphi 0, %s310
      %s330 = sphi 0, %s332
      %s333 = sphi 0, %s330
      %s334 = sphi 0, %s333
      %s350 = sphi 0, %s334
    $region4: #{tpu_custom_call.1} parent=1 // loop_header_branch
      %28 = sbr.rel (%p26) target = $region8
    $region5: #{tpu_custom_call.1} parent=1 // loop_body
      %s30 = ssub.s32 %s25, 1
      %s31 = ssub.s32 %s25, 2
      %s38 = sadd.s32 1, %s33
      %p39 = scmp.ge.s32.totalorder %s38, 1
      %s40 = scalar_select %p39, 0, %s38
      %s41 = sadd.s32 1, %s32
      %s42 = scalar_select %p39, %s41, %s32
      %p43 = scmp.ge.s32.totalorder %s42, 2
      %s44 = scalar_select %p43, 0, %s42
      %s45 = ssub.s32 %s33, %s40
      %p46 = scmp.eq.s32.totalorder %s45, 0
      %s48 = sadd.s32 %s47, 1
      %s49 = scalar_select %p46, %s47, %s48
      %p52 = pneg %p46
      %p53 = scmp.eq.s32.totalorder %s25, 1
      %p54 = por %p52, %p53
      %p55 = scmp.ne.s32.totalorder %s47, %s50
      %p56 = scmp.eq.s32.totalorder %s25, 0
      %p57 = por %p55, %p56
      %p58 = scmp.ne.s32.totalorder %s47, %s50
      %p59 = scmp.eq.s32.totalorder %s30, 1
      %p60 = por %p58, %p59
      %p61 = scmp.ne.s32.totalorder %s50, %s51
      %p62 = scmp.eq.s32.totalorder %s30, 0
      %p63 = por %p61, %p62
      %p64 = scmp.ne.s32.totalorder %s50, %s51
      %p65 = scmp.eq.s32.totalorder %s31, 1
      %p66 = por %p64, %p65
      %p68 = scmp.ne.s32.totalorder %s51, %s67
      %p69 = scmp.eq.s32.totalorder %s31, 0
      %p70 = por %p68, %p69
      %s71 = ssub.s32 %s33, %s40
      %p72 = scmp.eq.s32.totalorder %s71, 0
      %s74 = sadd.s32 %s73, 1
      %s75 = scalar_select %p72, %s73, %s74
      %p78 = pneg %p72
      %p79 = scmp.eq.s32.totalorder %s25, 1
      %p80 = por %p78, %p79
      %p81 = scmp.ne.s32.totalorder %s73, %s76
      %p82 = scmp.eq.s32.totalorder %s25, 0
      %p83 = por %p81, %p82
      %p84 = scmp.ne.s32.totalorder %s73, %s76
      %p85 = scmp.eq.s32.totalorder %s30, 1
      %p86 = por %p84, %p85
      %p87 = scmp.ne.s32.totalorder %s76, %s77
      %p88 = scmp.eq.s32.totalorder %s30, 0
      %p89 = por %p87, %p88
      %p90 = scmp.ne.s32.totalorder %s76, %s77
      %p91 = scmp.eq.s32.totalorder %s31, 1
      %p92 = por %p90, %p91
      %p94 = scmp.ne.s32.totalorder %s77, %s93
      %p95 = scmp.eq.s32.totalorder %s31, 0
      %p96 = por %p94, %p95
      %s98 = sadd.s32 %s97, 1
      %p101 = scmp.eq.s32.totalorder %s25, 1
      %p102 = scmp.ne.s32.totalorder %s97, %s99
      %p103 = scmp.eq.s32.totalorder %s25, 0
      %p104 = por %p102, %p103
      %p105 = scmp.ne.s32.totalorder %s97, %s99
      %p106 = scmp.eq.s32.totalorder %s30, 1
      %p107 = por %p105, %p106
      %p108 = scmp.ne.s32.totalorder %s99, %s100
      %p109 = scmp.eq.s32.totalorder %s30, 0
      %p110 = por %p108, %p109
      %p111 = scmp.ne.s32.totalorder %s99, %s100
      %p112 = scmp.eq.s32.totalorder %s31, 1
      %p113 = por %p111, %p112
      %p115 = scmp.ne.s32.totalorder %s100, %s114
      %p116 = scmp.eq.s32.totalorder %s31, 0
      %p117 = por %p115, %p116
      %s119 = sadd.s32 %s118, 1
      %p122 = scmp.eq.s32.totalorder %s25, 1
      %p123 = scmp.ne.s32.totalorder %s118, %s120
      %p124 = scmp.eq.s32.totalorder %s25, 0
      %p125 = por %p123, %p124
      %p126 = scmp.ne.s32.totalorder %s118, %s120
      %p127 = scmp.eq.s32.totalorder %s30, 1
      %p128 = por %p126, %p127
      %p129 = scmp.ne.s32.totalorder %s120, %s121
      %p130 = scmp.eq.s32.totalorder %s30, 0
      %p131 = por %p129, %p130
      %p132 = scmp.ne.s32.totalorder %s120, %s121
      %p133 = scmp.eq.s32.totalorder %s31, 1
      %p134 = por %p132, %p133
      %p136 = scmp.ne.s32.totalorder %s121, %s135
      %p137 = scmp.eq.s32.totalorder %s31, 0
      %p138 = por %p136, %p137
      %s140 = sadd.s32 %s139, 1
      %p143 = scmp.eq.s32.totalorder %s25, 1
      %p144 = scmp.ne.s32.totalorder %s139, %s141
      %p145 = scmp.eq.s32.totalorder %s25, 0
      %p146 = por %p144, %p145
      %p147 = scmp.ne.s32.totalorder %s139, %s141
      %p148 = scmp.eq.s32.totalorder %s30, 1
      %p149 = por %p147, %p148
      %p150 = scmp.ne.s32.totalorder %s141, %s142
      %p151 = scmp.eq.s32.totalorder %s30, 0
      %p152 = por %p150, %p151
      %p153 = scmp.ne.s32.totalorder %s141, %s142
      %p154 = scmp.eq.s32.totalorder %s31, 1
      %p155 = por %p153, %p154
      %p157 = scmp.ne.s32.totalorder %s142, %s156
      %p158 = scmp.eq.s32.totalorder %s31, 0
      %p159 = por %p157, %p158
      %s161 = sadd.s32 %s160, 1
      %p164 = scmp.eq.s32.totalorder %s25, 1
      %p165 = scmp.ne.s32.totalorder %s160, %s162
      %p166 = scmp.eq.s32.totalorder %s25, 0
      %p167 = por %p165, %p166
      %p168 = scmp.ne.s32.totalorder %s160, %s162
      %p169 = scmp.eq.s32.totalorder %s30, 1
      %p170 = por %p168, %p169
      %p171 = scmp.ne.s32.totalorder %s162, %s163
      %p172 = scmp.eq.s32.totalorder %s30, 0
      %p173 = por %p171, %p172
      %p174 = scmp.ne.s32.totalorder %s162, %s163
      %p175 = scmp.eq.s32.totalorder %s31, 1
      %p176 = por %p174, %p175
      %p178 = scmp.ne.s32.totalorder %s163, %s177
      %p179 = scmp.eq.s32.totalorder %s31, 0
      %p180 = por %p178, %p179
      %s182 = sadd.s32 %s181, 1
      %p185 = scmp.eq.s32.totalorder %s25, 1
      %p186 = scmp.ne.s32.totalorder %s181, %s183
      %p187 = scmp.eq.s32.totalorder %s25, 0
      %p188 = por %p186, %p187
      %p189 = scmp.ne.s32.totalorder %s181, %s183
      %p190 = scmp.eq.s32.totalorder %s30, 1
      %p191 = por %p189, %p190
      %p192 = scmp.ne.s32.totalorder %s183, %s184
      %p193 = scmp.eq.s32.totalorder %s30, 0
      %p194 = por %p192, %p193
      %p195 = scmp.ne.s32.totalorder %s183, %s184
      %p196 = scmp.eq.s32.totalorder %s31, 1
      %p197 = por %p195, %p196
      %p199 = scmp.ne.s32.totalorder %s184, %s198
      %p200 = scmp.eq.s32.totalorder %s31, 0
      %p201 = por %p199, %p200
      %s203 = sadd.s32 %s202, 1
      %p206 = scmp.eq.s32.totalorder %s25, 1
      %p207 = scmp.ne.s32.totalorder %s202, %s204
      %p208 = scmp.eq.s32.totalorder %s25, 0
      %p209 = por %p207, %p208
      %p210 = scmp.ne.s32.totalorder %s202, %s204
      %p211 = scmp.eq.s32.totalorder %s30, 1
      %p212 = por %p210, %p211
      %p213 = scmp.ne.s32.totalorder %s204, %s205
      %p214 = scmp.eq.s32.totalorder %s30, 0
      %p215 = por %p213, %p214
      %p216 = scmp.ne.s32.totalorder %s204, %s205
      %p217 = scmp.eq.s32.totalorder %s31, 1
      %p218 = por %p216, %p217
      %p220 = scmp.ne.s32.totalorder %s205, %s219
      %p221 = scmp.eq.s32.totalorder %s31, 0
      %p222 = por %p220, %p221
      %s224 = sadd.s32 %s223, 1
      %p227 = scmp.eq.s32.totalorder %s25, 1
      %p228 = scmp.ne.s32.totalorder %s223, %s225
      %p229 = scmp.eq.s32.totalorder %s25, 0
      %p230 = por %p228, %p229
      %p231 = scmp.ne.s32.totalorder %s223, %s225
      %p232 = scmp.eq.s32.totalorder %s30, 1
      %p233 = por %p231, %p232
      %p234 = scmp.ne.s32.totalorder %s225, %s226
      %p235 = scmp.eq.s32.totalorder %s30, 0
      %p236 = por %p234, %p235
      %p237 = scmp.ne.s32.totalorder %s225, %s226
      %p238 = scmp.eq.s32.totalorder %s31, 1
      %p239 = por %p237, %p238
      %p241 = scmp.ne.s32.totalorder %s226, %s240
      %p242 = scmp.eq.s32.totalorder %s31, 0
      %p243 = por %p241, %p242
      %s245 = sadd.s32 %s244, 1
      %p248 = scmp.eq.s32.totalorder %s25, 1
      %p249 = scmp.ne.s32.totalorder %s244, %s246
      %p250 = scmp.eq.s32.totalorder %s25, 0
      %p251 = por %p249, %p250
      %p252 = scmp.ne.s32.totalorder %s244, %s246
      %p253 = scmp.eq.s32.totalorder %s30, 1
      %p254 = por %p252, %p253
      %p255 = scmp.ne.s32.totalorder %s246, %s247
      %p256 = scmp.eq.s32.totalorder %s30, 0
      %p257 = por %p255, %p256
      %p258 = scmp.ne.s32.totalorder %s246, %s247
      %p259 = scmp.eq.s32.totalorder %s31, 1
      %p260 = por %p258, %p259
      %p262 = scmp.ne.s32.totalorder %s247, %s261
      %p263 = scmp.eq.s32.totalorder %s31, 0
      %p264 = por %p262, %p263
      %s266 = sadd.s32 %s265, 1
      %p269 = scmp.eq.s32.totalorder %s25, 1
      %p270 = scmp.ne.s32.totalorder %s265, %s267
      %p271 = scmp.eq.s32.totalorder %s25, 0
      %p272 = por %p270, %p271
      %p273 = scmp.ne.s32.totalorder %s265, %s267
      %p274 = scmp.eq.s32.totalorder %s30, 1
      %p275 = por %p273, %p274
      %p276 = scmp.ne.s32.totalorder %s267, %s268
      %p277 = scmp.eq.s32.totalorder %s30, 0
      %p278 = por %p276, %p277
      %p279 = scmp.ne.s32.totalorder %s267, %s268
      %p280 = scmp.eq.s32.totalorder %s31, 1
      %p281 = por %p279, %p280
      %p283 = scmp.ne.s32.totalorder %s268, %s282
      %p284 = scmp.eq.s32.totalorder %s31, 0
      %p285 = por %p283, %p284
      %s287 = sadd.s32 %s286, 1
      %p290 = scmp.eq.s32.totalorder %s25, 1
      %p291 = scmp.ne.s32.totalorder %s286, %s288
      %p292 = scmp.eq.s32.totalorder %s25, 0
      %p293 = por %p291, %p292
      %p294 = scmp.ne.s32.totalorder %s286, %s288
      %p295 = scmp.eq.s32.totalorder %s30, 1
      %p296 = por %p294, %p295
      %p297 = scmp.ne.s32.totalorder %s288, %s289
      %p298 = scmp.eq.s32.totalorder %s30, 0
      %p299 = por %p297, %p298
      %p300 = scmp.ne.s32.totalorder %s288, %s289
      %p301 = scmp.eq.s32.totalorder %s31, 1
      %p302 = por %p300, %p301
      %p304 = scmp.ne.s32.totalorder %s289, %s303
      %p305 = scmp.eq.s32.totalorder %s31, 0
      %p306 = por %p304, %p305
      %s308 = sadd.s32 %s307, 1
      %p311 = scmp.eq.s32.totalorder %s25, 1
      %p312 = scmp.ne.s32.totalorder %s307, %s309
      %p313 = scmp.eq.s32.totalorder %s25, 0
      %p314 = por %p312, %p313
      %p315 = scmp.ne.s32.totalorder %s307, %s309
      %p316 = scmp.eq.s32.totalorder %s30, 1
      %p317 = por %p315, %p316
      %p318 = scmp.ne.s32.totalorder %s309, %s310
      %p319 = scmp.eq.s32.totalorder %s30, 0
      %p320 = por %p318, %p319
      %p321 = scmp.ne.s32.totalorder %s309, %s310
      %p322 = scmp.eq.s32.totalorder %s31, 1
      %p323 = por %p321, %p322
      %p325 = scmp.ne.s32.totalorder %s310, %s324
      %p326 = scmp.eq.s32.totalorder %s31, 0
      %p327 = por %p325, %p326
      %s328 = ssub.s32 %s33, %s40
      %p329 = scmp.eq.s32.totalorder %s328, 0
      %s331 = sadd.s32 %s330, 1
      %s332 = scalar_select %p329, %s330, %s331
      %p335 = pneg %p329
      %p336 = scmp.eq.s32.totalorder %s25, 1
      %p337 = por %p335, %p336
      %p338 = scmp.ne.s32.totalorder %s330, %s333
      %p339 = scmp.eq.s32.totalorder %s25, 0
      %p340 = por %p338, %p339
      %p341 = scmp.ne.s32.totalorder %s330, %s333
      %p342 = scmp.eq.s32.totalorder %s30, 1
      %p343 = por %p341, %p342
      %p344 = scmp.ne.s32.totalorder %s333, %s334
      %p345 = scmp.eq.s32.totalorder %s30, 0
      %p346 = por %p344, %p345
      %p347 = scmp.ne.s32.totalorder %s333, %s334
      %p348 = scmp.eq.s32.totalorder %s31, 1
      %p349 = por %p347, %p348
      %p351 = scmp.ne.s32.totalorder %s334, %s350
      %p352 = scmp.eq.s32.totalorder %s31, 0
      %p353 = por %p351, %p352
      %p354 = scmp.le.s32.totalorder 1, %s25
      %p355 = scmp.lt.s32.totalorder %s25, 3
      %p356 = pnand %p354, %p355
      %p357 = pneg %p356
      // Predicated region
      $region9: #{tpu_custom_call.1} parent=5 // pred_check
        _
      $region10: #{tpu_custom_call.1} parent=5 // pred_check_branch
        %359 = sbr.rel (%p356) target = $region12
      $region11: #{tpu_custom_call.1} parent=5 // pred_region
        %s360 = ssub.s32 %s25, 1
        // Predicated region
        $region13: #{tpu_custom_call.1} parent=11 // pred_check
          %p361 = pneg %p63
        $region14: #{tpu_custom_call.1} parent=11 // pred_check_branch
          %363 = sbr.rel (%p361) target = $region16
        $region15: #{tpu_custom_call.1} parent=11 // pred_region
          %s364 = smul.u32 32, %s35
          %s366 = ssub.s32 4096, 4096
          %367 = vsyncadd [#allocation5], %s366
          %s368 = smul.addr %s364, 2
          %s369 = smul.addr %s368, 64
          %s370 = scalar_lea.hbm %s0, %s369
          %s371 = sshll.u32 [#allocation4], 4
          %s372 = int_to_ptr.vmem [resolvable:$true] %s371
          %377 = dma.hbm_to_vmem [thread:$0]  %s370, 4096, %s372, [#allocation5], 128, 128, 8
        $region16: #{tpu_custom_call.1} parent=11 // pred_fallthru
          _
        // Predicated region
        $region17: #{tpu_custom_call.1} parent=11 // pred_check
          %p378 = pneg %p89
        $region18: #{tpu_custom_call.1} parent=11 // pred_check_branch
          %380 = sbr.rel (%p378) target = $region20
        $region19: #{tpu_custom_call.1} parent=11 // pred_region
          %s381 = smul.u32 32, %s35
          %s383 = ssub.s32 4096, 4096
          %384 = vsyncadd [#allocation8], %s383
          %s385 = smul.addr %s381, 2
          %s386 = smul.addr %s385, 64
          %s387 = scalar_lea.hbm %s1, %s386
          %s388 = sshll.u32 [#allocation7], 4
          %s389 = int_to_ptr.vmem [resolvable:$true] %s388
          %394 = dma.hbm_to_vmem [thread:$0]  %s387, 4096, %s389, [#allocation8], 128, 128, 8
        $region20: #{tpu_custom_call.1} parent=11 // pred_fallthru
          _
        // Predicated region
        $region21: #{tpu_custom_call.1} parent=11 // pred_check
          %p395 = pneg %p110
        $region22: #{tpu_custom_call.1} parent=11 // pred_check_branch
          %397 = sbr.rel (%p395) target = $region24
        $region23: #{tpu_custom_call.1} parent=11 // pred_region
          %s399 = ssub.s32 2048, 2048
          %400 = vsyncadd [#allocation8], %s399
          %s401 = sshll.u32 [#allocation9], 4
          %s402 = int_to_ptr.vmem [resolvable:$true] %s401
          %407 = dma.hbm_to_vmem [thread:$0]  %s2, 2048, %s402, [#allocation8], 64, 64, 4
        $region24: #{tpu_custom_call.1} parent=11 // pred_fallthru
          _
        // Predicated region
        $region25: #{tpu_custom_call.1} parent=11 // pred_check
          %p408 = pneg %p131
        $region26: #{tpu_custom_call.1} parent=11 // pred_check_branch
          %410 = sbr.rel (%p408) target = $region28
        $region27: #{tpu_custom_call.1} parent=11 // pred_region
          %s412 = ssub.s32 2048, 2048
          %413 = vsyncadd [#allocation11], %s412
          %s414 = sshll.u32 [#allocation10], 4
          %s415 = int_to_ptr.vmem [resolvable:$true] %s414
          %420 = dma.hbm_to_vmem [thread:$0]  %s3, 2048, %s415, [#allocation11], 64, 64, 4
        $region28: #{tpu_custom_call.1} parent=11 // pred_fallthru
          _
        // Predicated region
        $region29: #{tpu_custom_call.1} parent=11 // pred_check
          %p421 = pneg %p152
        $region30: #{tpu_custom_call.1} parent=11 // pred_check_branch
          %423 = sbr.rel (%p421) target = $region32
        $region31: #{tpu_custom_call.1} parent=11 // pred_region
          %s425 = ssub.s32 1024, 1024
          %426 = vsyncadd [#allocation11], %s425
          %s427 = sshll.u32 [#allocation12], 4
          %s428 = int_to_ptr.vmem [resolvable:$true] %s427
          %433 = dma.hbm_to_vmem [thread:$0]  %s4, 1024, %s428, [#allocation11], 64, 64, 4
        $region32: #{tpu_custom_call.1} parent=11 // pred_fallthru
          _
        // Predicated region
        $region33: #{tpu_custom_call.1} parent=11 // pred_check
          %p434 = pneg %p173
        $region34: #{tpu_custom_call.1} parent=11 // pred_check_branch
          %436 = sbr.rel (%p434) target = $region36
        $region35: #{tpu_custom_call.1} parent=11 // pred_region
          %s438 = ssub.s32 1024, 1024
          %439 = vsyncadd [#allocation14], %s438
          %s440 = sshll.u32 [#allocation13], 4
          %s441 = int_to_ptr.vmem [resolvable:$true] %s440
          %446 = dma.hbm_to_vmem [thread:$0]  %s5, 1024, %s441, [#allocation14], 64, 64, 4
        $region36: #{tpu_custom_call.1} parent=11 // pred_fallthru
          _
        // Predicated region
        $region37: #{tpu_custom_call.1} parent=11 // pred_check
          %p447 = pneg %p194
        $region38: #{tpu_custom_call.1} parent=11 // pred_check_branch
          %449 = sbr.rel (%p447) target = $region40
        $region39: #{tpu_custom_call.1} parent=11 // pred_region
          _
        $region40: #{tpu_custom_call.1} parent=11 // pred_fallthru
          _
        // Predicated region
        $region41: #{tpu_custom_call.1} parent=11 // pred_check
          %p450 = pneg %p215
        $region42: #{tpu_custom_call.1} parent=11 // pred_check_branch
          %452 = sbr.rel (%p450) target = $region44
        $region43: #{tpu_custom_call.1} parent=11 // pred_region
          _
        $region44: #{tpu_custom_call.1} parent=11 // pred_fallthru
          _
        // Predicated region
        $region45: #{tpu_custom_call.1} parent=11 // pred_check
          %p453 = pneg %p236
        $region46: #{tpu_custom_call.1} parent=11 // pred_check_branch
          %455 = sbr.rel (%p453) target = $region48
        $region47: #{tpu_custom_call.1} parent=11 // pred_region
          _
        $region48: #{tpu_custom_call.1} parent=11 // pred_fallthru
          _
        // Predicated region
        $region49: #{tpu_custom_call.1} parent=11 // pred_check
          %p456 = pneg %p257
        $region50: #{tpu_custom_call.1} parent=11 // pred_check_branch
          %458 = sbr.rel (%p456) target = $region52
        $region51: #{tpu_custom_call.1} parent=11 // pred_region
          _
        $region52: #{tpu_custom_call.1} parent=11 // pred_fallthru
          _
        // Predicated region
        $region53: #{tpu_custom_call.1} parent=11 // pred_check
          %p459 = pneg %p278
        $region54: #{tpu_custom_call.1} parent=11 // pred_check_branch
          %461 = sbr.rel (%p459) target = $region56
        $region55: #{tpu_custom_call.1} parent=11 // pred_region
          %s463 = ssub.s32 1024, 1024
          %464 = vsyncadd [#allocation14], %s463
          %s465 = sshll.u32 [#allocation15], 4
          %s466 = int_to_ptr.vmem [resolvable:$true] %s465
          %471 = dma.hbm_to_vmem [thread:$0]  %s10, 1024, %s466, [#allocation14], 64, 64, 4
        $region56: #{tpu_custom_call.1} parent=11 // pred_fallthru
          _
        // Predicated region
        $region57: #{tpu_custom_call.1} parent=11 // pred_check
          %p472 = pneg %p299
        $region58: #{tpu_custom_call.1} parent=11 // pred_check_branch
          %474 = sbr.rel (%p472) target = $region60
        $region59: #{tpu_custom_call.1} parent=11 // pred_region
          %s476 = ssub.s32 1024, 1024
          %477 = vsyncadd [#allocation17], %s476
          %s478 = sshll.u32 [#allocation16], 4
          %s479 = int_to_ptr.vmem [resolvable:$true] %s478
          %484 = dma.hbm_to_vmem [thread:$0]  %s11, 1024, %s479, [#allocation17], 64, 64, 4
        $region60: #{tpu_custom_call.1} parent=11 // pred_fallthru
          _
        // Predicated region
        $region61: #{tpu_custom_call.1} parent=11 // pred_check
          %p485 = pneg %p320
        $region62: #{tpu_custom_call.1} parent=11 // pred_check_branch
          %487 = sbr.rel (%p485) target = $region64
        $region63: #{tpu_custom_call.1} parent=11 // pred_region
          _
        $region64: #{tpu_custom_call.1} parent=11 // pred_fallthru
          _
      $region12: #{tpu_custom_call.1} parent=5 // pred_fallthru
        _
      %p488 = scmp.lt.s32.totalorder %s25, 2
      // Predicated region
      $region65: #{tpu_custom_call.1} parent=5 // pred_check
        %p489 = pneg %p488
      $region66: #{tpu_custom_call.1} parent=5 // pred_check_branch
        %491 = sbr.rel (%p489) target = $region68
      $region67: #{tpu_custom_call.1} parent=5 // pred_region
        _
      $region68: #{tpu_custom_call.1} parent=5 // pred_fallthru
        _
      %p492 = scmp.le.s32.totalorder 1, %s25
      %p493 = scmp.lt.s32.totalorder %s25, 3
      %p494 = pnand %p492, %p493
      %p495 = pneg %p494
      // Predicated region
      $region69: #{tpu_custom_call.1} parent=5 // pred_check
        _
      $region70: #{tpu_custom_call.1} parent=5 // pred_check_branch
        %497 = sbr.rel (%p494) target = $region72
      $region71: #{tpu_custom_call.1} parent=5 // pred_region
        %s498 = ssub.s32 %s25, 1
        // Predicated region
        $region73: #{tpu_custom_call.1} parent=71 // pred_check
          %p499 = pneg %p63
        $region74: #{tpu_custom_call.1} parent=71 // pred_check_branch
          %501 = sbr.rel (%p499) target = $region76
        $region75: #{tpu_custom_call.1} parent=71 // pred_region
          %502 = dma.done [#allocation5], 4096
        $region76: #{tpu_custom_call.1} parent=71 // pred_fallthru
          _
        // Predicated region
        $region77: #{tpu_custom_call.1} parent=71 // pred_check
          %p503 = pneg %p89
        $region78: #{tpu_custom_call.1} parent=71 // pred_check_branch
          %505 = sbr.rel (%p503) target = $region80
        $region79: #{tpu_custom_call.1} parent=71 // pred_region
          %506 = dma.done [#allocation8], 4096
        $region80: #{tpu_custom_call.1} parent=71 // pred_fallthru
          _
        // Predicated region
        $region81: #{tpu_custom_call.1} parent=71 // pred_check
          %p507 = pneg %p110
        $region82: #{tpu_custom_call.1} parent=71 // pred_check_branch
          %509 = sbr.rel (%p507) target = $region84
        $region83: #{tpu_custom_call.1} parent=71 // pred_region
          %510 = dma.done [#allocation8], 2048
        $region84: #{tpu_custom_call.1} parent=71 // pred_fallthru
          _
        // Predicated region
        $region85: #{tpu_custom_call.1} parent=71 // pred_check
          %p511 = pneg %p131
        $region86: #{tpu_custom_call.1} parent=71 // pred_check_branch
          %513 = sbr.rel (%p511) target = $region88
        $region87: #{tpu_custom_call.1} parent=71 // pred_region
          %514 = dma.done [#allocation11], 2048
        $region88: #{tpu_custom_call.1} parent=71 // pred_fallthru
          _
        // Predicated region
        $region89: #{tpu_custom_call.1} parent=71 // pred_check
          %p515 = pneg %p152
        $region90: #{tpu_custom_call.1} parent=71 // pred_check_branch
          %517 = sbr.rel (%p515) target = $region92
        $region91: #{tpu_custom_call.1} parent=71 // pred_region
          %518 = dma.done [#allocation11], 1024
        $region92: #{tpu_custom_call.1} parent=71 // pred_fallthru
          _
        // Predicated region
        $region93: #{tpu_custom_call.1} parent=71 // pred_check
          %p519 = pneg %p173
        $region94: #{tpu_custom_call.1} parent=71 // pred_check_branch
          %521 = sbr.rel (%p519) target = $region96
        $region95: #{tpu_custom_call.1} parent=71 // pred_region
          %522 = dma.done [#allocation14], 1024
        $region96: #{tpu_custom_call.1} parent=71 // pred_fallthru
          _
        // Predicated region
        $region97: #{tpu_custom_call.1} parent=71 // pred_check
          %p523 = pneg %p278
        $region98: #{tpu_custom_call.1} parent=71 // pred_check_branch
          %525 = sbr.rel (%p523) target = $region100
        $region99: #{tpu_custom_call.1} parent=71 // pred_region
          %526 = dma.done [#allocation14], 1024
        $region100: #{tpu_custom_call.1} parent=71 // pred_fallthru
          _
        // Predicated region
        $region101: #{tpu_custom_call.1} parent=71 // pred_check
          %p527 = pneg %p299
        $region102: #{tpu_custom_call.1} parent=71 // pred_check_branch
          %529 = sbr.rel (%p527) target = $region104
        $region103: #{tpu_custom_call.1} parent=71 // pred_region
          %530 = dma.done [#allocation17], 1024
        $region104: #{tpu_custom_call.1} parent=71 // pred_fallthru
          _
        %p531 = pneg %p63
        %p532 = pneg %p60
        %p533 = pneg %p89
        %p534 = pneg %p86
        %p535 = pneg %p110
        %p536 = pneg %p107
        %p537 = pneg %p131
        %p538 = pneg %p128
        %p539 = pneg %p152
        %p540 = pneg %p149
        %p541 = pneg %p173
        %p542 = pneg %p170
        %p543 = pneg %p194
        %p544 = pneg %p191
        %p545 = pneg %p215
        %p546 = pneg %p212
        %p547 = pneg %p236
        %p548 = pneg %p233
        %p549 = pneg %p257
        %p550 = pneg %p254
        %p551 = pneg %p278
        %p552 = pneg %p275
        %p553 = pneg %p299
        %p554 = pneg %p296
        %p555 = pneg %p320
        %p556 = pneg %p317
        %p557 = pneg %p346
        %p558 = pneg %p343
        %s559 = smul.u32 32, %s35
        %s560 = smul.u32 32, %s35
        %s561 = smul.u32 32, %s35
        %p563 = scmp.eq.s32.totalorder %s34, 0
        // Predicated region
        $region105: #{tpu_custom_call.1} parent=71 // pred_check
          %p564 = pneg %p563
        $region106: #{tpu_custom_call.1} parent=71 // pred_check_branch
          %566 = sbr.rel (%p564) target = $region108
        $region107: #{tpu_custom_call.1} parent=71 // pred_region
          %v567 = vld [vmem:[#allocation4] sm:$0xff]
          %v568 = vld [vmem:[#allocation4 + $0x8] sm:$0xff]
          %v569 = vld [vmem:[#allocation4 + $0x10] sm:$0xff]
          %v570 = vld [vmem:[#allocation4 + $0x18] sm:$0xff]
          %v571 = vld [vmem:[#allocation4 + $0x20] sm:$0xff]
          %v572 = vld [vmem:[#allocation4 + $0x28] sm:$0xff]
          %v573 = vld [vmem:[#allocation4 + $0x30] sm:$0xff]
          %v574 = vld [vmem:[#allocation4 + $0x38] sm:$0xff]
          %v575 = vld [vmem:[#allocation4 + $0x40] sm:$0xff]
          %v576 = vld [vmem:[#allocation4 + $0x48] sm:$0xff]
          %v577 = vld [vmem:[#allocation4 + $0x50] sm:$0xff]
          %v578 = vld [vmem:[#allocation4 + $0x58] sm:$0xff]
          %v579 = vld [vmem:[#allocation4 + $0x60] sm:$0xff]
          %v580 = vld [vmem:[#allocation4 + $0x68] sm:$0xff]
          %v581 = vld [vmem:[#allocation4 + $0x70] sm:$0xff]
          %v582 = vld [vmem:[#allocation4 + $0x78] sm:$0xff]
          %v583 = vld [vmem:[#allocation4 + $0x80] sm:$0xff]
          %v584 = vld [vmem:[#allocation4 + $0x88] sm:$0xff]
          %v585 = vld [vmem:[#allocation4 + $0x90] sm:$0xff]
          %v586 = vld [vmem:[#allocation4 + $0x98] sm:$0xff]
          %v587 = vld [vmem:[#allocation4 + $0xa0] sm:$0xff]
          %v588 = vld [vmem:[#allocation4 + $0xa8] sm:$0xff]
          %v589 = vld [vmem:[#allocation4 + $0xb0] sm:$0xff]
          %v590 = vld [vmem:[#allocation4 + $0xb8] sm:$0xff]
          %v591 = vld [vmem:[#allocation4 + $0xc0] sm:$0xff]
          %v592 = vld [vmem:[#allocation4 + $0xc8] sm:$0xff]
          %v593 = vld [vmem:[#allocation4 + $0xd0] sm:$0xff]
          %v594 = vld [vmem:[#allocation4 + $0xd8] sm:$0xff]
          %v595 = vld [vmem:[#allocation4 + $0xe0] sm:$0xff]
          %v596 = vld [vmem:[#allocation4 + $0xe8] sm:$0xff]
          %v597 = vld [vmem:[#allocation4 + $0xf0] sm:$0xff]
          %v598 = vld [vmem:[#allocation4 + $0xf8] sm:$0xff]
          %v599 = vld [vmem:[#allocation9] sm:$0xf]
          %v600 = vld [vmem:[#allocation9 + $0x4] sm:$0xf]
          %v601 = vld [vmem:[#allocation9 + $0x8] sm:$0xf]
          %v602 = vld [vmem:[#allocation9 + $0xc] sm:$0xf]
          %v603 = vld [vmem:[#allocation9 + $0x10] sm:$0xf]
          %v604 = vld [vmem:[#allocation9 + $0x14] sm:$0xf]
          %v605 = vld [vmem:[#allocation9 + $0x18] sm:$0xf]
          %v606 = vld [vmem:[#allocation9 + $0x1c] sm:$0xf]
          %v607 = vld [vmem:[#allocation9 + $0x20] sm:$0xf]
          %v608 = vld [vmem:[#allocation9 + $0x24] sm:$0xf]
          %v609 = vld [vmem:[#allocation9 + $0x28] sm:$0xf]
          %v610 = vld [vmem:[#allocation9 + $0x2c] sm:$0xf]
          %v611 = vld [vmem:[#allocation9 + $0x30] sm:$0xf]
          %v612 = vld [vmem:[#allocation9 + $0x34] sm:$0xf]
          %v613 = vld [vmem:[#allocation9 + $0x38] sm:$0xf]
          %v614 = vld [vmem:[#allocation9 + $0x3c] sm:$0xf]
          %v615 = vld [vmem:[#allocation9 + $0x40] sm:$0xf]
          %v616 = vld [vmem:[#allocation9 + $0x44] sm:$0xf]
          %v617 = vld [vmem:[#allocation9 + $0x48] sm:$0xf]
          %v618 = vld [vmem:[#allocation9 + $0x4c] sm:$0xf]
          %v619 = vld [vmem:[#allocation9 + $0x50] sm:$0xf]
          %v620 = vld [vmem:[#allocation9 + $0x54] sm:$0xf]
          %v621 = vld [vmem:[#allocation9 + $0x58] sm:$0xf]
          %v622 = vld [vmem:[#allocation9 + $0x5c] sm:$0xf]
          %v623 = vld [vmem:[#allocation9 + $0x60] sm:$0xf]
          %v624 = vld [vmem:[#allocation9 + $0x64] sm:$0xf]
          %v625 = vld [vmem:[#allocation9 + $0x68] sm:$0xf]
          %v626 = vld [vmem:[#allocation9 + $0x6c] sm:$0xf]
          %v627 = vld [vmem:[#allocation9 + $0x70] sm:$0xf]
          %v628 = vld [vmem:[#allocation9 + $0x74] sm:$0xf]
          %v629 = vld [vmem:[#allocation9 + $0x78] sm:$0xf]
          %v630 = vld [vmem:[#allocation9 + $0x7c] sm:$0xf]
          %v631 = vld [vmem:[#allocation7] sm:$0xff]
          %v632 = vld [vmem:[#allocation7 + $0x8] sm:$0xff]
          %v633 = vld [vmem:[#allocation7 + $0x10] sm:$0xff]
          %v634 = vld [vmem:[#allocation7 + $0x18] sm:$0xff]
          %v635 = vld [vmem:[#allocation7 + $0x20] sm:$0xff]
          %v636 = vld [vmem:[#allocation7 + $0x28] sm:$0xff]
          %v637 = vld [vmem:[#allocation7 + $0x30] sm:$0xff]
          %v638 = vld [vmem:[#allocation7 + $0x38] sm:$0xff]
          %v639 = vld [vmem:[#allocation7 + $0x40] sm:$0xff]
          %v640 = vld [vmem:[#allocation7 + $0x48] sm:$0xff]
          %v641 = vld [vmem:[#allocation7 + $0x50] sm:$0xff]
          %v642 = vld [vmem:[#allocation7 + $0x58] sm:$0xff]
          %v643 = vld [vmem:[#allocation7 + $0x60] sm:$0xff]
          %v644 = vld [vmem:[#allocation7 + $0x68] sm:$0xff]
          %v645 = vld [vmem:[#allocation7 + $0x70] sm:$0xff]
          %v646 = vld [vmem:[#allocation7 + $0x78] sm:$0xff]
          %v647 = vld [vmem:[#allocation7 + $0x80] sm:$0xff]
          %v648 = vld [vmem:[#allocation7 + $0x88] sm:$0xff]
          %v649 = vld [vmem:[#allocation7 + $0x90] sm:$0xff]
          %v650 = vld [vmem:[#allocation7 + $0x98] sm:$0xff]
          %v651 = vld [vmem:[#allocation7 + $0xa0] sm:$0xff]
          %v652 = vld [vmem:[#allocation7 + $0xa8] sm:$0xff]
          %v653 = vld [vmem:[#allocation7 + $0xb0] sm:$0xff]
          %v654 = vld [vmem:[#allocation7 + $0xb8] sm:$0xff]
          %v655 = vld [vmem:[#allocation7 + $0xc0] sm:$0xff]
          %v656 = vld [vmem:[#allocation7 + $0xc8] sm:$0xff]
          %v657 = vld [vmem:[#allocation7 + $0xd0] sm:$0xff]
          %v658 = vld [vmem:[#allocation7 + $0xd8] sm:$0xff]
          %v659 = vld [vmem:[#allocation7 + $0xe0] sm:$0xff]
          %v660 = vld [vmem:[#allocation7 + $0xe8] sm:$0xff]
          %v661 = vld [vmem:[#allocation7 + $0xf0] sm:$0xff]
          %v662 = vld [vmem:[#allocation7 + $0xf8] sm:$0xff]
          %v663 = vld [vmem:[#allocation10] sm:$0xf]
          %v664 = vld [vmem:[#allocation10 + $0x4] sm:$0xf]
          %v665 = vld [vmem:[#allocation10 + $0x8] sm:$0xf]
          %v666 = vld [vmem:[#allocation10 + $0xc] sm:$0xf]
          %v667 = vld [vmem:[#allocation10 + $0x10] sm:$0xf]
          %v668 = vld [vmem:[#allocation10 + $0x14] sm:$0xf]
          %v669 = vld [vmem:[#allocation10 + $0x18] sm:$0xf]
          %v670 = vld [vmem:[#allocation10 + $0x1c] sm:$0xf]
          %v671 = vld [vmem:[#allocation10 + $0x20] sm:$0xf]
          %v672 = vld [vmem:[#allocation10 + $0x24] sm:$0xf]
          %v673 = vld [vmem:[#allocation10 + $0x28] sm:$0xf]
          %v674 = vld [vmem:[#allocation10 + $0x2c] sm:$0xf]
          %v675 = vld [vmem:[#allocation10 + $0x30] sm:$0xf]
          %v676 = vld [vmem:[#allocation10 + $0x34] sm:$0xf]
          %v677 = vld [vmem:[#allocation10 + $0x38] sm:$0xf]
          %v678 = vld [vmem:[#allocation10 + $0x3c] sm:$0xf]
          %v679 = vld [vmem:[#allocation10 + $0x40] sm:$0xf]
          %v680 = vld [vmem:[#allocation10 + $0x44] sm:$0xf]
          %v681 = vld [vmem:[#allocation10 + $0x48] sm:$0xf]
          %v682 = vld [vmem:[#allocation10 + $0x4c] sm:$0xf]
          %v683 = vld [vmem:[#allocation10 + $0x50] sm:$0xf]
          %v684 = vld [vmem:[#allocation10 + $0x54] sm:$0xf]
          %v685 = vld [vmem:[#allocation10 + $0x58] sm:$0xf]
          %v686 = vld [vmem:[#allocation10 + $0x5c] sm:$0xf]
          %v687 = vld [vmem:[#allocation10 + $0x60] sm:$0xf]
          %v688 = vld [vmem:[#allocation10 + $0x64] sm:$0xf]
          %v689 = vld [vmem:[#allocation10 + $0x68] sm:$0xf]
          %v690 = vld [vmem:[#allocation10 + $0x6c] sm:$0xf]
          %v691 = vld [vmem:[#allocation10 + $0x70] sm:$0xf]
          %v692 = vld [vmem:[#allocation10 + $0x74] sm:$0xf]
          %v693 = vld [vmem:[#allocation10 + $0x78] sm:$0xf]
          %v694 = vld [vmem:[#allocation10 + $0x7c] sm:$0xf]
          %v695 = vld [vmem:[%s6] sm:$0x1]
          %v697 = vlaneseq
          %v698 = vshrl.u32 %v697, 7
          %v699 = vsub.s32 0, %v698
          %v700 = vrot.slane %v695, %v699
          %v734 = vunpack.c.l.b16 %v567
          %v735 = vunpack.c.h.b16 %v567
          %v736 = vunpack.c.l.b16 %v568
          %v737 = vunpack.c.h.b16 %v568
          %v738 = vunpack.c.l.b16 %v569
          %v739 = vunpack.c.h.b16 %v569
          %v740 = vunpack.c.l.b16 %v570
          %v741 = vunpack.c.h.b16 %v570
          %v742 = vunpack.c.l.b16 %v571
          %v743 = vunpack.c.h.b16 %v571
          %v744 = vunpack.c.l.b16 %v572
          %v745 = vunpack.c.h.b16 %v572
          %v746 = vunpack.c.l.b16 %v573
          %v747 = vunpack.c.h.b16 %v573
          %v748 = vunpack.c.l.b16 %v574
          %v749 = vunpack.c.h.b16 %v574
          %v750 = vunpack.c.l.b16 %v575
          %v751 = vunpack.c.h.b16 %v575
          %v752 = vunpack.c.l.b16 %v576
          %v753 = vunpack.c.h.b16 %v576
          %v754 = vunpack.c.l.b16 %v577
          %v755 = vunpack.c.h.b16 %v577
          %v756 = vunpack.c.l.b16 %v578
          %v757 = vunpack.c.h.b16 %v578
          %v758 = vunpack.c.l.b16 %v579
          %v759 = vunpack.c.h.b16 %v579
          %v760 = vunpack.c.l.b16 %v580
          %v761 = vunpack.c.h.b16 %v580
          %v762 = vunpack.c.l.b16 %v581
          %v763 = vunpack.c.h.b16 %v581
          %v764 = vunpack.c.l.b16 %v582
          %v765 = vunpack.c.h.b16 %v582
          %v766 = vunpack.c.l.b16 %v583
          %v767 = vunpack.c.h.b16 %v583
          %v768 = vunpack.c.l.b16 %v584
          %v769 = vunpack.c.h.b16 %v584
          %v770 = vunpack.c.l.b16 %v585
          %v771 = vunpack.c.h.b16 %v585
          %v772 = vunpack.c.l.b16 %v586
          %v773 = vunpack.c.h.b16 %v586
          %v774 = vunpack.c.l.b16 %v587
          %v775 = vunpack.c.h.b16 %v587
          %v776 = vunpack.c.l.b16 %v588
          %v777 = vunpack.c.h.b16 %v588
          %v778 = vunpack.c.l.b16 %v589
          %v779 = vunpack.c.h.b16 %v589
          %v780 = vunpack.c.l.b16 %v590
          %v781 = vunpack.c.h.b16 %v590
          %v782 = vunpack.c.l.b16 %v591
          %v783 = vunpack.c.h.b16 %v591
          %v784 = vunpack.c.l.b16 %v592
          %v785 = vunpack.c.h.b16 %v592
          %v786 = vunpack.c.l.b16 %v593
          %v787 = vunpack.c.h.b16 %v593
          %v788 = vunpack.c.l.b16 %v594
          %v789 = vunpack.c.h.b16 %v594
          %v790 = vunpack.c.l.b16 %v595
          %v791 = vunpack.c.h.b16 %v595
          %v792 = vunpack.c.l.b16 %v596
          %v793 = vunpack.c.h.b16 %v596
          %v794 = vunpack.c.l.b16 %v597
          %v795 = vunpack.c.h.b16 %v597
          %v796 = vunpack.c.l.b16 %v598
          %v797 = vunpack.c.h.b16 %v598
          %v798 = vpack.c.b16 %v736, %v734
          %v799 = vpack.c.b16 %v737, %v735
          %v800 = vpack.c.b16 %v740, %v738
          %v801 = vpack.c.b16 %v741, %v739
          %v802 = vpack.c.b16 %v744, %v742
          %v803 = vpack.c.b16 %v745, %v743
          %v804 = vpack.c.b16 %v748, %v746
          %v805 = vpack.c.b16 %v749, %v747
          %v806 = vpack.c.b16 %v752, %v750
          %v807 = vpack.c.b16 %v753, %v751
          %v808 = vpack.c.b16 %v756, %v754
          %v809 = vpack.c.b16 %v757, %v755
          %v810 = vpack.c.b16 %v760, %v758
          %v811 = vpack.c.b16 %v761, %v759
          %v812 = vpack.c.b16 %v764, %v762
          %v813 = vpack.c.b16 %v765, %v763
          %v814 = vpack.c.b16 %v768, %v766
          %v815 = vpack.c.b16 %v769, %v767
          %v816 = vpack.c.b16 %v772, %v770
          %v817 = vpack.c.b16 %v773, %v771
          %v818 = vpack.c.b16 %v776, %v774
          %v819 = vpack.c.b16 %v777, %v775
          %v820 = vpack.c.b16 %v780, %v778
          %v821 = vpack.c.b16 %v781, %v779
          %v822 = vpack.c.b16 %v784, %v782
          %v823 = vpack.c.b16 %v785, %v783
          %v824 = vpack.c.b16 %v788, %v786
          %v825 = vpack.c.b16 %v789, %v787
          %v826 = vpack.c.b16 %v792, %v790
          %v827 = vpack.c.b16 %v793, %v791
          %v828 = vpack.c.b16 %v796, %v794
          %v829 = vpack.c.b16 %v797, %v795
          %v894 = vunpack.c.l.b16 %v599
          %v895 = vunpack.c.l.b16 %v600
          %v896 = vunpack.c.l.b16 %v601
          %v897 = vunpack.c.l.b16 %v602
          %v898 = vunpack.c.l.b16 %v603
          %v899 = vunpack.c.l.b16 %v604
          %v900 = vunpack.c.l.b16 %v605
          %v901 = vunpack.c.l.b16 %v606
          %v902 = vunpack.c.l.b16 %v607
          %v903 = vunpack.c.l.b16 %v608
          %v904 = vunpack.c.l.b16 %v609
          %v905 = vunpack.c.l.b16 %v610
          %v906 = vunpack.c.l.b16 %v611
          %v907 = vunpack.c.l.b16 %v612
          %v908 = vunpack.c.l.b16 %v613
          %v909 = vunpack.c.l.b16 %v614
          %v910 = vunpack.c.l.b16 %v615
          %v911 = vunpack.c.l.b16 %v616
          %v912 = vunpack.c.l.b16 %v617
          %v913 = vunpack.c.l.b16 %v618
          %v914 = vunpack.c.l.b16 %v619
          %v915 = vunpack.c.l.b16 %v620
          %v916 = vunpack.c.l.b16 %v621
          %v917 = vunpack.c.l.b16 %v622
          %v918 = vunpack.c.l.b16 %v623
          %v919 = vunpack.c.l.b16 %v624
          %v920 = vunpack.c.l.b16 %v625
          %v921 = vunpack.c.l.b16 %v626
          %v922 = vunpack.c.l.b16 %v627
          %v923 = vunpack.c.l.b16 %v628
          %v924 = vunpack.c.l.b16 %v629
          %v925 = vunpack.c.l.b16 %v630
          %v926 = vpack.c.b16 %v895, %v894
          %v927 = vpack.c.b16 %v897, %v896
          %v928 = vpack.c.b16 %v899, %v898
          %v929 = vpack.c.b16 %v901, %v900
          %v930 = vpack.c.b16 %v903, %v902
          %v931 = vpack.c.b16 %v905, %v904
          %v932 = vpack.c.b16 %v907, %v906
          %v933 = vpack.c.b16 %v909, %v908
          %v934 = vpack.c.b16 %v911, %v910
          %v935 = vpack.c.b16 %v913, %v912
          %v936 = vpack.c.b16 %v915, %v914
          %v937 = vpack.c.b16 %v917, %v916
          %v938 = vpack.c.b16 %v919, %v918
          %v939 = vpack.c.b16 %v921, %v920
          %v940 = vpack.c.b16 %v923, %v922
          %v941 = vpack.c.b16 %v925, %v924
          %958 = vmatprep.subr.bf16.mxu0 0
          %959 = vmatpush1.bf16.msra.mxu0 %v933
          %960 = vmatprep.subr.bf16.mxu0 0
          %961 = vmatpush1.bf16.msra.mxu0 %v932
          %962 = vmatprep.subr.bf16.mxu0 0
          %963 = vmatpush1.bf16.msra.mxu0 %v931
          %964 = vmatprep.subr.bf16.mxu0 0
          %965 = vmatpush1.bf16.msra.mxu0 %v930
          %966 = vmatprep.subr.bf16.mxu0 0
          %967 = vmatpush1.bf16.msra.mxu0 %v929
          %968 = vmatprep.subr.bf16.mxu0 0
          %969 = vmatpush1.bf16.msra.mxu0 %v928
          %970 = vmatprep.subr.bf16.mxu0 0
          %971 = vmatpush1.bf16.msra.mxu0 %v927
          %972 = vmatprep.subr.bf16.mxu0 0
          %973 = vmatpush1.bf16.msra.mxu0 %v926
          %974 = vmatprep.subr.bf16.mxu0 0
          %975 = vmatpush2.bf16.msra.mxu0 %v941
          %976 = vmatprep.subr.bf16.mxu0 0
          %977 = vmatpush2.bf16.msra.mxu0 %v940
          %978 = vmatprep.subr.bf16.mxu0 0
          %979 = vmatpush2.bf16.msra.mxu0 %v939
          %980 = vmatprep.subr.bf16.mxu0 0
          %981 = vmatpush2.bf16.msra.mxu0 %v938
          %982 = vmatprep.subr.bf16.mxu0 0
          %983 = vmatpush2.bf16.msra.mxu0 %v937
          %984 = vmatprep.subr.bf16.mxu0 0
          %985 = vmatpush2.bf16.msra.mxu0 %v936
          %986 = vmatprep.subr.bf16.mxu0 0
          %987 = vmatpush2.bf16.msra.mxu0 %v935
          %988 = vmatprep.subr.bf16.mxu0 0
          %989 = vmatpush2.bf16.msra.mxu0 %v934
          %990 = vmatprep.mubr.bf16.mxu0 %v799
          %991 = vmatmul.mubr.bf16.gmra.mxu0 %v798
          %v992 = vpop.f32.mrf.mxu0
          %v993 = vadd.f32 %v700, %v992
          %v994 = vpop.f32.mrf.mxu0
          %v995 = vpop.f32.mrf.mxu0
          %v996 = vadd.f32 %v700, %v995
          %v997 = vpop.f32.mrf.mxu0
          %998 = vmatprep.mubr.bf16.mxu0 %v801
          %999 = vmatmul.mubr.bf16.gmra.mxu0 %v800
          %v1000 = vpop.f32.mrf.mxu0
          %v1001 = vadd.f32 %v700, %v1000
          %v1002 = vpop.f32.mrf.mxu0
          %v1003 = vpop.f32.mrf.mxu0
          %v1004 = vadd.f32 %v700, %v1003
          %v1005 = vpop.f32.mrf.mxu0
          %1006 = vmatprep.mubr.bf16.mxu0 %v803
          %1007 = vmatmul.mubr.bf16.gmra.mxu0 %v802
          %v1008 = vpop.f32.mrf.mxu0
          %v1009 = vadd.f32 %v700, %v1008
          %v1010 = vpop.f32.mrf.mxu0
          %v1011 = vpop.f32.mrf.mxu0
          %v1012 = vadd.f32 %v700, %v1011
          %v1013 = vpop.f32.mrf.mxu0
          %1014 = vmatprep.mubr.bf16.mxu0 %v805
          %1015 = vmatmul.mubr.bf16.gmra.mxu0 %v804
          %v1016 = vpop.f32.mrf.mxu0
          %v1017 = vadd.f32 %v700, %v1016
          %v1018 = vpop.f32.mrf.mxu0
          %v1019 = vpop.f32.mrf.mxu0
          %v1020 = vadd.f32 %v700, %v1019
          %v1021 = vpop.f32.mrf.mxu0
          %1022 = vmatprep.mubr.bf16.mxu0 %v807
          %1023 = vmatmul.mubr.bf16.gmra.mxu0 %v806
          %v1024 = vpop.f32.mrf.mxu0
          %v1025 = vadd.f32 %v700, %v1024
          %v1026 = vpop.f32.mrf.mxu0
          %v1027 = vpop.f32.mrf.mxu0
          %v1028 = vadd.f32 %v700, %v1027
          %v1029 = vpop.f32.mrf.mxu0
          %1030 = vmatprep.mubr.bf16.mxu0 %v809
          %1031 = vmatmul.mubr.bf16.gmra.mxu0 %v808
          %v1032 = vpop.f32.mrf.mxu0
          %v1033 = vadd.f32 %v700, %v1032
          %v1034 = vpop.f32.mrf.mxu0
          %v1035 = vpop.f32.mrf.mxu0
          %v1036 = vadd.f32 %v700, %v1035
          %v1037 = vpop.f32.mrf.mxu0
          %1038 = vmatprep.mubr.bf16.mxu0 %v811
          %1039 = vmatmul.mubr.bf16.gmra.mxu0 %v810
          %v1040 = vpop.f32.mrf.mxu0
          %v1041 = vadd.f32 %v700, %v1040
          %v1042 = vpop.f32.mrf.mxu0
          %v1043 = vpop.f32.mrf.mxu0
          %v1044 = vadd.f32 %v700, %v1043
          %v1045 = vpop.f32.mrf.mxu0
          %1046 = vmatprep.mubr.bf16.mxu0 %v813
          %1047 = vmatmul.mubr.bf16.gmra.mxu0 %v812
          %v1048 = vpop.f32.mrf.mxu0
          %v1049 = vadd.f32 %v700, %v1048
          %v1050 = vpop.f32.mrf.mxu0
          %v1051 = vpop.f32.mrf.mxu0
          %v1052 = vadd.f32 %v700, %v1051
          %v1053 = vpop.f32.mrf.mxu0
          %1054 = vmatprep.mubr.bf16.mxu0 %v815
          %1055 = vmatmul.mubr.bf16.gmra.mxu0 %v814
          %v1056 = vpop.f32.mrf.mxu0
          %v1057 = vadd.f32 %v700, %v1056
          %v1058 = vpop.f32.mrf.mxu0
          %v1059 = vpop.f32.mrf.mxu0
          %v1060 = vadd.f32 %v700, %v1059
          %v1061 = vpop.f32.mrf.mxu0
          %1062 = vmatprep.mubr.bf16.mxu0 %v817
          %1063 = vmatmul.mubr.bf16.gmra.mxu0 %v816
          %v1064 = vpop.f32.mrf.mxu0
          %v1065 = vadd.f32 %v700, %v1064
          %v1066 = vpop.f32.mrf.mxu0
          %v1067 = vpop.f32.mrf.mxu0
          %v1068 = vadd.f32 %v700, %v1067
          %v1069 = vpop.f32.mrf.mxu0
          %1070 = vmatprep.mubr.bf16.mxu0 %v819
          %1071 = vmatmul.mubr.bf16.gmra.mxu0 %v818
          %v1072 = vpop.f32.mrf.mxu0
          %v1073 = vadd.f32 %v700, %v1072
          %v1074 = vpop.f32.mrf.mxu0
          %v1075 = vpop.f32.mrf.mxu0
          %v1076 = vadd.f32 %v700, %v1075
          %v1077 = vpop.f32.mrf.mxu0
          %1078 = vmatprep.mubr.bf16.mxu0 %v821
          %1079 = vmatmul.mubr.bf16.gmra.mxu0 %v820
          %v1080 = vpop.f32.mrf.mxu0
          %v1081 = vadd.f32 %v700, %v1080
          %v1082 = vpop.f32.mrf.mxu0
          %v1083 = vpop.f32.mrf.mxu0
          %v1084 = vadd.f32 %v700, %v1083
          %v1085 = vpop.f32.mrf.mxu0
          %1086 = vmatprep.mubr.bf16.mxu0 %v823
          %1087 = vmatmul.mubr.bf16.gmra.mxu0 %v822
          %v1088 = vpop.f32.mrf.mxu0
          %v1089 = vadd.f32 %v700, %v1088
          %v1090 = vpop.f32.mrf.mxu0
          %v1091 = vpop.f32.mrf.mxu0
          %v1092 = vadd.f32 %v700, %v1091
          %v1093 = vpop.f32.mrf.mxu0
          %1094 = vmatprep.mubr.bf16.mxu0 %v825
          %1095 = vmatmul.mubr.bf16.gmra.mxu0 %v824
          %v1096 = vpop.f32.mrf.mxu0
          %v1097 = vadd.f32 %v700, %v1096
          %v1098 = vpop.f32.mrf.mxu0
          %v1099 = vpop.f32.mrf.mxu0
          %v1100 = vadd.f32 %v700, %v1099
          %v1101 = vpop.f32.mrf.mxu0
          %1102 = vmatprep.mubr.bf16.mxu0 %v827
          %1103 = vmatmul.mubr.bf16.gmra.mxu0 %v826
          %v1104 = vpop.f32.mrf.mxu0
          %v1105 = vadd.f32 %v700, %v1104
          %v1106 = vpop.f32.mrf.mxu0
          %v1107 = vpop.f32.mrf.mxu0
          %v1108 = vadd.f32 %v700, %v1107
          %v1109 = vpop.f32.mrf.mxu0
          %1110 = vmatprep.mubr.bf16.mxu0 %v829
          %1111 = vmatmul.mubr.bf16.gmra.mxu0 %v828
          %v1112 = vpop.f32.mrf.mxu0
          %v1113 = vadd.f32 %v700, %v1112
          %v1114 = vpop.f32.mrf.mxu0
          %v1115 = vpop.f32.mrf.mxu0
          %v1116 = vadd.f32 %v700, %v1115
          %v1117 = vpop.f32.mrf.mxu0
          %1118 = vdwg.mxu0
          %v1119 = vmax.f32 %v993, 0.0
          %v1120 = vmax.f32 %v996, 0.0
          %v1121 = vmax.f32 %v1001, 0.0
          %v1122 = vmax.f32 %v1004, 0.0
          %v1123 = vmax.f32 %v1009, 0.0
          %v1124 = vmax.f32 %v1012, 0.0
          %v1125 = vmax.f32 %v1017, 0.0
          %v1126 = vmax.f32 %v1020, 0.0
          %v1127 = vmax.f32 %v1025, 0.0
          %v1128 = vmax.f32 %v1028, 0.0
          %v1129 = vmax.f32 %v1033, 0.0
          %v1130 = vmax.f32 %v1036, 0.0
          %v1131 = vmax.f32 %v1041, 0.0
          %v1132 = vmax.f32 %v1044, 0.0
          %v1133 = vmax.f32 %v1049, 0.0
          %v1134 = vmax.f32 %v1052, 0.0
          %v1135 = vmax.f32 %v1057, 0.0
          %v1136 = vmax.f32 %v1060, 0.0
          %v1137 = vmax.f32 %v1065, 0.0
          %v1138 = vmax.f32 %v1068, 0.0
          %v1139 = vmax.f32 %v1073, 0.0
          %v1140 = vmax.f32 %v1076, 0.0
          %v1141 = vmax.f32 %v1081, 0.0
          %v1142 = vmax.f32 %v1084, 0.0
          %v1143 = vmax.f32 %v1089, 0.0
          %v1144 = vmax.f32 %v1092, 0.0
          %v1145 = vmax.f32 %v1097, 0.0
          %v1146 = vmax.f32 %v1100, 0.0
          %v1147 = vmax.f32 %v1105, 0.0
          %v1148 = vmax.f32 %v1108, 0.0
          %v1149 = vmax.f32 %v1113, 0.0
          %v1150 = vmax.f32 %v1116, 0.0
          %v1151 = vpack.c.bf16 %v1120, %v1119
          %v1152 = vpack.c.bf16 %v1122, %v1121
          %v1153 = vpack.c.bf16 %v1124, %v1123
          %v1154 = vpack.c.bf16 %v1126, %v1125
          %v1155 = vpack.c.bf16 %v1128, %v1127
          %v1156 = vpack.c.bf16 %v1130, %v1129
          %v1157 = vpack.c.bf16 %v1132, %v1131
          %v1158 = vpack.c.bf16 %v1134, %v1133
          %v1159 = vpack.c.bf16 %v1136, %v1135
          %v1160 = vpack.c.bf16 %v1138, %v1137
          %v1161 = vpack.c.bf16 %v1140, %v1139
          %v1162 = vpack.c.bf16 %v1142, %v1141
          %v1163 = vpack.c.bf16 %v1144, %v1143
          %v1164 = vpack.c.bf16 %v1146, %v1145
          %v1165 = vpack.c.bf16 %v1148, %v1147
          %v1166 = vpack.c.bf16 %v1150, %v1149
          %v1167 = vld [vmem:[%s7] sm:$0x1]
          %v1169 = vlaneseq
          %v1170 = vshrl.u32 %v1169, 7
          %v1171 = vsub.s32 0, %v1170
          %v1172 = vrot.slane %v1167, %v1171
          %v1206 = vunpack.c.l.b16 %v631
          %v1207 = vunpack.c.h.b16 %v631
          %v1208 = vunpack.c.l.b16 %v632
          %v1209 = vunpack.c.h.b16 %v632
          %v1210 = vunpack.c.l.b16 %v633
          %v1211 = vunpack.c.h.b16 %v633
          %v1212 = vunpack.c.l.b16 %v634
          %v1213 = vunpack.c.h.b16 %v634
          %v1214 = vunpack.c.l.b16 %v635
          %v1215 = vunpack.c.h.b16 %v635
          %v1216 = vunpack.c.l.b16 %v636
          %v1217 = vunpack.c.h.b16 %v636
          %v1218 = vunpack.c.l.b16 %v637
          %v1219 = vunpack.c.h.b16 %v637
          %v1220 = vunpack.c.l.b16 %v638
          %v1221 = vunpack.c.h.b16 %v638
          %v1222 = vunpack.c.l.b16 %v639
          %v1223 = vunpack.c.h.b16 %v639
          %v1224 = vunpack.c.l.b16 %v640
          %v1225 = vunpack.c.h.b16 %v640
          %v1226 = vunpack.c.l.b16 %v641
          %v1227 = vunpack.c.h.b16 %v641
          %v1228 = vunpack.c.l.b16 %v642
          %v1229 = vunpack.c.h.b16 %v642
          %v1230 = vunpack.c.l.b16 %v643
          %v1231 = vunpack.c.h.b16 %v643
          %v1232 = vunpack.c.l.b16 %v644
          %v1233 = vunpack.c.h.b16 %v644
          %v1234 = vunpack.c.l.b16 %v645
          %v1235 = vunpack.c.h.b16 %v645
          %v1236 = vunpack.c.l.b16 %v646
          %v1237 = vunpack.c.h.b16 %v646
          %v1238 = vunpack.c.l.b16 %v647
          %v1239 = vunpack.c.h.b16 %v647
          %v1240 = vunpack.c.l.b16 %v648
          %v1241 = vunpack.c.h.b16 %v648
          %v1242 = vunpack.c.l.b16 %v649
          %v1243 = vunpack.c.h.b16 %v649
          %v1244 = vunpack.c.l.b16 %v650
          %v1245 = vunpack.c.h.b16 %v650
          %v1246 = vunpack.c.l.b16 %v651
          %v1247 = vunpack.c.h.b16 %v651
          %v1248 = vunpack.c.l.b16 %v652
          %v1249 = vunpack.c.h.b16 %v652
          %v1250 = vunpack.c.l.b16 %v653
          %v1251 = vunpack.c.h.b16 %v653
          %v1252 = vunpack.c.l.b16 %v654
          %v1253 = vunpack.c.h.b16 %v654
          %v1254 = vunpack.c.l.b16 %v655
          %v1255 = vunpack.c.h.b16 %v655
          %v1256 = vunpack.c.l.b16 %v656
          %v1257 = vunpack.c.h.b16 %v656
          %v1258 = vunpack.c.l.b16 %v657
          %v1259 = vunpack.c.h.b16 %v657
          %v1260 = vunpack.c.l.b16 %v658
          %v1261 = vunpack.c.h.b16 %v658
          %v1262 = vunpack.c.l.b16 %v659
          %v1263 = vunpack.c.h.b16 %v659
          %v1264 = vunpack.c.l.b16 %v660
          %v1265 = vunpack.c.h.b16 %v660
          %v1266 = vunpack.c.l.b16 %v661
          %v1267 = vunpack.c.h.b16 %v661
          %v1268 = vunpack.c.l.b16 %v662
          %v1269 = vunpack.c.h.b16 %v662
          %v1270 = vpack.c.b16 %v1208, %v1206
          %v1271 = vpack.c.b16 %v1209, %v1207
          %v1272 = vpack.c.b16 %v1212, %v1210
          %v1273 = vpack.c.b16 %v1213, %v1211
          %v1274 = vpack.c.b16 %v1216, %v1214
          %v1275 = vpack.c.b16 %v1217, %v1215
          %v1276 = vpack.c.b16 %v1220, %v1218
          %v1277 = vpack.c.b16 %v1221, %v1219
          %v1278 = vpack.c.b16 %v1224, %v1222
          %v1279 = vpack.c.b16 %v1225, %v1223
          %v1280 = vpack.c.b16 %v1228, %v1226
          %v1281 = vpack.c.b16 %v1229, %v1227
          %v1282 = vpack.c.b16 %v1232, %v1230
          %v1283 = vpack.c.b16 %v1233, %v1231
          %v1284 = vpack.c.b16 %v1236, %v1234
          %v1285 = vpack.c.b16 %v1237, %v1235
          %v1286 = vpack.c.b16 %v1240, %v1238
          %v1287 = vpack.c.b16 %v1241, %v1239
          %v1288 = vpack.c.b16 %v1244, %v1242
          %v1289 = vpack.c.b16 %v1245, %v1243
          %v1290 = vpack.c.b16 %v1248, %v1246
          %v1291 = vpack.c.b16 %v1249, %v1247
          %v1292 = vpack.c.b16 %v1252, %v1250
          %v1293 = vpack.c.b16 %v1253, %v1251
          %v1294 = vpack.c.b16 %v1256, %v1254
          %v1295 = vpack.c.b16 %v1257, %v1255
          %v1296 = vpack.c.b16 %v1260, %v1258
          %v1297 = vpack.c.b16 %v1261, %v1259
          %v1298 = vpack.c.b16 %v1264, %v1262
          %v1299 = vpack.c.b16 %v1265, %v1263
          %v1300 = vpack.c.b16 %v1268, %v1266
          %v1301 = vpack.c.b16 %v1269, %v1267
          %v1366 = vunpack.c.l.b16 %v663
          %v1367 = vunpack.c.l.b16 %v664
          %v1368 = vunpack.c.l.b16 %v665
          %v1369 = vunpack.c.l.b16 %v666
          %v1370 = vunpack.c.l.b16 %v667
          %v1371 = vunpack.c.l.b16 %v668
          %v1372 = vunpack.c.l.b16 %v669
          %v1373 = vunpack.c.l.b16 %v670
          %v1374 = vunpack.c.l.b16 %v671
          %v1375 = vunpack.c.l.b16 %v672
          %v1376 = vunpack.c.l.b16 %v673
          %v1377 = vunpack.c.l.b16 %v674
          %v1378 = vunpack.c.l.b16 %v675
          %v1379 = vunpack.c.l.b16 %v676
          %v1380 = vunpack.c.l.b16 %v677
          %v1381 = vunpack.c.l.b16 %v678
          %v1382 = vunpack.c.l.b16 %v679
          %v1383 = vunpack.c.l.b16 %v680
          %v1384 = vunpack.c.l.b16 %v681
          %v1385 = vunpack.c.l.b16 %v682
          %v1386 = vunpack.c.l.b16 %v683
          %v1387 = vunpack.c.l.b16 %v684
          %v1388 = vunpack.c.l.b16 %v685
          %v1389 = vunpack.c.l.b16 %v686
          %v1390 = vunpack.c.l.b16 %v687
          %v1391 = vunpack.c.l.b16 %v688
          %v1392 = vunpack.c.l.b16 %v689
          %v1393 = vunpack.c.l.b16 %v690
          %v1394 = vunpack.c.l.b16 %v691
          %v1395 = vunpack.c.l.b16 %v692
          %v1396 = vunpack.c.l.b16 %v693
          %v1397 = vunpack.c.l.b16 %v694
          %v1398 = vpack.c.b16 %v1367, %v1366
          %v1399 = vpack.c.b16 %v1369, %v1368
          %v1400 = vpack.c.b16 %v1371, %v1370
          %v1401 = vpack.c.b16 %v1373, %v1372
          %v1402 = vpack.c.b16 %v1375, %v1374
          %v1403 = vpack.c.b16 %v1377, %v1376
          %v1404 = vpack.c.b16 %v1379, %v1378
          %v1405 = vpack.c.b16 %v1381, %v1380
          %v1406 = vpack.c.b16 %v1383, %v1382
          %v1407 = vpack.c.b16 %v1385, %v1384
          %v1408 = vpack.c.b16 %v1387, %v1386
          %v1409 = vpack.c.b16 %v1389, %v1388
          %v1410 = vpack.c.b16 %v1391, %v1390
          %v1411 = vpack.c.b16 %v1393, %v1392
          %v1412 = vpack.c.b16 %v1395, %v1394
          %v1413 = vpack.c.b16 %v1397, %v1396
          %1430 = vmatprep.subr.bf16.mxu0 0
          %1431 = vmatpush1.bf16.msra.mxu0 %v1405
          %1432 = vmatprep.subr.bf16.mxu0 0
          %1433 = vmatpush1.bf16.msra.mxu0 %v1404
          %1434 = vmatprep.subr.bf16.mxu0 0
          %1435 = vmatpush1.bf16.msra.mxu0 %v1403
          %1436 = vmatprep.subr.bf16.mxu0 0
          %1437 = vmatpush1.bf16.msra.mxu0 %v1402
          %1438 = vmatprep.subr.bf16.mxu0 0
          %1439 = vmatpush1.bf16.msra.mxu0 %v1401
          %1440 = vmatprep.subr.bf16.mxu0 0
          %1441 = vmatpush1.bf16.msra.mxu0 %v1400
          %1442 = vmatprep.subr.bf16.mxu0 0
          %1443 = vmatpush1.bf16.msra.mxu0 %v1399
          %1444 = vmatprep.subr.bf16.mxu0 0
          %1445 = vmatpush1.bf16.msra.mxu0 %v1398
          %1446 = vmatprep.subr.bf16.mxu0 0
          %1447 = vmatpush2.bf16.msra.mxu0 %v1413
          %1448 = vmatprep.subr.bf16.mxu0 0
          %1449 = vmatpush2.bf16.msra.mxu0 %v1412
          %1450 = vmatprep.subr.bf16.mxu0 0
          %1451 = vmatpush2.bf16.msra.mxu0 %v1411
          %1452 = vmatprep.subr.bf16.mxu0 0
          %1453 = vmatpush2.bf16.msra.mxu0 %v1410
          %1454 = vmatprep.subr.bf16.mxu0 0
          %1455 = vmatpush2.bf16.msra.mxu0 %v1409
          %1456 = vmatprep.subr.bf16.mxu0 0
          %1457 = vmatpush2.bf16.msra.mxu0 %v1408
          %1458 = vmatprep.subr.bf16.mxu0 0
          %1459 = vmatpush2.bf16.msra.mxu0 %v1407
          %1460 = vmatprep.subr.bf16.mxu0 0
          %1461 = vmatpush2.bf16.msra.mxu0 %v1406
          %1462 = vmatprep.mubr.bf16.mxu0 %v1271
          %1463 = vmatmul.mubr.bf16.gmra.mxu0 %v1270
          %v1464 = vpop.f32.mrf.mxu0
          %v1465 = vadd.f32 %v1172, %v1464
          %v1466 = vpop.f32.mrf.mxu0
          %v1467 = vpop.f32.mrf.mxu0
          %v1468 = vadd.f32 %v1172, %v1467
          %v1469 = vpop.f32.mrf.mxu0
          %1470 = vmatprep.mubr.bf16.mxu0 %v1273
          %1471 = vmatmul.mubr.bf16.gmra.mxu0 %v1272
          %v1472 = vpop.f32.mrf.mxu0
          %v1473 = vadd.f32 %v1172, %v1472
          %v1474 = vpop.f32.mrf.mxu0
          %v1475 = vpop.f32.mrf.mxu0
          %v1476 = vadd.f32 %v1172, %v1475
          %v1477 = vpop.f32.mrf.mxu0
          %1478 = vmatprep.mubr.bf16.mxu0 %v1275
          %1479 = vmatmul.mubr.bf16.gmra.mxu0 %v1274
          %v1480 = vpop.f32.mrf.mxu0
          %v1481 = vadd.f32 %v1172, %v1480
          %v1482 = vpop.f32.mrf.mxu0
          %v1483 = vpop.f32.mrf.mxu0
          %v1484 = vadd.f32 %v1172, %v1483
          %v1485 = vpop.f32.mrf.mxu0
          %1486 = vmatprep.mubr.bf16.mxu0 %v1277
          %1487 = vmatmul.mubr.bf16.gmra.mxu0 %v1276
          %v1488 = vpop.f32.mrf.mxu0
          %v1489 = vadd.f32 %v1172, %v1488
          %v1490 = vpop.f32.mrf.mxu0
          %v1491 = vpop.f32.mrf.mxu0
          %v1492 = vadd.f32 %v1172, %v1491
          %v1493 = vpop.f32.mrf.mxu0
          %1494 = vmatprep.mubr.bf16.mxu0 %v1279
          %1495 = vmatmul.mubr.bf16.gmra.mxu0 %v1278
          %v1496 = vpop.f32.mrf.mxu0
          %v1497 = vadd.f32 %v1172, %v1496
          %v1498 = vpop.f32.mrf.mxu0
          %v1499 = vpop.f32.mrf.mxu0
          %v1500 = vadd.f32 %v1172, %v1499
          %v1501 = vpop.f32.mrf.mxu0
          %1502 = vmatprep.mubr.bf16.mxu0 %v1281
          %1503 = vmatmul.mubr.bf16.gmra.mxu0 %v1280
          %v1504 = vpop.f32.mrf.mxu0
          %v1505 = vadd.f32 %v1172, %v1504
          %v1506 = vpop.f32.mrf.mxu0
          %v1507 = vpop.f32.mrf.mxu0
          %v1508 = vadd.f32 %v1172, %v1507
          %v1509 = vpop.f32.mrf.mxu0
          %1510 = vmatprep.mubr.bf16.mxu0 %v1283
          %1511 = vmatmul.mubr.bf16.gmra.mxu0 %v1282
          %v1512 = vpop.f32.mrf.mxu0
          %v1513 = vadd.f32 %v1172, %v1512
          %v1514 = vpop.f32.mrf.mxu0
          %v1515 = vpop.f32.mrf.mxu0
          %v1516 = vadd.f32 %v1172, %v1515
          %v1517 = vpop.f32.mrf.mxu0
          %1518 = vmatprep.mubr.bf16.mxu0 %v1285
          %1519 = vmatmul.mubr.bf16.gmra.mxu0 %v1284
          %v1520 = vpop.f32.mrf.mxu0
          %v1521 = vadd.f32 %v1172, %v1520
          %v1522 = vpop.f32.mrf.mxu0
          %v1523 = vpop.f32.mrf.mxu0
          %v1524 = vadd.f32 %v1172, %v1523
          %v1525 = vpop.f32.mrf.mxu0
          %1526 = vmatprep.mubr.bf16.mxu0 %v1287
          %1527 = vmatmul.mubr.bf16.gmra.mxu0 %v1286
          %v1528 = vpop.f32.mrf.mxu0
          %v1529 = vadd.f32 %v1172, %v1528
          %v1530 = vpop.f32.mrf.mxu0
          %v1531 = vpop.f32.mrf.mxu0
          %v1532 = vadd.f32 %v1172, %v1531
          %v1533 = vpop.f32.mrf.mxu0
          %1534 = vmatprep.mubr.bf16.mxu0 %v1289
          %1535 = vmatmul.mubr.bf16.gmra.mxu0 %v1288
          %v1536 = vpop.f32.mrf.mxu0
          %v1537 = vadd.f32 %v1172, %v1536
          %v1538 = vpop.f32.mrf.mxu0
          %v1539 = vpop.f32.mrf.mxu0
          %v1540 = vadd.f32 %v1172, %v1539
          %v1541 = vpop.f32.mrf.mxu0
          %1542 = vmatprep.mubr.bf16.mxu0 %v1291
          %1543 = vmatmul.mubr.bf16.gmra.mxu0 %v1290
          %v1544 = vpop.f32.mrf.mxu0
          %v1545 = vadd.f32 %v1172, %v1544
          %v1546 = vpop.f32.mrf.mxu0
          %v1547 = vpop.f32.mrf.mxu0
          %v1548 = vadd.f32 %v1172, %v1547
          %v1549 = vpop.f32.mrf.mxu0
          %1550 = vmatprep.mubr.bf16.mxu0 %v1293
          %1551 = vmatmul.mubr.bf16.gmra.mxu0 %v1292
          %v1552 = vpop.f32.mrf.mxu0
          %v1553 = vadd.f32 %v1172, %v1552
          %v1554 = vpop.f32.mrf.mxu0
          %v1555 = vpop.f32.mrf.mxu0
          %v1556 = vadd.f32 %v1172, %v1555
          %v1557 = vpop.f32.mrf.mxu0
          %1558 = vmatprep.mubr.bf16.mxu0 %v1295
          %1559 = vmatmul.mubr.bf16.gmra.mxu0 %v1294
          %v1560 = vpop.f32.mrf.mxu0
          %v1561 = vadd.f32 %v1172, %v1560
          %v1562 = vpop.f32.mrf.mxu0
          %v1563 = vpop.f32.mrf.mxu0
          %v1564 = vadd.f32 %v1172, %v1563
          %v1565 = vpop.f32.mrf.mxu0
          %1566 = vmatprep.mubr.bf16.mxu0 %v1297
          %1567 = vmatmul.mubr.bf16.gmra.mxu0 %v1296
          %v1568 = vpop.f32.mrf.mxu0
          %v1569 = vadd.f32 %v1172, %v1568
          %v1570 = vpop.f32.mrf.mxu0
          %v1571 = vpop.f32.mrf.mxu0
          %v1572 = vadd.f32 %v1172, %v1571
          %v1573 = vpop.f32.mrf.mxu0
          %1574 = vmatprep.mubr.bf16.mxu0 %v1299
          %1575 = vmatmul.mubr.bf16.gmra.mxu0 %v1298
          %v1576 = vpop.f32.mrf.mxu0
          %v1577 = vadd.f32 %v1172, %v1576
          %v1578 = vpop.f32.mrf.mxu0
          %v1579 = vpop.f32.mrf.mxu0
          %v1580 = vadd.f32 %v1172, %v1579
          %v1581 = vpop.f32.mrf.mxu0
          %1582 = vmatprep.mubr.bf16.mxu0 %v1301
          %1583 = vmatmul.mubr.bf16.gmra.mxu0 %v1300
          %v1584 = vpop.f32.mrf.mxu0
          %v1585 = vadd.f32 %v1172, %v1584
          %v1586 = vpop.f32.mrf.mxu0
          %v1587 = vpop.f32.mrf.mxu0
          %v1588 = vadd.f32 %v1172, %v1587
          %v1589 = vpop.f32.mrf.mxu0
          %1590 = vdwg.mxu0
          %v1591 = vmax.f32 %v1465, 0.0
          %v1592 = vmax.f32 %v1468, 0.0
          %v1593 = vmax.f32 %v1473, 0.0
          %v1594 = vmax.f32 %v1476, 0.0
          %v1595 = vmax.f32 %v1481, 0.0
          %v1596 = vmax.f32 %v1484, 0.0
          %v1597 = vmax.f32 %v1489, 0.0
          %v1598 = vmax.f32 %v1492, 0.0
          %v1599 = vmax.f32 %v1497, 0.0
          %v1600 = vmax.f32 %v1500, 0.0
          %v1601 = vmax.f32 %v1505, 0.0
          %v1602 = vmax.f32 %v1508, 0.0
          %v1603 = vmax.f32 %v1513, 0.0
          %v1604 = vmax.f32 %v1516, 0.0
          %v1605 = vmax.f32 %v1521, 0.0
          %v1606 = vmax.f32 %v1524, 0.0
          %v1607 = vmax.f32 %v1529, 0.0
          %v1608 = vmax.f32 %v1532, 0.0
          %v1609 = vmax.f32 %v1537, 0.0
          %v1610 = vmax.f32 %v1540, 0.0
          %v1611 = vmax.f32 %v1545, 0.0
          %v1612 = vmax.f32 %v1548, 0.0
          %v1613 = vmax.f32 %v1553, 0.0
          %v1614 = vmax.f32 %v1556, 0.0
          %v1615 = vmax.f32 %v1561, 0.0
          %v1616 = vmax.f32 %v1564, 0.0
          %v1617 = vmax.f32 %v1569, 0.0
          %v1618 = vmax.f32 %v1572, 0.0
          %v1619 = vmax.f32 %v1577, 0.0
          %v1620 = vmax.f32 %v1580, 0.0
          %v1621 = vmax.f32 %v1585, 0.0
          %v1622 = vmax.f32 %v1588, 0.0
          %v1623 = vpack.c.bf16 %v1592, %v1591
          %v1624 = vpack.c.bf16 %v1594, %v1593
          %v1625 = vpack.c.bf16 %v1596, %v1595
          %v1626 = vpack.c.bf16 %v1598, %v1597
          %v1627 = vpack.c.bf16 %v1600, %v1599
          %v1628 = vpack.c.bf16 %v1602, %v1601
          %v1629 = vpack.c.bf16 %v1604, %v1603
          %v1630 = vpack.c.bf16 %v1606, %v1605
          %v1631 = vpack.c.bf16 %v1608, %v1607
          %v1632 = vpack.c.bf16 %v1610, %v1609
          %v1633 = vpack.c.bf16 %v1612, %v1611
          %v1634 = vpack.c.bf16 %v1614, %v1613
          %v1635 = vpack.c.bf16 %v1616, %v1615
          %v1636 = vpack.c.bf16 %v1618, %v1617
          %v1637 = vpack.c.bf16 %v1620, %v1619
          %v1638 = vpack.c.bf16 %v1622, %v1621
          %s1639 = smul.u32 %s35, 256
          %v1640 = vld [vmem:[#allocation12] sm:$0xf]
          %v1641 = vld [vmem:[#allocation12 + $0x4] sm:$0xf]
          %v1642 = vld [vmem:[#allocation12 + $0x8] sm:$0xf]
          %v1643 = vld [vmem:[#allocation12 + $0xc] sm:$0xf]
          %v1644 = vld [vmem:[#allocation12 + $0x10] sm:$0xf]
          %v1645 = vld [vmem:[#allocation12 + $0x14] sm:$0xf]
          %v1646 = vld [vmem:[#allocation12 + $0x18] sm:$0xf]
          %v1647 = vld [vmem:[#allocation12 + $0x1c] sm:$0xf]
          %v1648 = vld [vmem:[#allocation12 + $0x20] sm:$0xf]
          %v1649 = vld [vmem:[#allocation12 + $0x24] sm:$0xf]
          %v1650 = vld [vmem:[#allocation12 + $0x28] sm:$0xf]
          %v1651 = vld [vmem:[#allocation12 + $0x2c] sm:$0xf]
          %v1652 = vld [vmem:[#allocation12 + $0x30] sm:$0xf]
          %v1653 = vld [vmem:[#allocation12 + $0x34] sm:$0xf]
          %v1654 = vld [vmem:[#allocation12 + $0x38] sm:$0xf]
          %v1655 = vld [vmem:[#allocation12 + $0x3c] sm:$0xf]
          %v1672 = vunpack.c.l.b16 %v1640
          %v1673 = vunpack.c.l.b16 %v1641
          %v1674 = vunpack.c.l.b16 %v1642
          %v1675 = vunpack.c.l.b16 %v1643
          %v1676 = vunpack.c.l.b16 %v1644
          %v1677 = vunpack.c.l.b16 %v1645
          %v1678 = vunpack.c.l.b16 %v1646
          %v1679 = vunpack.c.l.b16 %v1647
          %v1680 = vunpack.c.l.b16 %v1648
          %v1681 = vunpack.c.l.b16 %v1649
          %v1682 = vunpack.c.l.b16 %v1650
          %v1683 = vunpack.c.l.b16 %v1651
          %v1684 = vunpack.c.l.b16 %v1652
          %v1685 = vunpack.c.l.b16 %v1653
          %v1686 = vunpack.c.l.b16 %v1654
          %v1687 = vunpack.c.l.b16 %v1655
          %v1688 = vpack.c.b16 %v1673, %v1672
          %v1689 = vpack.c.b16 %v1675, %v1674
          %v1690 = vpack.c.b16 %v1677, %v1676
          %v1691 = vpack.c.b16 %v1679, %v1678
          %v1692 = vpack.c.b16 %v1681, %v1680
          %v1693 = vpack.c.b16 %v1683, %v1682
          %v1694 = vpack.c.b16 %v1685, %v1684
          %v1695 = vpack.c.b16 %v1687, %v1686
          %1704 = vmatprep.subr.bf16.mxu0 0
          %1705 = vmatpush1.bf16.msra.mxu0 %v1695
          %1706 = vmatprep.subr.bf16.mxu0 0
          %1707 = vmatpush1.bf16.msra.mxu0 %v1694
          %1708 = vmatprep.subr.bf16.mxu0 0
          %1709 = vmatpush1.bf16.msra.mxu0 %v1693
          %1710 = vmatprep.subr.bf16.mxu0 0
          %1711 = vmatpush1.bf16.msra.mxu0 %v1692
          %1712 = vmatprep.subr.bf16.mxu0 0
          %1713 = vmatpush1.bf16.msra.mxu0 %v1691
          %1714 = vmatprep.subr.bf16.mxu0 0
          %1715 = vmatpush1.bf16.msra.mxu0 %v1690
          %1716 = vmatprep.subr.bf16.mxu0 0
          %1717 = vmatpush1.bf16.msra.mxu0 %v1689
          %1718 = vmatprep.subr.bf16.mxu0 0
          %1719 = vmatpush1.bf16.msra.mxu0 %v1688
          %1720 = vmatprep.subr.bf16.mxu0 0
          %1721 = vmatpush2.bf16.msra.mxu0 0
          %1722 = vmatprep.subr.bf16.mxu0 0
          %1723 = vmatpush2.bf16.msra.mxu0 0
          %1724 = vmatprep.subr.bf16.mxu0 0
          %1725 = vmatpush2.bf16.msra.mxu0 0
          %1726 = vmatprep.subr.bf16.mxu0 0
          %1727 = vmatpush2.bf16.msra.mxu0 0
          %1728 = vmatprep.subr.bf16.mxu0 0
          %1729 = vmatpush2.bf16.msra.mxu0 0
          %1730 = vmatprep.subr.bf16.mxu0 0
          %1731 = vmatpush2.bf16.msra.mxu0 0
          %1732 = vmatprep.subr.bf16.mxu0 0
          %1733 = vmatpush2.bf16.msra.mxu0 0
          %1734 = vmatprep.subr.bf16.mxu0 0
          %1735 = vmatpush2.bf16.msra.mxu0 0
          %1736 = vmatprep.mubr.bf16.mxu0 0
          %1737 = vmatmul.mubr.bf16.gmra.mxu0 %v1151
          %v1738 = vpop.f32.mrf.mxu0
          %v1739 = vadd.f32 0.0, %v1738
          %v1740 = vpop.f32.mrf.mxu0
          %v1741 = vpop.f32.mrf.mxu0
          %v1742 = vadd.f32 0.0, %v1741
          %v1743 = vpop.f32.mrf.mxu0
          %1744 = vmatprep.mubr.bf16.mxu0 0
          %1745 = vmatmul.mubr.bf16.gmra.mxu0 %v1152
          %v1746 = vpop.f32.mrf.mxu0
          %v1747 = vadd.f32 0.0, %v1746
          %v1748 = vpop.f32.mrf.mxu0
          %v1749 = vpop.f32.mrf.mxu0
          %v1750 = vadd.f32 0.0, %v1749
          %v1751 = vpop.f32.mrf.mxu0
          %1752 = vmatprep.mubr.bf16.mxu0 0
          %1753 = vmatmul.mubr.bf16.gmra.mxu0 %v1153
          %v1754 = vpop.f32.mrf.mxu0
          %v1755 = vadd.f32 0.0, %v1754
          %v1756 = vpop.f32.mrf.mxu0
          %v1757 = vpop.f32.mrf.mxu0
          %v1758 = vadd.f32 0.0, %v1757
          %v1759 = vpop.f32.mrf.mxu0
          %1760 = vmatprep.mubr.bf16.mxu0 0
          %1761 = vmatmul.mubr.bf16.gmra.mxu0 %v1154
          %v1762 = vpop.f32.mrf.mxu0
          %v1763 = vadd.f32 0.0, %v1762
          %v1764 = vpop.f32.mrf.mxu0
          %v1765 = vpop.f32.mrf.mxu0
          %v1766 = vadd.f32 0.0, %v1765
          %v1767 = vpop.f32.mrf.mxu0
          %1768 = vmatprep.mubr.bf16.mxu0 0
          %1769 = vmatmul.mubr.bf16.gmra.mxu0 %v1155
          %v1770 = vpop.f32.mrf.mxu0
          %v1771 = vadd.f32 0.0, %v1770
          %v1772 = vpop.f32.mrf.mxu0
          %v1773 = vpop.f32.mrf.mxu0
          %v1774 = vadd.f32 0.0, %v1773
          %v1775 = vpop.f32.mrf.mxu0
          %1776 = vmatprep.mubr.bf16.mxu0 0
          %1777 = vmatmul.mubr.bf16.gmra.mxu0 %v1156
          %v1778 = vpop.f32.mrf.mxu0
          %v1779 = vadd.f32 0.0, %v1778
          %v1780 = vpop.f32.mrf.mxu0
          %v1781 = vpop.f32.mrf.mxu0
          %v1782 = vadd.f32 0.0, %v1781
          %v1783 = vpop.f32.mrf.mxu0
          %1784 = vmatprep.mubr.bf16.mxu0 0
          %1785 = vmatmul.mubr.bf16.gmra.mxu0 %v1157
          %v1786 = vpop.f32.mrf.mxu0
          %v1787 = vadd.f32 0.0, %v1786
          %v1788 = vpop.f32.mrf.mxu0
          %v1789 = vpop.f32.mrf.mxu0
          %v1790 = vadd.f32 0.0, %v1789
          %v1791 = vpop.f32.mrf.mxu0
          %1792 = vmatprep.mubr.bf16.mxu0 0
          %1793 = vmatmul.mubr.bf16.gmra.mxu0 %v1158
          %v1794 = vpop.f32.mrf.mxu0
          %v1795 = vadd.f32 0.0, %v1794
          %v1796 = vpop.f32.mrf.mxu0
          %v1797 = vpop.f32.mrf.mxu0
          %v1798 = vadd.f32 0.0, %v1797
          %v1799 = vpop.f32.mrf.mxu0
          %1800 = vmatprep.mubr.bf16.mxu0 0
          %1801 = vmatmul.mubr.bf16.gmra.mxu0 %v1159
          %v1802 = vpop.f32.mrf.mxu0
          %v1803 = vadd.f32 0.0, %v1802
          %v1804 = vpop.f32.mrf.mxu0
          %v1805 = vpop.f32.mrf.mxu0
          %v1806 = vadd.f32 0.0, %v1805
          %v1807 = vpop.f32.mrf.mxu0
          %1808 = vmatprep.mubr.bf16.mxu0 0
          %1809 = vmatmul.mubr.bf16.gmra.mxu0 %v1160
          %v1810 = vpop.f32.mrf.mxu0
          %v1811 = vadd.f32 0.0, %v1810
          %v1812 = vpop.f32.mrf.mxu0
          %v1813 = vpop.f32.mrf.mxu0
          %v1814 = vadd.f32 0.0, %v1813
          %v1815 = vpop.f32.mrf.mxu0
          %1816 = vmatprep.mubr.bf16.mxu0 0
          %1817 = vmatmul.mubr.bf16.gmra.mxu0 %v1161
          %v1818 = vpop.f32.mrf.mxu0
          %v1819 = vadd.f32 0.0, %v1818
          %v1820 = vpop.f32.mrf.mxu0
          %v1821 = vpop.f32.mrf.mxu0
          %v1822 = vadd.f32 0.0, %v1821
          %v1823 = vpop.f32.mrf.mxu0
          %1824 = vmatprep.mubr.bf16.mxu0 0
          %1825 = vmatmul.mubr.bf16.gmra.mxu0 %v1162
          %v1826 = vpop.f32.mrf.mxu0
          %v1827 = vadd.f32 0.0, %v1826
          %v1828 = vpop.f32.mrf.mxu0
          %v1829 = vpop.f32.mrf.mxu0
          %v1830 = vadd.f32 0.0, %v1829
          %v1831 = vpop.f32.mrf.mxu0
          %1832 = vmatprep.mubr.bf16.mxu0 0
          %1833 = vmatmul.mubr.bf16.gmra.mxu0 %v1163
          %v1834 = vpop.f32.mrf.mxu0
          %v1835 = vadd.f32 0.0, %v1834
          %v1836 = vpop.f32.mrf.mxu0
          %v1837 = vpop.f32.mrf.mxu0
          %v1838 = vadd.f32 0.0, %v1837
          %v1839 = vpop.f32.mrf.mxu0
          %1840 = vmatprep.mubr.bf16.mxu0 0
          %1841 = vmatmul.mubr.bf16.gmra.mxu0 %v1164
          %v1842 = vpop.f32.mrf.mxu0
          %v1843 = vadd.f32 0.0, %v1842
          %v1844 = vpop.f32.mrf.mxu0
          %v1845 = vpop.f32.mrf.mxu0
          %v1846 = vadd.f32 0.0, %v1845
          %v1847 = vpop.f32.mrf.mxu0
          %1848 = vmatprep.mubr.bf16.mxu0 0
          %1849 = vmatmul.mubr.bf16.gmra.mxu0 %v1165
          %v1850 = vpop.f32.mrf.mxu0
          %v1851 = vadd.f32 0.0, %v1850
          %v1852 = vpop.f32.mrf.mxu0
          %v1853 = vpop.f32.mrf.mxu0
          %v1854 = vadd.f32 0.0, %v1853
          %v1855 = vpop.f32.mrf.mxu0
          %1856 = vmatprep.mubr.bf16.mxu0 0
          %1857 = vmatmul.mubr.bf16.gmra.mxu0 %v1166
          %v1858 = vpop.f32.mrf.mxu0
          %v1859 = vadd.f32 0.0, %v1858
          %v1860 = vpop.f32.mrf.mxu0
          %v1861 = vpop.f32.mrf.mxu0
          %v1862 = vadd.f32 0.0, %v1861
          %v1863 = vpop.f32.mrf.mxu0
          %1864 = vdwg.mxu0
          %v1865 = vpack.c.bf16 %v1742, %v1739
          %v1866 = vpack.c.bf16 %v1750, %v1747
          %v1867 = vpack.c.bf16 %v1758, %v1755
          %v1868 = vpack.c.bf16 %v1766, %v1763
          %v1869 = vpack.c.bf16 %v1774, %v1771
          %v1870 = vpack.c.bf16 %v1782, %v1779
          %v1871 = vpack.c.bf16 %v1790, %v1787
          %v1872 = vpack.c.bf16 %v1798, %v1795
          %v1873 = vpack.c.bf16 %v1806, %v1803
          %v1874 = vpack.c.bf16 %v1814, %v1811
          %v1875 = vpack.c.bf16 %v1822, %v1819
          %v1876 = vpack.c.bf16 %v1830, %v1827
          %v1877 = vpack.c.bf16 %v1838, %v1835
          %v1878 = vpack.c.bf16 %v1846, %v1843
          %v1879 = vpack.c.bf16 %v1854, %v1851
          %v1880 = vpack.c.bf16 %v1862, %v1859
          %v1897 = vunpack.c.l.b16 %v1865
          %v1898 = vunpack.c.h.b16 %v1865
          %v1899 = vunpack.c.l.b16 %v1866
          %v1900 = vunpack.c.h.b16 %v1866
          %v1901 = vunpack.c.l.b16 %v1867
          %v1902 = vunpack.c.h.b16 %v1867
          %v1903 = vunpack.c.l.b16 %v1868
          %v1904 = vunpack.c.h.b16 %v1868
          %v1905 = vunpack.c.l.b16 %v1869
          %v1906 = vunpack.c.h.b16 %v1869
          %v1907 = vunpack.c.l.b16 %v1870
          %v1908 = vunpack.c.h.b16 %v1870
          %v1909 = vunpack.c.l.b16 %v1871
          %v1910 = vunpack.c.h.b16 %v1871
          %v1911 = vunpack.c.l.b16 %v1872
          %v1912 = vunpack.c.h.b16 %v1872
          %v1913 = vunpack.c.l.b16 %v1873
          %v1914 = vunpack.c.h.b16 %v1873
          %v1915 = vunpack.c.l.b16 %v1874
          %v1916 = vunpack.c.h.b16 %v1874
          %v1917 = vunpack.c.l.b16 %v1875
          %v1918 = vunpack.c.h.b16 %v1875
          %v1919 = vunpack.c.l.b16 %v1876
          %v1920 = vunpack.c.h.b16 %v1876
          %v1921 = vunpack.c.l.b16 %v1877
          %v1922 = vunpack.c.h.b16 %v1877
          %v1923 = vunpack.c.l.b16 %v1878
          %v1924 = vunpack.c.h.b16 %v1878
          %v1925 = vunpack.c.l.b16 %v1879
          %v1926 = vunpack.c.h.b16 %v1879
          %v1927 = vunpack.c.l.b16 %v1880
          %v1928 = vunpack.c.h.b16 %v1880
          %v1929 = vpack.c.b16 %v1897, %v1897
          %v1930 = vpack.c.b16 %v1898, %v1898
          %v1931 = vpack.c.b16 %v1899, %v1899
          %v1932 = vpack.c.b16 %v1900, %v1900
          %v1933 = vpack.c.b16 %v1901, %v1901
          %v1934 = vpack.c.b16 %v1902, %v1902
          %v1935 = vpack.c.b16 %v1903, %v1903
          %v1936 = vpack.c.b16 %v1904, %v1904
          %v1937 = vpack.c.b16 %v1905, %v1905
          %v1938 = vpack.c.b16 %v1906, %v1906
          %v1939 = vpack.c.b16 %v1907, %v1907
          %v1940 = vpack.c.b16 %v1908, %v1908
          %v1941 = vpack.c.b16 %v1909, %v1909
          %v1942 = vpack.c.b16 %v1910, %v1910
          %v1943 = vpack.c.b16 %v1911, %v1911
          %v1944 = vpack.c.b16 %v1912, %v1912
          %v1945 = vpack.c.b16 %v1913, %v1913
          %v1946 = vpack.c.b16 %v1914, %v1914
          %v1947 = vpack.c.b16 %v1915, %v1915
          %v1948 = vpack.c.b16 %v1916, %v1916
          %v1949 = vpack.c.b16 %v1917, %v1917
          %v1950 = vpack.c.b16 %v1918, %v1918
          %v1951 = vpack.c.b16 %v1919, %v1919
          %v1952 = vpack.c.b16 %v1920, %v1920
          %v1953 = vpack.c.b16 %v1921, %v1921
          %v1954 = vpack.c.b16 %v1922, %v1922
          %v1955 = vpack.c.b16 %v1923, %v1923
          %v1956 = vpack.c.b16 %v1924, %v1924
          %v1957 = vpack.c.b16 %v1925, %v1925
          %v1958 = vpack.c.b16 %v1926, %v1926
          %v1959 = vpack.c.b16 %v1927, %v1927
          %v1960 = vpack.c.b16 %v1928, %v1928
          %s1993 = sshra.s32 %s1639, 3
          %s1994 = sand.u32 %s1639, 7
          %s1995 = smul.addr %s1993, 4
          %s1996 = scalar_lea.vmem [#allocation2], %s1995
          %1997 = vst [vmem:[%s1996] sm:$0xf] %v1929
          %1998 = vst [vmem:[%s1996 + $0x4] sm:$0xf] %v1930
          %1999 = vst [vmem:[%s1996 + $0x8] sm:$0xf] %v1931
          %2000 = vst [vmem:[%s1996 + $0xc] sm:$0xf] %v1932
          %2001 = vst [vmem:[%s1996 + $0x10] sm:$0xf] %v1933
          %2002 = vst [vmem:[%s1996 + $0x14] sm:$0xf] %v1934
          %2003 = vst [vmem:[%s1996 + $0x18] sm:$0xf] %v1935
          %2004 = vst [vmem:[%s1996 + $0x1c] sm:$0xf] %v1936
          %2005 = vst [vmem:[%s1996 + $0x20] sm:$0xf] %v1937
          %2006 = vst [vmem:[%s1996 + $0x24] sm:$0xf] %v1938
          %2007 = vst [vmem:[%s1996 + $0x28] sm:$0xf] %v1939
          %2008 = vst [vmem:[%s1996 + $0x2c] sm:$0xf] %v1940
          %2009 = vst [vmem:[%s1996 + $0x30] sm:$0xf] %v1941
          %2010 = vst [vmem:[%s1996 + $0x34] sm:$0xf] %v1942
          %2011 = vst [vmem:[%s1996 + $0x38] sm:$0xf] %v1943
          %2012 = vst [vmem:[%s1996 + $0x3c] sm:$0xf] %v1944
          %2013 = vst [vmem:[%s1996 + $0x40] sm:$0xf] %v1945
          %2014 = vst [vmem:[%s1996 + $0x44] sm:$0xf] %v1946
          %2015 = vst [vmem:[%s1996 + $0x48] sm:$0xf] %v1947
          %2016 = vst [vmem:[%s1996 + $0x4c] sm:$0xf] %v1948
          %2017 = vst [vmem:[%s1996 + $0x50] sm:$0xf] %v1949
          %2018 = vst [vmem:[%s1996 + $0x54] sm:$0xf] %v1950
          %2019 = vst [vmem:[%s1996 + $0x58] sm:$0xf] %v1951
          %2020 = vst [vmem:[%s1996 + $0x5c] sm:$0xf] %v1952
          %2021 = vst [vmem:[%s1996 + $0x60] sm:$0xf] %v1953
          %2022 = vst [vmem:[%s1996 + $0x64] sm:$0xf] %v1954
          %2023 = vst [vmem:[%s1996 + $0x68] sm:$0xf] %v1955
          %2024 = vst [vmem:[%s1996 + $0x6c] sm:$0xf] %v1956
          %2025 = vst [vmem:[%s1996 + $0x70] sm:$0xf] %v1957
          %2026 = vst [vmem:[%s1996 + $0x74] sm:$0xf] %v1958
          %2027 = vst [vmem:[%s1996 + $0x78] sm:$0xf] %v1959
          %2028 = vst [vmem:[%s1996 + $0x7c] sm:$0xf] %v1960
          %v2029 = vld [vmem:[#allocation13] sm:$0xf]
          %v2030 = vld [vmem:[#allocation13 + $0x4] sm:$0xf]
          %v2031 = vld [vmem:[#allocation13 + $0x8] sm:$0xf]
          %v2032 = vld [vmem:[#allocation13 + $0xc] sm:$0xf]
          %v2033 = vld [vmem:[#allocation13 + $0x10] sm:$0xf]
          %v2034 = vld [vmem:[#allocation13 + $0x14] sm:$0xf]
          %v2035 = vld [vmem:[#allocation13 + $0x18] sm:$0xf]
          %v2036 = vld [vmem:[#allocation13 + $0x1c] sm:$0xf]
          %v2037 = vld [vmem:[#allocation13 + $0x20] sm:$0xf]
          %v2038 = vld [vmem:[#allocation13 + $0x24] sm:$0xf]
          %v2039 = vld [vmem:[#allocation13 + $0x28] sm:$0xf]
          %v2040 = vld [vmem:[#allocation13 + $0x2c] sm:$0xf]
          %v2041 = vld [vmem:[#allocation13 + $0x30] sm:$0xf]
          %v2042 = vld [vmem:[#allocation13 + $0x34] sm:$0xf]
          %v2043 = vld [vmem:[#allocation13 + $0x38] sm:$0xf]
          %v2044 = vld [vmem:[#allocation13 + $0x3c] sm:$0xf]
          %v2061 = vunpack.c.l.b16 %v2029
          %v2062 = vunpack.c.l.b16 %v2030
          %v2063 = vunpack.c.l.b16 %v2031
          %v2064 = vunpack.c.l.b16 %v2032
          %v2065 = vunpack.c.l.b16 %v2033
          %v2066 = vunpack.c.l.b16 %v2034
          %v2067 = vunpack.c.l.b16 %v2035
          %v2068 = vunpack.c.l.b16 %v2036
          %v2069 = vunpack.c.l.b16 %v2037
          %v2070 = vunpack.c.l.b16 %v2038
          %v2071 = vunpack.c.l.b16 %v2039
          %v2072 = vunpack.c.l.b16 %v2040
          %v2073 = vunpack.c.l.b16 %v2041
          %v2074 = vunpack.c.l.b16 %v2042
          %v2075 = vunpack.c.l.b16 %v2043
          %v2076 = vunpack.c.l.b16 %v2044
          %v2077 = vpack.c.b16 %v2062, %v2061
          %v2078 = vpack.c.b16 %v2064, %v2063
          %v2079 = vpack.c.b16 %v2066, %v2065
          %v2080 = vpack.c.b16 %v2068, %v2067
          %v2081 = vpack.c.b16 %v2070, %v2069
          %v2082 = vpack.c.b16 %v2072, %v2071
          %v2083 = vpack.c.b16 %v2074, %v2073
          %v2084 = vpack.c.b16 %v2076, %v2075
          %2093 = vmatprep.subr.bf16.mxu0 0
          %2094 = vmatpush1.bf16.msra.mxu0 %v2084
          %2095 = vmatprep.subr.bf16.mxu0 0
          %2096 = vmatpush1.bf16.msra.mxu0 %v2083
          %2097 = vmatprep.subr.bf16.mxu0 0
          %2098 = vmatpush1.bf16.msra.mxu0 %v2082
          %2099 = vmatprep.subr.bf16.mxu0 0
          %2100 = vmatpush1.bf16.msra.mxu0 %v2081
          %2101 = vmatprep.subr.bf16.mxu0 0
          %2102 = vmatpush1.bf16.msra.mxu0 %v2080
          %2103 = vmatprep.subr.bf16.mxu0 0
          %2104 = vmatpush1.bf16.msra.mxu0 %v2079
          %2105 = vmatprep.subr.bf16.mxu0 0
          %2106 = vmatpush1.bf16.msra.mxu0 %v2078
          %2107 = vmatprep.subr.bf16.mxu0 0
          %2108 = vmatpush1.bf16.msra.mxu0 %v2077
          %2109 = vmatprep.subr.bf16.mxu0 0
          %2110 = vmatpush2.bf16.msra.mxu0 0
          %2111 = vmatprep.subr.bf16.mxu0 0
          %2112 = vmatpush2.bf16.msra.mxu0 0
          %2113 = vmatprep.subr.bf16.mxu0 0
          %2114 = vmatpush2.bf16.msra.mxu0 0
          %2115 = vmatprep.subr.bf16.mxu0 0
          %2116 = vmatpush2.bf16.msra.mxu0 0
          %2117 = vmatprep.subr.bf16.mxu0 0
          %2118 = vmatpush2.bf16.msra.mxu0 0
          %2119 = vmatprep.subr.bf16.mxu0 0
          %2120 = vmatpush2.bf16.msra.mxu0 0
          %2121 = vmatprep.subr.bf16.mxu0 0
          %2122 = vmatpush2.bf16.msra.mxu0 0
          %2123 = vmatprep.subr.bf16.mxu0 0
          %2124 = vmatpush2.bf16.msra.mxu0 0
          %2125 = vmatprep.mubr.bf16.mxu0 0
          %2126 = vmatmul.mubr.bf16.gmra.mxu0 %v1623
          %v2127 = vpop.f32.mrf.mxu0
          %v2128 = vadd.f32 0.0, %v2127
          %v2129 = vpop.f32.mrf.mxu0
          %v2130 = vpop.f32.mrf.mxu0
          %v2131 = vadd.f32 0.0, %v2130
          %v2132 = vpop.f32.mrf.mxu0
          %2133 = vmatprep.mubr.bf16.mxu0 0
          %2134 = vmatmul.mubr.bf16.gmra.mxu0 %v1624
          %v2135 = vpop.f32.mrf.mxu0
          %v2136 = vadd.f32 0.0, %v2135
          %v2137 = vpop.f32.mrf.mxu0
          %v2138 = vpop.f32.mrf.mxu0
          %v2139 = vadd.f32 0.0, %v2138
          %v2140 = vpop.f32.mrf.mxu0
          %2141 = vmatprep.mubr.bf16.mxu0 0
          %2142 = vmatmul.mubr.bf16.gmra.mxu0 %v1625
          %v2143 = vpop.f32.mrf.mxu0
          %v2144 = vadd.f32 0.0, %v2143
          %v2145 = vpop.f32.mrf.mxu0
          %v2146 = vpop.f32.mrf.mxu0
          %v2147 = vadd.f32 0.0, %v2146
          %v2148 = vpop.f32.mrf.mxu0
          %2149 = vmatprep.mubr.bf16.mxu0 0
          %2150 = vmatmul.mubr.bf16.gmra.mxu0 %v1626
          %v2151 = vpop.f32.mrf.mxu0
          %v2152 = vadd.f32 0.0, %v2151
          %v2153 = vpop.f32.mrf.mxu0
          %v2154 = vpop.f32.mrf.mxu0
          %v2155 = vadd.f32 0.0, %v2154
          %v2156 = vpop.f32.mrf.mxu0
          %2157 = vmatprep.mubr.bf16.mxu0 0
          %2158 = vmatmul.mubr.bf16.gmra.mxu0 %v1627
          %v2159 = vpop.f32.mrf.mxu0
          %v2160 = vadd.f32 0.0, %v2159
          %v2161 = vpop.f32.mrf.mxu0
          %v2162 = vpop.f32.mrf.mxu0
          %v2163 = vadd.f32 0.0, %v2162
          %v2164 = vpop.f32.mrf.mxu0
          %2165 = vmatprep.mubr.bf16.mxu0 0
          %2166 = vmatmul.mubr.bf16.gmra.mxu0 %v1628
          %v2167 = vpop.f32.mrf.mxu0
          %v2168 = vadd.f32 0.0, %v2167
          %v2169 = vpop.f32.mrf.mxu0
          %v2170 = vpop.f32.mrf.mxu0
          %v2171 = vadd.f32 0.0, %v2170
          %v2172 = vpop.f32.mrf.mxu0
          %2173 = vmatprep.mubr.bf16.mxu0 0
          %2174 = vmatmul.mubr.bf16.gmra.mxu0 %v1629
          %v2175 = vpop.f32.mrf.mxu0
          %v2176 = vadd.f32 0.0, %v2175
          %v2177 = vpop.f32.mrf.mxu0
          %v2178 = vpop.f32.mrf.mxu0
          %v2179 = vadd.f32 0.0, %v2178
          %v2180 = vpop.f32.mrf.mxu0
          %2181 = vmatprep.mubr.bf16.mxu0 0
          %2182 = vmatmul.mubr.bf16.gmra.mxu0 %v1630
          %v2183 = vpop.f32.mrf.mxu0
          %v2184 = vadd.f32 0.0, %v2183
          %v2185 = vpop.f32.mrf.mxu0
          %v2186 = vpop.f32.mrf.mxu0
          %v2187 = vadd.f32 0.0, %v2186
          %v2188 = vpop.f32.mrf.mxu0
          %2189 = vmatprep.mubr.bf16.mxu0 0
          %2190 = vmatmul.mubr.bf16.gmra.mxu0 %v1631
          %v2191 = vpop.f32.mrf.mxu0
          %v2192 = vadd.f32 0.0, %v2191
          %v2193 = vpop.f32.mrf.mxu0
          %v2194 = vpop.f32.mrf.mxu0
          %v2195 = vadd.f32 0.0, %v2194
          %v2196 = vpop.f32.mrf.mxu0
          %2197 = vmatprep.mubr.bf16.mxu0 0
          %2198 = vmatmul.mubr.bf16.gmra.mxu0 %v1632
          %v2199 = vpop.f32.mrf.mxu0
          %v2200 = vadd.f32 0.0, %v2199
          %v2201 = vpop.f32.mrf.mxu0
          %v2202 = vpop.f32.mrf.mxu0
          %v2203 = vadd.f32 0.0, %v2202
          %v2204 = vpop.f32.mrf.mxu0
          %2205 = vmatprep.mubr.bf16.mxu0 0
          %2206 = vmatmul.mubr.bf16.gmra.mxu0 %v1633
          %v2207 = vpop.f32.mrf.mxu0
          %v2208 = vadd.f32 0.0, %v2207
          %v2209 = vpop.f32.mrf.mxu0
          %v2210 = vpop.f32.mrf.mxu0
          %v2211 = vadd.f32 0.0, %v2210
          %v2212 = vpop.f32.mrf.mxu0
          %2213 = vmatprep.mubr.bf16.mxu0 0
          %2214 = vmatmul.mubr.bf16.gmra.mxu0 %v1634
          %v2215 = vpop.f32.mrf.mxu0
          %v2216 = vadd.f32 0.0, %v2215
          %v2217 = vpop.f32.mrf.mxu0
          %v2218 = vpop.f32.mrf.mxu0
          %v2219 = vadd.f32 0.0, %v2218
          %v2220 = vpop.f32.mrf.mxu0
          %2221 = vmatprep.mubr.bf16.mxu0 0
          %2222 = vmatmul.mubr.bf16.gmra.mxu0 %v1635
          %v2223 = vpop.f32.mrf.mxu0
          %v2224 = vadd.f32 0.0, %v2223
          %v2225 = vpop.f32.mrf.mxu0
          %v2226 = vpop.f32.mrf.mxu0
          %v2227 = vadd.f32 0.0, %v2226
          %v2228 = vpop.f32.mrf.mxu0
          %2229 = vmatprep.mubr.bf16.mxu0 0
          %2230 = vmatmul.mubr.bf16.gmra.mxu0 %v1636
          %v2231 = vpop.f32.mrf.mxu0
          %v2232 = vadd.f32 0.0, %v2231
          %v2233 = vpop.f32.mrf.mxu0
          %v2234 = vpop.f32.mrf.mxu0
          %v2235 = vadd.f32 0.0, %v2234
          %v2236 = vpop.f32.mrf.mxu0
          %2237 = vmatprep.mubr.bf16.mxu0 0
          %2238 = vmatmul.mubr.bf16.gmra.mxu0 %v1637
          %v2239 = vpop.f32.mrf.mxu0
          %v2240 = vadd.f32 0.0, %v2239
          %v2241 = vpop.f32.mrf.mxu0
          %v2242 = vpop.f32.mrf.mxu0
          %v2243 = vadd.f32 0.0, %v2242
          %v2244 = vpop.f32.mrf.mxu0
          %2245 = vmatprep.mubr.bf16.mxu0 0
          %2246 = vmatmul.mubr.bf16.gmra.mxu0 %v1638
          %v2247 = vpop.f32.mrf.mxu0
          %v2248 = vadd.f32 0.0, %v2247
          %v2249 = vpop.f32.mrf.mxu0
          %v2250 = vpop.f32.mrf.mxu0
          %v2251 = vadd.f32 0.0, %v2250
          %v2252 = vpop.f32.mrf.mxu0
          %2253 = vdwg.mxu0
          %v2254 = vpack.c.bf16 %v2131, %v2128
          %v2255 = vpack.c.bf16 %v2139, %v2136
          %v2256 = vpack.c.bf16 %v2147, %v2144
          %v2257 = vpack.c.bf16 %v2155, %v2152
          %v2258 = vpack.c.bf16 %v2163, %v2160
          %v2259 = vpack.c.bf16 %v2171, %v2168
          %v2260 = vpack.c.bf16 %v2179, %v2176
          %v2261 = vpack.c.bf16 %v2187, %v2184
          %v2262 = vpack.c.bf16 %v2195, %v2192
          %v2263 = vpack.c.bf16 %v2203, %v2200
          %v2264 = vpack.c.bf16 %v2211, %v2208
          %v2265 = vpack.c.bf16 %v2219, %v2216
          %v2266 = vpack.c.bf16 %v2227, %v2224
          %v2267 = vpack.c.bf16 %v2235, %v2232
          %v2268 = vpack.c.bf16 %v2243, %v2240
          %v2269 = vpack.c.bf16 %v2251, %v2248
          %v2286 = vunpack.c.l.b16 %v2254
          %v2287 = vunpack.c.h.b16 %v2254
          %v2288 = vunpack.c.l.b16 %v2255
          %v2289 = vunpack.c.h.b16 %v2255
          %v2290 = vunpack.c.l.b16 %v2256
          %v2291 = vunpack.c.h.b16 %v2256
          %v2292 = vunpack.c.l.b16 %v2257
          %v2293 = vunpack.c.h.b16 %v2257
          %v2294 = vunpack.c.l.b16 %v2258
          %v2295 = vunpack.c.h.b16 %v2258
          %v2296 = vunpack.c.l.b16 %v2259
          %v2297 = vunpack.c.h.b16 %v2259
          %v2298 = vunpack.c.l.b16 %v2260
          %v2299 = vunpack.c.h.b16 %v2260
          %v2300 = vunpack.c.l.b16 %v2261
          %v2301 = vunpack.c.h.b16 %v2261
          %v2302 = vunpack.c.l.b16 %v2262
          %v2303 = vunpack.c.h.b16 %v2262
          %v2304 = vunpack.c.l.b16 %v2263
          %v2305 = vunpack.c.h.b16 %v2263
          %v2306 = vunpack.c.l.b16 %v2264
          %v2307 = vunpack.c.h.b16 %v2264
          %v2308 = vunpack.c.l.b16 %v2265
          %v2309 = vunpack.c.h.b16 %v2265
          %v2310 = vunpack.c.l.b16 %v2266
          %v2311 = vunpack.c.h.b16 %v2266
          %v2312 = vunpack.c.l.b16 %v2267
          %v2313 = vunpack.c.h.b16 %v2267
          %v2314 = vunpack.c.l.b16 %v2268
          %v2315 = vunpack.c.h.b16 %v2268
          %v2316 = vunpack.c.l.b16 %v2269
          %v2317 = vunpack.c.h.b16 %v2269
          %v2318 = vpack.c.b16 %v2286, %v2286
          %v2319 = vpack.c.b16 %v2287, %v2287
          %v2320 = vpack.c.b16 %v2288, %v2288
          %v2321 = vpack.c.b16 %v2289, %v2289
          %v2322 = vpack.c.b16 %v2290, %v2290
          %v2323 = vpack.c.b16 %v2291, %v2291
          %v2324 = vpack.c.b16 %v2292, %v2292
          %v2325 = vpack.c.b16 %v2293, %v2293
          %v2326 = vpack.c.b16 %v2294, %v2294
          %v2327 = vpack.c.b16 %v2295, %v2295
          %v2328 = vpack.c.b16 %v2296, %v2296
          %v2329 = vpack.c.b16 %v2297, %v2297
          %v2330 = vpack.c.b16 %v2298, %v2298
          %v2331 = vpack.c.b16 %v2299, %v2299
          %v2332 = vpack.c.b16 %v2300, %v2300
          %v2333 = vpack.c.b16 %v2301, %v2301
          %v2334 = vpack.c.b16 %v2302, %v2302
          %v2335 = vpack.c.b16 %v2303, %v2303
          %v2336 = vpack.c.b16 %v2304, %v2304
          %v2337 = vpack.c.b16 %v2305, %v2305
          %v2338 = vpack.c.b16 %v2306, %v2306
          %v2339 = vpack.c.b16 %v2307, %v2307
          %v2340 = vpack.c.b16 %v2308, %v2308
          %v2341 = vpack.c.b16 %v2309, %v2309
          %v2342 = vpack.c.b16 %v2310, %v2310
          %v2343 = vpack.c.b16 %v2311, %v2311
          %v2344 = vpack.c.b16 %v2312, %v2312
          %v2345 = vpack.c.b16 %v2313, %v2313
          %v2346 = vpack.c.b16 %v2314, %v2314
          %v2347 = vpack.c.b16 %v2315, %v2315
          %v2348 = vpack.c.b16 %v2316, %v2316
          %v2349 = vpack.c.b16 %v2317, %v2317
          %s2382 = smul.addr %s1993, 4
          %s2383 = scalar_lea.vmem [#allocation3], %s2382
          %2384 = vst [vmem:[%s2383] sm:$0xf] %v2318
          %2385 = vst [vmem:[%s2383 + $0x4] sm:$0xf] %v2319
          %2386 = vst [vmem:[%s2383 + $0x8] sm:$0xf] %v2320
          %2387 = vst [vmem:[%s2383 + $0xc] sm:$0xf] %v2321
          %2388 = vst [vmem:[%s2383 + $0x10] sm:$0xf] %v2322
          %2389 = vst [vmem:[%s2383 + $0x14] sm:$0xf] %v2323
          %2390 = vst [vmem:[%s2383 + $0x18] sm:$0xf] %v2324
          %2391 = vst [vmem:[%s2383 + $0x1c] sm:$0xf] %v2325
          %2392 = vst [vmem:[%s2383 + $0x20] sm:$0xf] %v2326
          %2393 = vst [vmem:[%s2383 + $0x24] sm:$0xf] %v2327
          %2394 = vst [vmem:[%s2383 + $0x28] sm:$0xf] %v2328
          %2395 = vst [vmem:[%s2383 + $0x2c] sm:$0xf] %v2329
          %2396 = vst [vmem:[%s2383 + $0x30] sm:$0xf] %v2330
          %2397 = vst [vmem:[%s2383 + $0x34] sm:$0xf] %v2331
          %2398 = vst [vmem:[%s2383 + $0x38] sm:$0xf] %v2332
          %2399 = vst [vmem:[%s2383 + $0x3c] sm:$0xf] %v2333
          %2400 = vst [vmem:[%s2383 + $0x40] sm:$0xf] %v2334
          %2401 = vst [vmem:[%s2383 + $0x44] sm:$0xf] %v2335
          %2402 = vst [vmem:[%s2383 + $0x48] sm:$0xf] %v2336
          %2403 = vst [vmem:[%s2383 + $0x4c] sm:$0xf] %v2337
          %2404 = vst [vmem:[%s2383 + $0x50] sm:$0xf] %v2338
          %2405 = vst [vmem:[%s2383 + $0x54] sm:$0xf] %v2339
          %2406 = vst [vmem:[%s2383 + $0x58] sm:$0xf] %v2340
          %2407 = vst [vmem:[%s2383 + $0x5c] sm:$0xf] %v2341
          %2408 = vst [vmem:[%s2383 + $0x60] sm:$0xf] %v2342
          %2409 = vst [vmem:[%s2383 + $0x64] sm:$0xf] %v2343
          %2410 = vst [vmem:[%s2383 + $0x68] sm:$0xf] %v2344
          %2411 = vst [vmem:[%s2383 + $0x6c] sm:$0xf] %v2345
          %2412 = vst [vmem:[%s2383 + $0x70] sm:$0xf] %v2346
          %2413 = vst [vmem:[%s2383 + $0x74] sm:$0xf] %v2347
          %2414 = vst [vmem:[%s2383 + $0x78] sm:$0xf] %v2348
          %2415 = vst [vmem:[%s2383 + $0x7c] sm:$0xf] %v2349
        $region108: #{tpu_custom_call.1} parent=71 // pred_fallthru
          _
        %p2416 = scmp.eq.s32.totalorder %s34, 1
        // Predicated region
        $region109: #{tpu_custom_call.1} parent=71 // pred_check
          %p2417 = pneg %p2416
        $region110: #{tpu_custom_call.1} parent=71 // pred_check_branch
          %2419 = sbr.rel (%p2417) target = $region112
        $region111: #{tpu_custom_call.1} parent=71 // pred_region
          %v2420 = vld [vmem:[#allocation4] sm:$0xff]
          %v2421 = vld [vmem:[#allocation4 + $0x8] sm:$0xff]
          %v2422 = vld [vmem:[#allocation4 + $0x10] sm:$0xff]
          %v2423 = vld [vmem:[#allocation4 + $0x18] sm:$0xff]
          %v2424 = vld [vmem:[#allocation4 + $0x20] sm:$0xff]
          %v2425 = vld [vmem:[#allocation4 + $0x28] sm:$0xff]
          %v2426 = vld [vmem:[#allocation4 + $0x30] sm:$0xff]
          %v2427 = vld [vmem:[#allocation4 + $0x38] sm:$0xff]
          %v2428 = vld [vmem:[#allocation4 + $0x40] sm:$0xff]
          %v2429 = vld [vmem:[#allocation4 + $0x48] sm:$0xff]
          %v2430 = vld [vmem:[#allocation4 + $0x50] sm:$0xff]
          %v2431 = vld [vmem:[#allocation4 + $0x58] sm:$0xff]
          %v2432 = vld [vmem:[#allocation4 + $0x60] sm:$0xff]
          %v2433 = vld [vmem:[#allocation4 + $0x68] sm:$0xff]
          %v2434 = vld [vmem:[#allocation4 + $0x70] sm:$0xff]
          %v2435 = vld [vmem:[#allocation4 + $0x78] sm:$0xff]
          %v2436 = vld [vmem:[#allocation4 + $0x80] sm:$0xff]
          %v2437 = vld [vmem:[#allocation4 + $0x88] sm:$0xff]
          %v2438 = vld [vmem:[#allocation4 + $0x90] sm:$0xff]
          %v2439 = vld [vmem:[#allocation4 + $0x98] sm:$0xff]
          %v2440 = vld [vmem:[#allocation4 + $0xa0] sm:$0xff]
          %v2441 = vld [vmem:[#allocation4 + $0xa8] sm:$0xff]
          %v2442 = vld [vmem:[#allocation4 + $0xb0] sm:$0xff]
          %v2443 = vld [vmem:[#allocation4 + $0xb8] sm:$0xff]
          %v2444 = vld [vmem:[#allocation4 + $0xc0] sm:$0xff]
          %v2445 = vld [vmem:[#allocation4 + $0xc8] sm:$0xff]
          %v2446 = vld [vmem:[#allocation4 + $0xd0] sm:$0xff]
          %v2447 = vld [vmem:[#allocation4 + $0xd8] sm:$0xff]
          %v2448 = vld [vmem:[#allocation4 + $0xe0] sm:$0xff]
          %v2449 = vld [vmem:[#allocation4 + $0xe8] sm:$0xff]
          %v2450 = vld [vmem:[#allocation4 + $0xf0] sm:$0xff]
          %v2451 = vld [vmem:[#allocation4 + $0xf8] sm:$0xff]
          %v2452 = vld [vmem:[#allocation2] sm:$0xf]
          %v2453 = vld [vmem:[#allocation2 + $0x4] sm:$0xf]
          %v2454 = vld [vmem:[#allocation2 + $0x8] sm:$0xf]
          %v2455 = vld [vmem:[#allocation2 + $0xc] sm:$0xf]
          %v2456 = vld [vmem:[#allocation2 + $0x10] sm:$0xf]
          %v2457 = vld [vmem:[#allocation2 + $0x14] sm:$0xf]
          %v2458 = vld [vmem:[#allocation2 + $0x18] sm:$0xf]
          %v2459 = vld [vmem:[#allocation2 + $0x1c] sm:$0xf]
          %v2460 = vld [vmem:[#allocation2 + $0x20] sm:$0xf]
          %v2461 = vld [vmem:[#allocation2 + $0x24] sm:$0xf]
          %v2462 = vld [vmem:[#allocation2 + $0x28] sm:$0xf]
          %v2463 = vld [vmem:[#allocation2 + $0x2c] sm:$0xf]
          %v2464 = vld [vmem:[#allocation2 + $0x30] sm:$0xf]
          %v2465 = vld [vmem:[#allocation2 + $0x34] sm:$0xf]
          %v2466 = vld [vmem:[#allocation2 + $0x38] sm:$0xf]
          %v2467 = vld [vmem:[#allocation2 + $0x3c] sm:$0xf]
          %v2468 = vld [vmem:[#allocation2 + $0x40] sm:$0xf]
          %v2469 = vld [vmem:[#allocation2 + $0x44] sm:$0xf]
          %v2470 = vld [vmem:[#allocation2 + $0x48] sm:$0xf]
          %v2471 = vld [vmem:[#allocation2 + $0x4c] sm:$0xf]
          %v2472 = vld [vmem:[#allocation2 + $0x50] sm:$0xf]
          %v2473 = vld [vmem:[#allocation2 + $0x54] sm:$0xf]
          %v2474 = vld [vmem:[#allocation2 + $0x58] sm:$0xf]
          %v2475 = vld [vmem:[#allocation2 + $0x5c] sm:$0xf]
          %v2476 = vld [vmem:[#allocation2 + $0x60] sm:$0xf]
          %v2477 = vld [vmem:[#allocation2 + $0x64] sm:$0xf]
          %v2478 = vld [vmem:[#allocation2 + $0x68] sm:$0xf]
          %v2479 = vld [vmem:[#allocation2 + $0x6c] sm:$0xf]
          %v2480 = vld [vmem:[#allocation2 + $0x70] sm:$0xf]
          %v2481 = vld [vmem:[#allocation2 + $0x74] sm:$0xf]
          %v2482 = vld [vmem:[#allocation2 + $0x78] sm:$0xf]
          %v2483 = vld [vmem:[#allocation2 + $0x7c] sm:$0xf]
          %v2484 = vld [vmem:[#allocation7] sm:$0xff]
          %v2485 = vld [vmem:[#allocation7 + $0x8] sm:$0xff]
          %v2486 = vld [vmem:[#allocation7 + $0x10] sm:$0xff]
          %v2487 = vld [vmem:[#allocation7 + $0x18] sm:$0xff]
          %v2488 = vld [vmem:[#allocation7 + $0x20] sm:$0xff]
          %v2489 = vld [vmem:[#allocation7 + $0x28] sm:$0xff]
          %v2490 = vld [vmem:[#allocation7 + $0x30] sm:$0xff]
          %v2491 = vld [vmem:[#allocation7 + $0x38] sm:$0xff]
          %v2492 = vld [vmem:[#allocation7 + $0x40] sm:$0xff]
          %v2493 = vld [vmem:[#allocation7 + $0x48] sm:$0xff]
          %v2494 = vld [vmem:[#allocation7 + $0x50] sm:$0xff]
          %v2495 = vld [vmem:[#allocation7 + $0x58] sm:$0xff]
          %v2496 = vld [vmem:[#allocation7 + $0x60] sm:$0xff]
          %v2497 = vld [vmem:[#allocation7 + $0x68] sm:$0xff]
          %v2498 = vld [vmem:[#allocation7 + $0x70] sm:$0xff]
          %v2499 = vld [vmem:[#allocation7 + $0x78] sm:$0xff]
          %v2500 = vld [vmem:[#allocation7 + $0x80] sm:$0xff]
          %v2501 = vld [vmem:[#allocation7 + $0x88] sm:$0xff]
          %v2502 = vld [vmem:[#allocation7 + $0x90] sm:$0xff]
          %v2503 = vld [vmem:[#allocation7 + $0x98] sm:$0xff]
          %v2504 = vld [vmem:[#allocation7 + $0xa0] sm:$0xff]
          %v2505 = vld [vmem:[#allocation7 + $0xa8] sm:$0xff]
          %v2506 = vld [vmem:[#allocation7 + $0xb0] sm:$0xff]
          %v2507 = vld [vmem:[#allocation7 + $0xb8] sm:$0xff]
          %v2508 = vld [vmem:[#allocation7 + $0xc0] sm:$0xff]
          %v2509 = vld [vmem:[#allocation7 + $0xc8] sm:$0xff]
          %v2510 = vld [vmem:[#allocation7 + $0xd0] sm:$0xff]
          %v2511 = vld [vmem:[#allocation7 + $0xd8] sm:$0xff]
          %v2512 = vld [vmem:[#allocation7 + $0xe0] sm:$0xff]
          %v2513 = vld [vmem:[#allocation7 + $0xe8] sm:$0xff]
          %v2514 = vld [vmem:[#allocation7 + $0xf0] sm:$0xff]
          %v2515 = vld [vmem:[#allocation7 + $0xf8] sm:$0xff]
          %v2516 = vld [vmem:[#allocation3] sm:$0xf]
          %v2517 = vld [vmem:[#allocation3 + $0x4] sm:$0xf]
          %v2518 = vld [vmem:[#allocation3 + $0x8] sm:$0xf]
          %v2519 = vld [vmem:[#allocation3 + $0xc] sm:$0xf]
          %v2520 = vld [vmem:[#allocation3 + $0x10] sm:$0xf]
          %v2521 = vld [vmem:[#allocation3 + $0x14] sm:$0xf]
          %v2522 = vld [vmem:[#allocation3 + $0x18] sm:$0xf]
          %v2523 = vld [vmem:[#allocation3 + $0x1c] sm:$0xf]
          %v2524 = vld [vmem:[#allocation3 + $0x20] sm:$0xf]
          %v2525 = vld [vmem:[#allocation3 + $0x24] sm:$0xf]
          %v2526 = vld [vmem:[#allocation3 + $0x28] sm:$0xf]
          %v2527 = vld [vmem:[#allocation3 + $0x2c] sm:$0xf]
          %v2528 = vld [vmem:[#allocation3 + $0x30] sm:$0xf]
          %v2529 = vld [vmem:[#allocation3 + $0x34] sm:$0xf]
          %v2530 = vld [vmem:[#allocation3 + $0x38] sm:$0xf]
          %v2531 = vld [vmem:[#allocation3 + $0x3c] sm:$0xf]
          %v2532 = vld [vmem:[#allocation3 + $0x40] sm:$0xf]
          %v2533 = vld [vmem:[#allocation3 + $0x44] sm:$0xf]
          %v2534 = vld [vmem:[#allocation3 + $0x48] sm:$0xf]
          %v2535 = vld [vmem:[#allocation3 + $0x4c] sm:$0xf]
          %v2536 = vld [vmem:[#allocation3 + $0x50] sm:$0xf]
          %v2537 = vld [vmem:[#allocation3 + $0x54] sm:$0xf]
          %v2538 = vld [vmem:[#allocation3 + $0x58] sm:$0xf]
          %v2539 = vld [vmem:[#allocation3 + $0x5c] sm:$0xf]
          %v2540 = vld [vmem:[#allocation3 + $0x60] sm:$0xf]
          %v2541 = vld [vmem:[#allocation3 + $0x64] sm:$0xf]
          %v2542 = vld [vmem:[#allocation3 + $0x68] sm:$0xf]
          %v2543 = vld [vmem:[#allocation3 + $0x6c] sm:$0xf]
          %v2544 = vld [vmem:[#allocation3 + $0x70] sm:$0xf]
          %v2545 = vld [vmem:[#allocation3 + $0x74] sm:$0xf]
          %v2546 = vld [vmem:[#allocation3 + $0x78] sm:$0xf]
          %v2547 = vld [vmem:[#allocation3 + $0x7c] sm:$0xf]
          %v2548 = vld [vmem:[%s8] sm:$0x1]
          %v2550 = vlaneseq
          %v2551 = vshrl.u32 %v2550, 7
          %v2552 = vsub.s32 0, %v2551
          %v2553 = vrot.slane %v2548, %v2552
          %v2587 = vunpack.c.l.b16 %v2420
          %v2588 = vunpack.c.h.b16 %v2420
          %v2589 = vunpack.c.l.b16 %v2421
          %v2590 = vunpack.c.h.b16 %v2421
          %v2591 = vunpack.c.l.b16 %v2422
          %v2592 = vunpack.c.h.b16 %v2422
          %v2593 = vunpack.c.l.b16 %v2423
          %v2594 = vunpack.c.h.b16 %v2423
          %v2595 = vunpack.c.l.b16 %v2424
          %v2596 = vunpack.c.h.b16 %v2424
          %v2597 = vunpack.c.l.b16 %v2425
          %v2598 = vunpack.c.h.b16 %v2425
          %v2599 = vunpack.c.l.b16 %v2426
          %v2600 = vunpack.c.h.b16 %v2426
          %v2601 = vunpack.c.l.b16 %v2427
          %v2602 = vunpack.c.h.b16 %v2427
          %v2603 = vunpack.c.l.b16 %v2428
          %v2604 = vunpack.c.h.b16 %v2428
          %v2605 = vunpack.c.l.b16 %v2429
          %v2606 = vunpack.c.h.b16 %v2429
          %v2607 = vunpack.c.l.b16 %v2430
          %v2608 = vunpack.c.h.b16 %v2430
          %v2609 = vunpack.c.l.b16 %v2431
          %v2610 = vunpack.c.h.b16 %v2431
          %v2611 = vunpack.c.l.b16 %v2432
          %v2612 = vunpack.c.h.b16 %v2432
          %v2613 = vunpack.c.l.b16 %v2433
          %v2614 = vunpack.c.h.b16 %v2433
          %v2615 = vunpack.c.l.b16 %v2434
          %v2616 = vunpack.c.h.b16 %v2434
          %v2617 = vunpack.c.l.b16 %v2435
          %v2618 = vunpack.c.h.b16 %v2435
          %v2619 = vunpack.c.l.b16 %v2436
          %v2620 = vunpack.c.h.b16 %v2436
          %v2621 = vunpack.c.l.b16 %v2437
          %v2622 = vunpack.c.h.b16 %v2437
          %v2623 = vunpack.c.l.b16 %v2438
          %v2624 = vunpack.c.h.b16 %v2438
          %v2625 = vunpack.c.l.b16 %v2439
          %v2626 = vunpack.c.h.b16 %v2439
          %v2627 = vunpack.c.l.b16 %v2440
          %v2628 = vunpack.c.h.b16 %v2440
          %v2629 = vunpack.c.l.b16 %v2441
          %v2630 = vunpack.c.h.b16 %v2441
          %v2631 = vunpack.c.l.b16 %v2442
          %v2632 = vunpack.c.h.b16 %v2442
          %v2633 = vunpack.c.l.b16 %v2443
          %v2634 = vunpack.c.h.b16 %v2443
          %v2635 = vunpack.c.l.b16 %v2444
          %v2636 = vunpack.c.h.b16 %v2444
          %v2637 = vunpack.c.l.b16 %v2445
          %v2638 = vunpack.c.h.b16 %v2445
          %v2639 = vunpack.c.l.b16 %v2446
          %v2640 = vunpack.c.h.b16 %v2446
          %v2641 = vunpack.c.l.b16 %v2447
          %v2642 = vunpack.c.h.b16 %v2447
          %v2643 = vunpack.c.l.b16 %v2448
          %v2644 = vunpack.c.h.b16 %v2448
          %v2645 = vunpack.c.l.b16 %v2449
          %v2646 = vunpack.c.h.b16 %v2449
          %v2647 = vunpack.c.l.b16 %v2450
          %v2648 = vunpack.c.h.b16 %v2450
          %v2649 = vunpack.c.l.b16 %v2451
          %v2650 = vunpack.c.h.b16 %v2451
          %v2651 = vpack.c.b16 %v2589, %v2587
          %v2652 = vpack.c.b16 %v2590, %v2588
          %v2653 = vpack.c.b16 %v2593, %v2591
          %v2654 = vpack.c.b16 %v2594, %v2592
          %v2655 = vpack.c.b16 %v2597, %v2595
          %v2656 = vpack.c.b16 %v2598, %v2596
          %v2657 = vpack.c.b16 %v2601, %v2599
          %v2658 = vpack.c.b16 %v2602, %v2600
          %v2659 = vpack.c.b16 %v2605, %v2603
          %v2660 = vpack.c.b16 %v2606, %v2604
          %v2661 = vpack.c.b16 %v2609, %v2607
          %v2662 = vpack.c.b16 %v2610, %v2608
          %v2663 = vpack.c.b16 %v2613, %v2611
          %v2664 = vpack.c.b16 %v2614, %v2612
          %v2665 = vpack.c.b16 %v2617, %v2615
          %v2666 = vpack.c.b16 %v2618, %v2616
          %v2667 = vpack.c.b16 %v2621, %v2619
          %v2668 = vpack.c.b16 %v2622, %v2620
          %v2669 = vpack.c.b16 %v2625, %v2623
          %v2670 = vpack.c.b16 %v2626, %v2624
          %v2671 = vpack.c.b16 %v2629, %v2627
          %v2672 = vpack.c.b16 %v2630, %v2628
          %v2673 = vpack.c.b16 %v2633, %v2631
          %v2674 = vpack.c.b16 %v2634, %v2632
          %v2675 = vpack.c.b16 %v2637, %v2635
          %v2676 = vpack.c.b16 %v2638, %v2636
          %v2677 = vpack.c.b16 %v2641, %v2639
          %v2678 = vpack.c.b16 %v2642, %v2640
          %v2679 = vpack.c.b16 %v2645, %v2643
          %v2680 = vpack.c.b16 %v2646, %v2644
          %v2681 = vpack.c.b16 %v2649, %v2647
          %v2682 = vpack.c.b16 %v2650, %v2648
          %v2747 = vunpack.c.l.b16 %v2452
          %v2748 = vunpack.c.l.b16 %v2453
          %v2749 = vunpack.c.l.b16 %v2454
          %v2750 = vunpack.c.l.b16 %v2455
          %v2751 = vunpack.c.l.b16 %v2456
          %v2752 = vunpack.c.l.b16 %v2457
          %v2753 = vunpack.c.l.b16 %v2458
          %v2754 = vunpack.c.l.b16 %v2459
          %v2755 = vunpack.c.l.b16 %v2460
          %v2756 = vunpack.c.l.b16 %v2461
          %v2757 = vunpack.c.l.b16 %v2462
          %v2758 = vunpack.c.l.b16 %v2463
          %v2759 = vunpack.c.l.b16 %v2464
          %v2760 = vunpack.c.l.b16 %v2465
          %v2761 = vunpack.c.l.b16 %v2466
          %v2762 = vunpack.c.l.b16 %v2467
          %v2763 = vunpack.c.l.b16 %v2468
          %v2764 = vunpack.c.l.b16 %v2469
          %v2765 = vunpack.c.l.b16 %v2470
          %v2766 = vunpack.c.l.b16 %v2471
          %v2767 = vunpack.c.l.b16 %v2472
          %v2768 = vunpack.c.l.b16 %v2473
          %v2769 = vunpack.c.l.b16 %v2474
          %v2770 = vunpack.c.l.b16 %v2475
          %v2771 = vunpack.c.l.b16 %v2476
          %v2772 = vunpack.c.l.b16 %v2477
          %v2773 = vunpack.c.l.b16 %v2478
          %v2774 = vunpack.c.l.b16 %v2479
          %v2775 = vunpack.c.l.b16 %v2480
          %v2776 = vunpack.c.l.b16 %v2481
          %v2777 = vunpack.c.l.b16 %v2482
          %v2778 = vunpack.c.l.b16 %v2483
          %v2779 = vpack.c.b16 %v2748, %v2747
          %v2780 = vpack.c.b16 %v2750, %v2749
          %v2781 = vpack.c.b16 %v2752, %v2751
          %v2782 = vpack.c.b16 %v2754, %v2753
          %v2783 = vpack.c.b16 %v2756, %v2755
          %v2784 = vpack.c.b16 %v2758, %v2757
          %v2785 = vpack.c.b16 %v2760, %v2759
          %v2786 = vpack.c.b16 %v2762, %v2761
          %v2787 = vpack.c.b16 %v2764, %v2763
          %v2788 = vpack.c.b16 %v2766, %v2765
          %v2789 = vpack.c.b16 %v2768, %v2767
          %v2790 = vpack.c.b16 %v2770, %v2769
          %v2791 = vpack.c.b16 %v2772, %v2771
          %v2792 = vpack.c.b16 %v2774, %v2773
          %v2793 = vpack.c.b16 %v2776, %v2775
          %v2794 = vpack.c.b16 %v2778, %v2777
          %2811 = vmatprep.subr.bf16.mxu0 0
          %2812 = vmatpush1.bf16.msra.mxu0 %v2786
          %2813 = vmatprep.subr.bf16.mxu0 0
          %2814 = vmatpush1.bf16.msra.mxu0 %v2785
          %2815 = vmatprep.subr.bf16.mxu0 0
          %2816 = vmatpush1.bf16.msra.mxu0 %v2784
          %2817 = vmatprep.subr.bf16.mxu0 0
          %2818 = vmatpush1.bf16.msra.mxu0 %v2783
          %2819 = vmatprep.subr.bf16.mxu0 0
          %2820 = vmatpush1.bf16.msra.mxu0 %v2782
          %2821 = vmatprep.subr.bf16.mxu0 0
          %2822 = vmatpush1.bf16.msra.mxu0 %v2781
          %2823 = vmatprep.subr.bf16.mxu0 0
          %2824 = vmatpush1.bf16.msra.mxu0 %v2780
          %2825 = vmatprep.subr.bf16.mxu0 0
          %2826 = vmatpush1.bf16.msra.mxu0 %v2779
          %2827 = vmatprep.subr.bf16.mxu0 0
          %2828 = vmatpush2.bf16.msra.mxu0 %v2794
          %2829 = vmatprep.subr.bf16.mxu0 0
          %2830 = vmatpush2.bf16.msra.mxu0 %v2793
          %2831 = vmatprep.subr.bf16.mxu0 0
          %2832 = vmatpush2.bf16.msra.mxu0 %v2792
          %2833 = vmatprep.subr.bf16.mxu0 0
          %2834 = vmatpush2.bf16.msra.mxu0 %v2791
          %2835 = vmatprep.subr.bf16.mxu0 0
          %2836 = vmatpush2.bf16.msra.mxu0 %v2790
          %2837 = vmatprep.subr.bf16.mxu0 0
          %2838 = vmatpush2.bf16.msra.mxu0 %v2789
          %2839 = vmatprep.subr.bf16.mxu0 0
          %2840 = vmatpush2.bf16.msra.mxu0 %v2788
          %2841 = vmatprep.subr.bf16.mxu0 0
          %2842 = vmatpush2.bf16.msra.mxu0 %v2787
          %2843 = vmatprep.mubr.bf16.mxu0 %v2652
          %2844 = vmatmul.mubr.bf16.gmra.mxu0 %v2651
          %v2845 = vpop.f32.mrf.mxu0
          %v2846 = vadd.f32 %v2553, %v2845
          %v2847 = vpop.f32.mrf.mxu0
          %v2848 = vpop.f32.mrf.mxu0
          %v2849 = vadd.f32 %v2553, %v2848
          %v2850 = vpop.f32.mrf.mxu0
          %2851 = vmatprep.mubr.bf16.mxu0 %v2654
          %2852 = vmatmul.mubr.bf16.gmra.mxu0 %v2653
          %v2853 = vpop.f32.mrf.mxu0
          %v2854 = vadd.f32 %v2553, %v2853
          %v2855 = vpop.f32.mrf.mxu0
          %v2856 = vpop.f32.mrf.mxu0
          %v2857 = vadd.f32 %v2553, %v2856
          %v2858 = vpop.f32.mrf.mxu0
          %2859 = vmatprep.mubr.bf16.mxu0 %v2656
          %2860 = vmatmul.mubr.bf16.gmra.mxu0 %v2655
          %v2861 = vpop.f32.mrf.mxu0
          %v2862 = vadd.f32 %v2553, %v2861
          %v2863 = vpop.f32.mrf.mxu0
          %v2864 = vpop.f32.mrf.mxu0
          %v2865 = vadd.f32 %v2553, %v2864
          %v2866 = vpop.f32.mrf.mxu0
          %2867 = vmatprep.mubr.bf16.mxu0 %v2658
          %2868 = vmatmul.mubr.bf16.gmra.mxu0 %v2657
          %v2869 = vpop.f32.mrf.mxu0
          %v2870 = vadd.f32 %v2553, %v2869
          %v2871 = vpop.f32.mrf.mxu0
          %v2872 = vpop.f32.mrf.mxu0
          %v2873 = vadd.f32 %v2553, %v2872
          %v2874 = vpop.f32.mrf.mxu0
          %2875 = vmatprep.mubr.bf16.mxu0 %v2660
          %2876 = vmatmul.mubr.bf16.gmra.mxu0 %v2659
          %v2877 = vpop.f32.mrf.mxu0
          %v2878 = vadd.f32 %v2553, %v2877
          %v2879 = vpop.f32.mrf.mxu0
          %v2880 = vpop.f32.mrf.mxu0
          %v2881 = vadd.f32 %v2553, %v2880
          %v2882 = vpop.f32.mrf.mxu0
          %2883 = vmatprep.mubr.bf16.mxu0 %v2662
          %2884 = vmatmul.mubr.bf16.gmra.mxu0 %v2661
          %v2885 = vpop.f32.mrf.mxu0
          %v2886 = vadd.f32 %v2553, %v2885
          %v2887 = vpop.f32.mrf.mxu0
          %v2888 = vpop.f32.mrf.mxu0
          %v2889 = vadd.f32 %v2553, %v2888
          %v2890 = vpop.f32.mrf.mxu0
          %2891 = vmatprep.mubr.bf16.mxu0 %v2664
          %2892 = vmatmul.mubr.bf16.gmra.mxu0 %v2663
          %v2893 = vpop.f32.mrf.mxu0
          %v2894 = vadd.f32 %v2553, %v2893
          %v2895 = vpop.f32.mrf.mxu0
          %v2896 = vpop.f32.mrf.mxu0
          %v2897 = vadd.f32 %v2553, %v2896
          %v2898 = vpop.f32.mrf.mxu0
          %2899 = vmatprep.mubr.bf16.mxu0 %v2666
          %2900 = vmatmul.mubr.bf16.gmra.mxu0 %v2665
          %v2901 = vpop.f32.mrf.mxu0
          %v2902 = vadd.f32 %v2553, %v2901
          %v2903 = vpop.f32.mrf.mxu0
          %v2904 = vpop.f32.mrf.mxu0
          %v2905 = vadd.f32 %v2553, %v2904
          %v2906 = vpop.f32.mrf.mxu0
          %2907 = vmatprep.mubr.bf16.mxu0 %v2668
          %2908 = vmatmul.mubr.bf16.gmra.mxu0 %v2667
          %v2909 = vpop.f32.mrf.mxu0
          %v2910 = vadd.f32 %v2553, %v2909
          %v2911 = vpop.f32.mrf.mxu0
          %v2912 = vpop.f32.mrf.mxu0
          %v2913 = vadd.f32 %v2553, %v2912
          %v2914 = vpop.f32.mrf.mxu0
          %2915 = vmatprep.mubr.bf16.mxu0 %v2670
          %2916 = vmatmul.mubr.bf16.gmra.mxu0 %v2669
          %v2917 = vpop.f32.mrf.mxu0
          %v2918 = vadd.f32 %v2553, %v2917
          %v2919 = vpop.f32.mrf.mxu0
          %v2920 = vpop.f32.mrf.mxu0
          %v2921 = vadd.f32 %v2553, %v2920
          %v2922 = vpop.f32.mrf.mxu0
          %2923 = vmatprep.mubr.bf16.mxu0 %v2672
          %2924 = vmatmul.mubr.bf16.gmra.mxu0 %v2671
          %v2925 = vpop.f32.mrf.mxu0
          %v2926 = vadd.f32 %v2553, %v2925
          %v2927 = vpop.f32.mrf.mxu0
          %v2928 = vpop.f32.mrf.mxu0
          %v2929 = vadd.f32 %v2553, %v2928
          %v2930 = vpop.f32.mrf.mxu0
          %2931 = vmatprep.mubr.bf16.mxu0 %v2674
          %2932 = vmatmul.mubr.bf16.gmra.mxu0 %v2673
          %v2933 = vpop.f32.mrf.mxu0
          %v2934 = vadd.f32 %v2553, %v2933
          %v2935 = vpop.f32.mrf.mxu0
          %v2936 = vpop.f32.mrf.mxu0
          %v2937 = vadd.f32 %v2553, %v2936
          %v2938 = vpop.f32.mrf.mxu0
          %2939 = vmatprep.mubr.bf16.mxu0 %v2676
          %2940 = vmatmul.mubr.bf16.gmra.mxu0 %v2675
          %v2941 = vpop.f32.mrf.mxu0
          %v2942 = vadd.f32 %v2553, %v2941
          %v2943 = vpop.f32.mrf.mxu0
          %v2944 = vpop.f32.mrf.mxu0
          %v2945 = vadd.f32 %v2553, %v2944
          %v2946 = vpop.f32.mrf.mxu0
          %2947 = vmatprep.mubr.bf16.mxu0 %v2678
          %2948 = vmatmul.mubr.bf16.gmra.mxu0 %v2677
          %v2949 = vpop.f32.mrf.mxu0
          %v2950 = vadd.f32 %v2553, %v2949
          %v2951 = vpop.f32.mrf.mxu0
          %v2952 = vpop.f32.mrf.mxu0
          %v2953 = vadd.f32 %v2553, %v2952
          %v2954 = vpop.f32.mrf.mxu0
          %2955 = vmatprep.mubr.bf16.mxu0 %v2680
          %2956 = vmatmul.mubr.bf16.gmra.mxu0 %v2679
          %v2957 = vpop.f32.mrf.mxu0
          %v2958 = vadd.f32 %v2553, %v2957
          %v2959 = vpop.f32.mrf.mxu0
          %v2960 = vpop.f32.mrf.mxu0
          %v2961 = vadd.f32 %v2553, %v2960
          %v2962 = vpop.f32.mrf.mxu0
          %2963 = vmatprep.mubr.bf16.mxu0 %v2682
          %2964 = vmatmul.mubr.bf16.gmra.mxu0 %v2681
          %v2965 = vpop.f32.mrf.mxu0
          %v2966 = vadd.f32 %v2553, %v2965
          %v2967 = vpop.f32.mrf.mxu0
          %v2968 = vpop.f32.mrf.mxu0
          %v2969 = vadd.f32 %v2553, %v2968
          %v2970 = vpop.f32.mrf.mxu0
          %2971 = vdwg.mxu0
          %v2972 = vmax.f32 %v2846, 0.0
          %v2973 = vmax.f32 %v2849, 0.0
          %v2974 = vmax.f32 %v2854, 0.0
          %v2975 = vmax.f32 %v2857, 0.0
          %v2976 = vmax.f32 %v2862, 0.0
          %v2977 = vmax.f32 %v2865, 0.0
          %v2978 = vmax.f32 %v2870, 0.0
          %v2979 = vmax.f32 %v2873, 0.0
          %v2980 = vmax.f32 %v2878, 0.0
          %v2981 = vmax.f32 %v2881, 0.0
          %v2982 = vmax.f32 %v2886, 0.0
          %v2983 = vmax.f32 %v2889, 0.0
          %v2984 = vmax.f32 %v2894, 0.0
          %v2985 = vmax.f32 %v2897, 0.0
          %v2986 = vmax.f32 %v2902, 0.0
          %v2987 = vmax.f32 %v2905, 0.0
          %v2988 = vmax.f32 %v2910, 0.0
          %v2989 = vmax.f32 %v2913, 0.0
          %v2990 = vmax.f32 %v2918, 0.0
          %v2991 = vmax.f32 %v2921, 0.0
          %v2992 = vmax.f32 %v2926, 0.0
          %v2993 = vmax.f32 %v2929, 0.0
          %v2994 = vmax.f32 %v2934, 0.0
          %v2995 = vmax.f32 %v2937, 0.0
          %v2996 = vmax.f32 %v2942, 0.0
          %v2997 = vmax.f32 %v2945, 0.0
          %v2998 = vmax.f32 %v2950, 0.0
          %v2999 = vmax.f32 %v2953, 0.0
          %v3000 = vmax.f32 %v2958, 0.0
          %v3001 = vmax.f32 %v2961, 0.0
          %v3002 = vmax.f32 %v2966, 0.0
          %v3003 = vmax.f32 %v2969, 0.0
          %v3004 = vpack.c.bf16 %v2973, %v2972
          %v3005 = vpack.c.bf16 %v2975, %v2974
          %v3006 = vpack.c.bf16 %v2977, %v2976
          %v3007 = vpack.c.bf16 %v2979, %v2978
          %v3008 = vpack.c.bf16 %v2981, %v2980
          %v3009 = vpack.c.bf16 %v2983, %v2982
          %v3010 = vpack.c.bf16 %v2985, %v2984
          %v3011 = vpack.c.bf16 %v2987, %v2986
          %v3012 = vpack.c.bf16 %v2989, %v2988
          %v3013 = vpack.c.bf16 %v2991, %v2990
          %v3014 = vpack.c.bf16 %v2993, %v2992
          %v3015 = vpack.c.bf16 %v2995, %v2994
          %v3016 = vpack.c.bf16 %v2997, %v2996
          %v3017 = vpack.c.bf16 %v2999, %v2998
          %v3018 = vpack.c.bf16 %v3001, %v3000
          %v3019 = vpack.c.bf16 %v3003, %v3002
          %v3020 = vld [vmem:[%s9] sm:$0x1]
          %v3022 = vlaneseq
          %v3023 = vshrl.u32 %v3022, 7
          %v3024 = vsub.s32 0, %v3023
          %v3025 = vrot.slane %v3020, %v3024
          %v3059 = vunpack.c.l.b16 %v2484
          %v3060 = vunpack.c.h.b16 %v2484
          %v3061 = vunpack.c.l.b16 %v2485
          %v3062 = vunpack.c.h.b16 %v2485
          %v3063 = vunpack.c.l.b16 %v2486
          %v3064 = vunpack.c.h.b16 %v2486
          %v3065 = vunpack.c.l.b16 %v2487
          %v3066 = vunpack.c.h.b16 %v2487
          %v3067 = vunpack.c.l.b16 %v2488
          %v3068 = vunpack.c.h.b16 %v2488
          %v3069 = vunpack.c.l.b16 %v2489
          %v3070 = vunpack.c.h.b16 %v2489
          %v3071 = vunpack.c.l.b16 %v2490
          %v3072 = vunpack.c.h.b16 %v2490
          %v3073 = vunpack.c.l.b16 %v2491
          %v3074 = vunpack.c.h.b16 %v2491
          %v3075 = vunpack.c.l.b16 %v2492
          %v3076 = vunpack.c.h.b16 %v2492
          %v3077 = vunpack.c.l.b16 %v2493
          %v3078 = vunpack.c.h.b16 %v2493
          %v3079 = vunpack.c.l.b16 %v2494
          %v3080 = vunpack.c.h.b16 %v2494
          %v3081 = vunpack.c.l.b16 %v2495
          %v3082 = vunpack.c.h.b16 %v2495
          %v3083 = vunpack.c.l.b16 %v2496
          %v3084 = vunpack.c.h.b16 %v2496
          %v3085 = vunpack.c.l.b16 %v2497
          %v3086 = vunpack.c.h.b16 %v2497
          %v3087 = vunpack.c.l.b16 %v2498
          %v3088 = vunpack.c.h.b16 %v2498
          %v3089 = vunpack.c.l.b16 %v2499
          %v3090 = vunpack.c.h.b16 %v2499
          %v3091 = vunpack.c.l.b16 %v2500
          %v3092 = vunpack.c.h.b16 %v2500
          %v3093 = vunpack.c.l.b16 %v2501
          %v3094 = vunpack.c.h.b16 %v2501
          %v3095 = vunpack.c.l.b16 %v2502
          %v3096 = vunpack.c.h.b16 %v2502
          %v3097 = vunpack.c.l.b16 %v2503
          %v3098 = vunpack.c.h.b16 %v2503
          %v3099 = vunpack.c.l.b16 %v2504
          %v3100 = vunpack.c.h.b16 %v2504
          %v3101 = vunpack.c.l.b16 %v2505
          %v3102 = vunpack.c.h.b16 %v2505
          %v3103 = vunpack.c.l.b16 %v2506
          %v3104 = vunpack.c.h.b16 %v2506
          %v3105 = vunpack.c.l.b16 %v2507
          %v3106 = vunpack.c.h.b16 %v2507
          %v3107 = vunpack.c.l.b16 %v2508
          %v3108 = vunpack.c.h.b16 %v2508
          %v3109 = vunpack.c.l.b16 %v2509
          %v3110 = vunpack.c.h.b16 %v2509
          %v3111 = vunpack.c.l.b16 %v2510
          %v3112 = vunpack.c.h.b16 %v2510
          %v3113 = vunpack.c.l.b16 %v2511
          %v3114 = vunpack.c.h.b16 %v2511
          %v3115 = vunpack.c.l.b16 %v2512
          %v3116 = vunpack.c.h.b16 %v2512
          %v3117 = vunpack.c.l.b16 %v2513
          %v3118 = vunpack.c.h.b16 %v2513
          %v3119 = vunpack.c.l.b16 %v2514
          %v3120 = vunpack.c.h.b16 %v2514
          %v3121 = vunpack.c.l.b16 %v2515
          %v3122 = vunpack.c.h.b16 %v2515
          %v3123 = vpack.c.b16 %v3061, %v3059
          %v3124 = vpack.c.b16 %v3062, %v3060
          %v3125 = vpack.c.b16 %v3065, %v3063
          %v3126 = vpack.c.b16 %v3066, %v3064
          %v3127 = vpack.c.b16 %v3069, %v3067
          %v3128 = vpack.c.b16 %v3070, %v3068
          %v3129 = vpack.c.b16 %v3073, %v3071
          %v3130 = vpack.c.b16 %v3074, %v3072
          %v3131 = vpack.c.b16 %v3077, %v3075
          %v3132 = vpack.c.b16 %v3078, %v3076
          %v3133 = vpack.c.b16 %v3081, %v3079
          %v3134 = vpack.c.b16 %v3082, %v3080
          %v3135 = vpack.c.b16 %v3085, %v3083
          %v3136 = vpack.c.b16 %v3086, %v3084
          %v3137 = vpack.c.b16 %v3089, %v3087
          %v3138 = vpack.c.b16 %v3090, %v3088
          %v3139 = vpack.c.b16 %v3093, %v3091
          %v3140 = vpack.c.b16 %v3094, %v3092
          %v3141 = vpack.c.b16 %v3097, %v3095
          %v3142 = vpack.c.b16 %v3098, %v3096
          %v3143 = vpack.c.b16 %v3101, %v3099
          %v3144 = vpack.c.b16 %v3102, %v3100
          %v3145 = vpack.c.b16 %v3105, %v3103
          %v3146 = vpack.c.b16 %v3106, %v3104
          %v3147 = vpack.c.b16 %v3109, %v3107
          %v3148 = vpack.c.b16 %v3110, %v3108
          %v3149 = vpack.c.b16 %v3113, %v3111
          %v3150 = vpack.c.b16 %v3114, %v3112
          %v3151 = vpack.c.b16 %v3117, %v3115
          %v3152 = vpack.c.b16 %v3118, %v3116
          %v3153 = vpack.c.b16 %v3121, %v3119
          %v3154 = vpack.c.b16 %v3122, %v3120
          %v3219 = vunpack.c.l.b16 %v2516
          %v3220 = vunpack.c.l.b16 %v2517
          %v3221 = vunpack.c.l.b16 %v2518
          %v3222 = vunpack.c.l.b16 %v2519
          %v3223 = vunpack.c.l.b16 %v2520
          %v3224 = vunpack.c.l.b16 %v2521
          %v3225 = vunpack.c.l.b16 %v2522
          %v3226 = vunpack.c.l.b16 %v2523
          %v3227 = vunpack.c.l.b16 %v2524
          %v3228 = vunpack.c.l.b16 %v2525
          %v3229 = vunpack.c.l.b16 %v2526
          %v3230 = vunpack.c.l.b16 %v2527
          %v3231 = vunpack.c.l.b16 %v2528
          %v3232 = vunpack.c.l.b16 %v2529
          %v3233 = vunpack.c.l.b16 %v2530
          %v3234 = vunpack.c.l.b16 %v2531
          %v3235 = vunpack.c.l.b16 %v2532
          %v3236 = vunpack.c.l.b16 %v2533
          %v3237 = vunpack.c.l.b16 %v2534
          %v3238 = vunpack.c.l.b16 %v2535
          %v3239 = vunpack.c.l.b16 %v2536
          %v3240 = vunpack.c.l.b16 %v2537
          %v3241 = vunpack.c.l.b16 %v2538
          %v3242 = vunpack.c.l.b16 %v2539
          %v3243 = vunpack.c.l.b16 %v2540
          %v3244 = vunpack.c.l.b16 %v2541
          %v3245 = vunpack.c.l.b16 %v2542
          %v3246 = vunpack.c.l.b16 %v2543
          %v3247 = vunpack.c.l.b16 %v2544
          %v3248 = vunpack.c.l.b16 %v2545
          %v3249 = vunpack.c.l.b16 %v2546
          %v3250 = vunpack.c.l.b16 %v2547
          %v3251 = vpack.c.b16 %v3220, %v3219
          %v3252 = vpack.c.b16 %v3222, %v3221
          %v3253 = vpack.c.b16 %v3224, %v3223
          %v3254 = vpack.c.b16 %v3226, %v3225
          %v3255 = vpack.c.b16 %v3228, %v3227
          %v3256 = vpack.c.b16 %v3230, %v3229
          %v3257 = vpack.c.b16 %v3232, %v3231
          %v3258 = vpack.c.b16 %v3234, %v3233
          %v3259 = vpack.c.b16 %v3236, %v3235
          %v3260 = vpack.c.b16 %v3238, %v3237
          %v3261 = vpack.c.b16 %v3240, %v3239
          %v3262 = vpack.c.b16 %v3242, %v3241
          %v3263 = vpack.c.b16 %v3244, %v3243
          %v3264 = vpack.c.b16 %v3246, %v3245
          %v3265 = vpack.c.b16 %v3248, %v3247
          %v3266 = vpack.c.b16 %v3250, %v3249
          %3283 = vmatprep.subr.bf16.mxu0 0
          %3284 = vmatpush1.bf16.msra.mxu0 %v3258
          %3285 = vmatprep.subr.bf16.mxu0 0
          %3286 = vmatpush1.bf16.msra.mxu0 %v3257
          %3287 = vmatprep.subr.bf16.mxu0 0
          %3288 = vmatpush1.bf16.msra.mxu0 %v3256
          %3289 = vmatprep.subr.bf16.mxu0 0
          %3290 = vmatpush1.bf16.msra.mxu0 %v3255
          %3291 = vmatprep.subr.bf16.mxu0 0
          %3292 = vmatpush1.bf16.msra.mxu0 %v3254
          %3293 = vmatprep.subr.bf16.mxu0 0
          %3294 = vmatpush1.bf16.msra.mxu0 %v3253
          %3295 = vmatprep.subr.bf16.mxu0 0
          %3296 = vmatpush1.bf16.msra.mxu0 %v3252
          %3297 = vmatprep.subr.bf16.mxu0 0
          %3298 = vmatpush1.bf16.msra.mxu0 %v3251
          %3299 = vmatprep.subr.bf16.mxu0 0
          %3300 = vmatpush2.bf16.msra.mxu0 %v3266
          %3301 = vmatprep.subr.bf16.mxu0 0
          %3302 = vmatpush2.bf16.msra.mxu0 %v3265
          %3303 = vmatprep.subr.bf16.mxu0 0
          %3304 = vmatpush2.bf16.msra.mxu0 %v3264
          %3305 = vmatprep.subr.bf16.mxu0 0
          %3306 = vmatpush2.bf16.msra.mxu0 %v3263
          %3307 = vmatprep.subr.bf16.mxu0 0
          %3308 = vmatpush2.bf16.msra.mxu0 %v3262
          %3309 = vmatprep.subr.bf16.mxu0 0
          %3310 = vmatpush2.bf16.msra.mxu0 %v3261
          %3311 = vmatprep.subr.bf16.mxu0 0
          %3312 = vmatpush2.bf16.msra.mxu0 %v3260
          %3313 = vmatprep.subr.bf16.mxu0 0
          %3314 = vmatpush2.bf16.msra.mxu0 %v3259
          %3315 = vmatprep.mubr.bf16.mxu0 %v3124
          %3316 = vmatmul.mubr.bf16.gmra.mxu0 %v3123
          %v3317 = vpop.f32.mrf.mxu0
          %v3318 = vadd.f32 %v3025, %v3317
          %v3319 = vpop.f32.mrf.mxu0
          %v3320 = vpop.f32.mrf.mxu0
          %v3321 = vadd.f32 %v3025, %v3320
          %v3322 = vpop.f32.mrf.mxu0
          %3323 = vmatprep.mubr.bf16.mxu0 %v3126
          %3324 = vmatmul.mubr.bf16.gmra.mxu0 %v3125
          %v3325 = vpop.f32.mrf.mxu0
          %v3326 = vadd.f32 %v3025, %v3325
          %v3327 = vpop.f32.mrf.mxu0
          %v3328 = vpop.f32.mrf.mxu0
          %v3329 = vadd.f32 %v3025, %v3328
          %v3330 = vpop.f32.mrf.mxu0
          %3331 = vmatprep.mubr.bf16.mxu0 %v3128
          %3332 = vmatmul.mubr.bf16.gmra.mxu0 %v3127
          %v3333 = vpop.f32.mrf.mxu0
          %v3334 = vadd.f32 %v3025, %v3333
          %v3335 = vpop.f32.mrf.mxu0
          %v3336 = vpop.f32.mrf.mxu0
          %v3337 = vadd.f32 %v3025, %v3336
          %v3338 = vpop.f32.mrf.mxu0
          %3339 = vmatprep.mubr.bf16.mxu0 %v3130
          %3340 = vmatmul.mubr.bf16.gmra.mxu0 %v3129
          %v3341 = vpop.f32.mrf.mxu0
          %v3342 = vadd.f32 %v3025, %v3341
          %v3343 = vpop.f32.mrf.mxu0
          %v3344 = vpop.f32.mrf.mxu0
          %v3345 = vadd.f32 %v3025, %v3344
          %v3346 = vpop.f32.mrf.mxu0
          %3347 = vmatprep.mubr.bf16.mxu0 %v3132
          %3348 = vmatmul.mubr.bf16.gmra.mxu0 %v3131
          %v3349 = vpop.f32.mrf.mxu0
          %v3350 = vadd.f32 %v3025, %v3349
          %v3351 = vpop.f32.mrf.mxu0
          %v3352 = vpop.f32.mrf.mxu0
          %v3353 = vadd.f32 %v3025, %v3352
          %v3354 = vpop.f32.mrf.mxu0
          %3355 = vmatprep.mubr.bf16.mxu0 %v3134
          %3356 = vmatmul.mubr.bf16.gmra.mxu0 %v3133
          %v3357 = vpop.f32.mrf.mxu0
          %v3358 = vadd.f32 %v3025, %v3357
          %v3359 = vpop.f32.mrf.mxu0
          %v3360 = vpop.f32.mrf.mxu0
          %v3361 = vadd.f32 %v3025, %v3360
          %v3362 = vpop.f32.mrf.mxu0
          %3363 = vmatprep.mubr.bf16.mxu0 %v3136
          %3364 = vmatmul.mubr.bf16.gmra.mxu0 %v3135
          %v3365 = vpop.f32.mrf.mxu0
          %v3366 = vadd.f32 %v3025, %v3365
          %v3367 = vpop.f32.mrf.mxu0
          %v3368 = vpop.f32.mrf.mxu0
          %v3369 = vadd.f32 %v3025, %v3368
          %v3370 = vpop.f32.mrf.mxu0
          %3371 = vmatprep.mubr.bf16.mxu0 %v3138
          %3372 = vmatmul.mubr.bf16.gmra.mxu0 %v3137
          %v3373 = vpop.f32.mrf.mxu0
          %v3374 = vadd.f32 %v3025, %v3373
          %v3375 = vpop.f32.mrf.mxu0
          %v3376 = vpop.f32.mrf.mxu0
          %v3377 = vadd.f32 %v3025, %v3376
          %v3378 = vpop.f32.mrf.mxu0
          %3379 = vmatprep.mubr.bf16.mxu0 %v3140
          %3380 = vmatmul.mubr.bf16.gmra.mxu0 %v3139
          %v3381 = vpop.f32.mrf.mxu0
          %v3382 = vadd.f32 %v3025, %v3381
          %v3383 = vpop.f32.mrf.mxu0
          %v3384 = vpop.f32.mrf.mxu0
          %v3385 = vadd.f32 %v3025, %v3384
          %v3386 = vpop.f32.mrf.mxu0
          %3387 = vmatprep.mubr.bf16.mxu0 %v3142
          %3388 = vmatmul.mubr.bf16.gmra.mxu0 %v3141
          %v3389 = vpop.f32.mrf.mxu0
          %v3390 = vadd.f32 %v3025, %v3389
          %v3391 = vpop.f32.mrf.mxu0
          %v3392 = vpop.f32.mrf.mxu0
          %v3393 = vadd.f32 %v3025, %v3392
          %v3394 = vpop.f32.mrf.mxu0
          %3395 = vmatprep.mubr.bf16.mxu0 %v3144
          %3396 = vmatmul.mubr.bf16.gmra.mxu0 %v3143
          %v3397 = vpop.f32.mrf.mxu0
          %v3398 = vadd.f32 %v3025, %v3397
          %v3399 = vpop.f32.mrf.mxu0
          %v3400 = vpop.f32.mrf.mxu0
          %v3401 = vadd.f32 %v3025, %v3400
          %v3402 = vpop.f32.mrf.mxu0
          %3403 = vmatprep.mubr.bf16.mxu0 %v3146
          %3404 = vmatmul.mubr.bf16.gmra.mxu0 %v3145
          %v3405 = vpop.f32.mrf.mxu0
          %v3406 = vadd.f32 %v3025, %v3405
          %v3407 = vpop.f32.mrf.mxu0
          %v3408 = vpop.f32.mrf.mxu0
          %v3409 = vadd.f32 %v3025, %v3408
          %v3410 = vpop.f32.mrf.mxu0
          %3411 = vmatprep.mubr.bf16.mxu0 %v3148
          %3412 = vmatmul.mubr.bf16.gmra.mxu0 %v3147
          %v3413 = vpop.f32.mrf.mxu0
          %v3414 = vadd.f32 %v3025, %v3413
          %v3415 = vpop.f32.mrf.mxu0
          %v3416 = vpop.f32.mrf.mxu0
          %v3417 = vadd.f32 %v3025, %v3416
          %v3418 = vpop.f32.mrf.mxu0
          %3419 = vmatprep.mubr.bf16.mxu0 %v3150
          %3420 = vmatmul.mubr.bf16.gmra.mxu0 %v3149
          %v3421 = vpop.f32.mrf.mxu0
          %v3422 = vadd.f32 %v3025, %v3421
          %v3423 = vpop.f32.mrf.mxu0
          %v3424 = vpop.f32.mrf.mxu0
          %v3425 = vadd.f32 %v3025, %v3424
          %v3426 = vpop.f32.mrf.mxu0
          %3427 = vmatprep.mubr.bf16.mxu0 %v3152
          %3428 = vmatmul.mubr.bf16.gmra.mxu0 %v3151
          %v3429 = vpop.f32.mrf.mxu0
          %v3430 = vadd.f32 %v3025, %v3429
          %v3431 = vpop.f32.mrf.mxu0
          %v3432 = vpop.f32.mrf.mxu0
          %v3433 = vadd.f32 %v3025, %v3432
          %v3434 = vpop.f32.mrf.mxu0
          %3435 = vmatprep.mubr.bf16.mxu0 %v3154
          %3436 = vmatmul.mubr.bf16.gmra.mxu0 %v3153
          %v3437 = vpop.f32.mrf.mxu0
          %v3438 = vadd.f32 %v3025, %v3437
          %v3439 = vpop.f32.mrf.mxu0
          %v3440 = vpop.f32.mrf.mxu0
          %v3441 = vadd.f32 %v3025, %v3440
          %v3442 = vpop.f32.mrf.mxu0
          %3443 = vdwg.mxu0
          %v3444 = vmax.f32 %v3318, 0.0
          %v3445 = vmax.f32 %v3321, 0.0
          %v3446 = vmax.f32 %v3326, 0.0
          %v3447 = vmax.f32 %v3329, 0.0
          %v3448 = vmax.f32 %v3334, 0.0
          %v3449 = vmax.f32 %v3337, 0.0
          %v3450 = vmax.f32 %v3342, 0.0
          %v3451 = vmax.f32 %v3345, 0.0
          %v3452 = vmax.f32 %v3350, 0.0
          %v3453 = vmax.f32 %v3353, 0.0
          %v3454 = vmax.f32 %v3358, 0.0
          %v3455 = vmax.f32 %v3361, 0.0
          %v3456 = vmax.f32 %v3366, 0.0
          %v3457 = vmax.f32 %v3369, 0.0
          %v3458 = vmax.f32 %v3374, 0.0
          %v3459 = vmax.f32 %v3377, 0.0
          %v3460 = vmax.f32 %v3382, 0.0
          %v3461 = vmax.f32 %v3385, 0.0
          %v3462 = vmax.f32 %v3390, 0.0
          %v3463 = vmax.f32 %v3393, 0.0
          %v3464 = vmax.f32 %v3398, 0.0
          %v3465 = vmax.f32 %v3401, 0.0
          %v3466 = vmax.f32 %v3406, 0.0
          %v3467 = vmax.f32 %v3409, 0.0
          %v3468 = vmax.f32 %v3414, 0.0
          %v3469 = vmax.f32 %v3417, 0.0
          %v3470 = vmax.f32 %v3422, 0.0
          %v3471 = vmax.f32 %v3425, 0.0
          %v3472 = vmax.f32 %v3430, 0.0
          %v3473 = vmax.f32 %v3433, 0.0
          %v3474 = vmax.f32 %v3438, 0.0
          %v3475 = vmax.f32 %v3441, 0.0
          %v3476 = vpack.c.bf16 %v3445, %v3444
          %v3477 = vpack.c.bf16 %v3447, %v3446
          %v3478 = vpack.c.bf16 %v3449, %v3448
          %v3479 = vpack.c.bf16 %v3451, %v3450
          %v3480 = vpack.c.bf16 %v3453, %v3452
          %v3481 = vpack.c.bf16 %v3455, %v3454
          %v3482 = vpack.c.bf16 %v3457, %v3456
          %v3483 = vpack.c.bf16 %v3459, %v3458
          %v3484 = vpack.c.bf16 %v3461, %v3460
          %v3485 = vpack.c.bf16 %v3463, %v3462
          %v3486 = vpack.c.bf16 %v3465, %v3464
          %v3487 = vpack.c.bf16 %v3467, %v3466
          %v3488 = vpack.c.bf16 %v3469, %v3468
          %v3489 = vpack.c.bf16 %v3471, %v3470
          %v3490 = vpack.c.bf16 %v3473, %v3472
          %v3491 = vpack.c.bf16 %v3475, %v3474
          %v3492 = vld [vmem:[#allocation15] sm:$0xf]
          %v3493 = vld [vmem:[#allocation15 + $0x4] sm:$0xf]
          %v3494 = vld [vmem:[#allocation15 + $0x8] sm:$0xf]
          %v3495 = vld [vmem:[#allocation15 + $0xc] sm:$0xf]
          %v3496 = vld [vmem:[#allocation15 + $0x10] sm:$0xf]
          %v3497 = vld [vmem:[#allocation15 + $0x14] sm:$0xf]
          %v3498 = vld [vmem:[#allocation15 + $0x18] sm:$0xf]
          %v3499 = vld [vmem:[#allocation15 + $0x1c] sm:$0xf]
          %v3500 = vld [vmem:[#allocation15 + $0x20] sm:$0xf]
          %v3501 = vld [vmem:[#allocation15 + $0x24] sm:$0xf]
          %v3502 = vld [vmem:[#allocation15 + $0x28] sm:$0xf]
          %v3503 = vld [vmem:[#allocation15 + $0x2c] sm:$0xf]
          %v3504 = vld [vmem:[#allocation15 + $0x30] sm:$0xf]
          %v3505 = vld [vmem:[#allocation15 + $0x34] sm:$0xf]
          %v3506 = vld [vmem:[#allocation15 + $0x38] sm:$0xf]
          %v3507 = vld [vmem:[#allocation15 + $0x3c] sm:$0xf]
          %v3508 = vld [vmem:[#allocation16] sm:$0xf]
          %v3509 = vld [vmem:[#allocation16 + $0x4] sm:$0xf]
          %v3510 = vld [vmem:[#allocation16 + $0x8] sm:$0xf]
          %v3511 = vld [vmem:[#allocation16 + $0xc] sm:$0xf]
          %v3512 = vld [vmem:[#allocation16 + $0x10] sm:$0xf]
          %v3513 = vld [vmem:[#allocation16 + $0x14] sm:$0xf]
          %v3514 = vld [vmem:[#allocation16 + $0x18] sm:$0xf]
          %v3515 = vld [vmem:[#allocation16 + $0x1c] sm:$0xf]
          %v3516 = vld [vmem:[#allocation16 + $0x20] sm:$0xf]
          %v3517 = vld [vmem:[#allocation16 + $0x24] sm:$0xf]
          %v3518 = vld [vmem:[#allocation16 + $0x28] sm:$0xf]
          %v3519 = vld [vmem:[#allocation16 + $0x2c] sm:$0xf]
          %v3520 = vld [vmem:[#allocation16 + $0x30] sm:$0xf]
          %v3521 = vld [vmem:[#allocation16 + $0x34] sm:$0xf]
          %v3522 = vld [vmem:[#allocation16 + $0x38] sm:$0xf]
          %v3523 = vld [vmem:[#allocation16 + $0x3c] sm:$0xf]
          %v3540 = vunpack.c.l.b16 %v3508
          %v3541 = vunpack.c.l.b16 %v3509
          %v3542 = vunpack.c.l.b16 %v3510
          %v3543 = vunpack.c.l.b16 %v3511
          %v3544 = vunpack.c.l.b16 %v3512
          %v3545 = vunpack.c.l.b16 %v3513
          %v3546 = vunpack.c.l.b16 %v3514
          %v3547 = vunpack.c.l.b16 %v3515
          %v3548 = vunpack.c.l.b16 %v3516
          %v3549 = vunpack.c.l.b16 %v3517
          %v3550 = vunpack.c.l.b16 %v3518
          %v3551 = vunpack.c.l.b16 %v3519
          %v3552 = vunpack.c.l.b16 %v3520
          %v3553 = vunpack.c.l.b16 %v3521
          %v3554 = vunpack.c.l.b16 %v3522
          %v3555 = vunpack.c.l.b16 %v3523
          %v3556 = vpack.c.b16 %v3541, %v3540
          %v3557 = vpack.c.b16 %v3543, %v3542
          %v3558 = vpack.c.b16 %v3545, %v3544
          %v3559 = vpack.c.b16 %v3547, %v3546
          %v3560 = vpack.c.b16 %v3549, %v3548
          %v3561 = vpack.c.b16 %v3551, %v3550
          %v3562 = vpack.c.b16 %v3553, %v3552
          %v3563 = vpack.c.b16 %v3555, %v3554
          %3572 = vmatprep.subr.bf16.mxu0 0
          %3573 = vmatpush1.bf16.msra.mxu0 %v3563
          %3574 = vmatprep.subr.bf16.mxu0 0
          %3575 = vmatpush1.bf16.msra.mxu0 %v3562
          %3576 = vmatprep.subr.bf16.mxu0 0
          %3577 = vmatpush1.bf16.msra.mxu0 %v3561
          %3578 = vmatprep.subr.bf16.mxu0 0
          %3579 = vmatpush1.bf16.msra.mxu0 %v3560
          %3580 = vmatprep.subr.bf16.mxu0 0
          %3581 = vmatpush1.bf16.msra.mxu0 %v3559
          %3582 = vmatprep.subr.bf16.mxu0 0
          %3583 = vmatpush1.bf16.msra.mxu0 %v3558
          %3584 = vmatprep.subr.bf16.mxu0 0
          %3585 = vmatpush1.bf16.msra.mxu0 %v3557
          %3586 = vmatprep.subr.bf16.mxu0 0
          %3587 = vmatpush1.bf16.msra.mxu0 %v3556
          %3588 = vmatprep.subr.bf16.mxu0 0
          %3589 = vmatpush2.bf16.msra.mxu0 0
          %3590 = vmatprep.subr.bf16.mxu0 0
          %3591 = vmatpush2.bf16.msra.mxu0 0
          %3592 = vmatprep.subr.bf16.mxu0 0
          %3593 = vmatpush2.bf16.msra.mxu0 0
          %3594 = vmatprep.subr.bf16.mxu0 0
          %3595 = vmatpush2.bf16.msra.mxu0 0
          %3596 = vmatprep.subr.bf16.mxu0 0
          %3597 = vmatpush2.bf16.msra.mxu0 0
          %3598 = vmatprep.subr.bf16.mxu0 0
          %3599 = vmatpush2.bf16.msra.mxu0 0
          %3600 = vmatprep.subr.bf16.mxu0 0
          %3601 = vmatpush2.bf16.msra.mxu0 0
          %3602 = vmatprep.subr.bf16.mxu0 0
          %3603 = vmatpush2.bf16.msra.mxu0 0
          %3604 = vmatprep.mubr.bf16.mxu0 0
          %3605 = vmatmul.mubr.bf16.gmra.mxu0 %v3476
          %v3606 = vpop.f32.mrf.mxu0
          %v3607 = vadd.f32 0.0, %v3606
          %v3608 = vpop.f32.mrf.mxu0
          %v3609 = vpop.f32.mrf.mxu0
          %v3610 = vadd.f32 0.0, %v3609
          %v3611 = vpop.f32.mrf.mxu0
          %3612 = vmatprep.mubr.bf16.mxu0 0
          %3613 = vmatmul.mubr.bf16.gmra.mxu0 %v3477
          %v3614 = vpop.f32.mrf.mxu0
          %v3615 = vadd.f32 0.0, %v3614
          %v3616 = vpop.f32.mrf.mxu0
          %v3617 = vpop.f32.mrf.mxu0
          %v3618 = vadd.f32 0.0, %v3617
          %v3619 = vpop.f32.mrf.mxu0
          %3620 = vmatprep.mubr.bf16.mxu0 0
          %3621 = vmatmul.mubr.bf16.gmra.mxu0 %v3478
          %v3622 = vpop.f32.mrf.mxu0
          %v3623 = vadd.f32 0.0, %v3622
          %v3624 = vpop.f32.mrf.mxu0
          %v3625 = vpop.f32.mrf.mxu0
          %v3626 = vadd.f32 0.0, %v3625
          %v3627 = vpop.f32.mrf.mxu0
          %3628 = vmatprep.mubr.bf16.mxu0 0
          %3629 = vmatmul.mubr.bf16.gmra.mxu0 %v3479
          %v3630 = vpop.f32.mrf.mxu0
          %v3631 = vadd.f32 0.0, %v3630
          %v3632 = vpop.f32.mrf.mxu0
          %v3633 = vpop.f32.mrf.mxu0
          %v3634 = vadd.f32 0.0, %v3633
          %v3635 = vpop.f32.mrf.mxu0
          %3636 = vmatprep.mubr.bf16.mxu0 0
          %3637 = vmatmul.mubr.bf16.gmra.mxu0 %v3480
          %v3638 = vpop.f32.mrf.mxu0
          %v3639 = vadd.f32 0.0, %v3638
          %v3640 = vpop.f32.mrf.mxu0
          %v3641 = vpop.f32.mrf.mxu0
          %v3642 = vadd.f32 0.0, %v3641
          %v3643 = vpop.f32.mrf.mxu0
          %3644 = vmatprep.mubr.bf16.mxu0 0
          %3645 = vmatmul.mubr.bf16.gmra.mxu0 %v3481
          %v3646 = vpop.f32.mrf.mxu0
          %v3647 = vadd.f32 0.0, %v3646
          %v3648 = vpop.f32.mrf.mxu0
          %v3649 = vpop.f32.mrf.mxu0
          %v3650 = vadd.f32 0.0, %v3649
          %v3651 = vpop.f32.mrf.mxu0
          %3652 = vmatprep.mubr.bf16.mxu0 0
          %3653 = vmatmul.mubr.bf16.gmra.mxu0 %v3482
          %v3654 = vpop.f32.mrf.mxu0
          %v3655 = vadd.f32 0.0, %v3654
          %v3656 = vpop.f32.mrf.mxu0
          %v3657 = vpop.f32.mrf.mxu0
          %v3658 = vadd.f32 0.0, %v3657
          %v3659 = vpop.f32.mrf.mxu0
          %3660 = vmatprep.mubr.bf16.mxu0 0
          %3661 = vmatmul.mubr.bf16.gmra.mxu0 %v3483
          %v3662 = vpop.f32.mrf.mxu0
          %v3663 = vadd.f32 0.0, %v3662
          %v3664 = vpop.f32.mrf.mxu0
          %v3665 = vpop.f32.mrf.mxu0
          %v3666 = vadd.f32 0.0, %v3665
          %v3667 = vpop.f32.mrf.mxu0
          %3668 = vmatprep.mubr.bf16.mxu0 0
          %3669 = vmatmul.mubr.bf16.gmra.mxu0 %v3484
          %v3670 = vpop.f32.mrf.mxu0
          %v3671 = vadd.f32 0.0, %v3670
          %v3672 = vpop.f32.mrf.mxu0
          %v3673 = vpop.f32.mrf.mxu0
          %v3674 = vadd.f32 0.0, %v3673
          %v3675 = vpop.f32.mrf.mxu0
          %3676 = vmatprep.mubr.bf16.mxu0 0
          %3677 = vmatmul.mubr.bf16.gmra.mxu0 %v3485
          %v3678 = vpop.f32.mrf.mxu0
          %v3679 = vadd.f32 0.0, %v3678
          %v3680 = vpop.f32.mrf.mxu0
          %v3681 = vpop.f32.mrf.mxu0
          %v3682 = vadd.f32 0.0, %v3681
          %v3683 = vpop.f32.mrf.mxu0
          %3684 = vmatprep.mubr.bf16.mxu0 0
          %3685 = vmatmul.mubr.bf16.gmra.mxu0 %v3486
          %v3686 = vpop.f32.mrf.mxu0
          %v3687 = vadd.f32 0.0, %v3686
          %v3688 = vpop.f32.mrf.mxu0
          %v3689 = vpop.f32.mrf.mxu0
          %v3690 = vadd.f32 0.0, %v3689
          %v3691 = vpop.f32.mrf.mxu0
          %3692 = vmatprep.mubr.bf16.mxu0 0
          %3693 = vmatmul.mubr.bf16.gmra.mxu0 %v3487
          %v3694 = vpop.f32.mrf.mxu0
          %v3695 = vadd.f32 0.0, %v3694
          %v3696 = vpop.f32.mrf.mxu0
          %v3697 = vpop.f32.mrf.mxu0
          %v3698 = vadd.f32 0.0, %v3697
          %v3699 = vpop.f32.mrf.mxu0
          %3700 = vmatprep.mubr.bf16.mxu0 0
          %3701 = vmatmul.mubr.bf16.gmra.mxu0 %v3488
          %v3702 = vpop.f32.mrf.mxu0
          %v3703 = vadd.f32 0.0, %v3702
          %v3704 = vpop.f32.mrf.mxu0
          %v3705 = vpop.f32.mrf.mxu0
          %v3706 = vadd.f32 0.0, %v3705
          %v3707 = vpop.f32.mrf.mxu0
          %3708 = vmatprep.mubr.bf16.mxu0 0
          %3709 = vmatmul.mubr.bf16.gmra.mxu0 %v3489
          %v3710 = vpop.f32.mrf.mxu0
          %v3711 = vadd.f32 0.0, %v3710
          %v3712 = vpop.f32.mrf.mxu0
          %v3713 = vpop.f32.mrf.mxu0
          %v3714 = vadd.f32 0.0, %v3713
          %v3715 = vpop.f32.mrf.mxu0
          %3716 = vmatprep.mubr.bf16.mxu0 0
          %3717 = vmatmul.mubr.bf16.gmra.mxu0 %v3490
          %v3718 = vpop.f32.mrf.mxu0
          %v3719 = vadd.f32 0.0, %v3718
          %v3720 = vpop.f32.mrf.mxu0
          %v3721 = vpop.f32.mrf.mxu0
          %v3722 = vadd.f32 0.0, %v3721
          %v3723 = vpop.f32.mrf.mxu0
          %3724 = vmatprep.mubr.bf16.mxu0 0
          %3725 = vmatmul.mubr.bf16.gmra.mxu0 %v3491
          %v3726 = vpop.f32.mrf.mxu0
          %v3727 = vadd.f32 0.0, %v3726
          %v3728 = vpop.f32.mrf.mxu0
          %v3729 = vpop.f32.mrf.mxu0
          %v3730 = vadd.f32 0.0, %v3729
          %v3731 = vpop.f32.mrf.mxu0
          %3732 = vdwg.mxu0
          %v3749 = vunpack.c.l.b16 %v3492
          %v3750 = vunpack.c.l.b16 %v3493
          %v3751 = vunpack.c.l.b16 %v3494
          %v3752 = vunpack.c.l.b16 %v3495
          %v3753 = vunpack.c.l.b16 %v3496
          %v3754 = vunpack.c.l.b16 %v3497
          %v3755 = vunpack.c.l.b16 %v3498
          %v3756 = vunpack.c.l.b16 %v3499
          %v3757 = vunpack.c.l.b16 %v3500
          %v3758 = vunpack.c.l.b16 %v3501
          %v3759 = vunpack.c.l.b16 %v3502
          %v3760 = vunpack.c.l.b16 %v3503
          %v3761 = vunpack.c.l.b16 %v3504
          %v3762 = vunpack.c.l.b16 %v3505
          %v3763 = vunpack.c.l.b16 %v3506
          %v3764 = vunpack.c.l.b16 %v3507
          %v3765 = vpack.c.b16 %v3750, %v3749
          %v3766 = vpack.c.b16 %v3752, %v3751
          %v3767 = vpack.c.b16 %v3754, %v3753
          %v3768 = vpack.c.b16 %v3756, %v3755
          %v3769 = vpack.c.b16 %v3758, %v3757
          %v3770 = vpack.c.b16 %v3760, %v3759
          %v3771 = vpack.c.b16 %v3762, %v3761
          %v3772 = vpack.c.b16 %v3764, %v3763
          %3781 = vmatprep.subr.bf16.mxu0 0
          %3782 = vmatpush1.bf16.msra.mxu0 %v3772
          %3783 = vmatprep.subr.bf16.mxu0 0
          %3784 = vmatpush1.bf16.msra.mxu0 %v3771
          %3785 = vmatprep.subr.bf16.mxu0 0
          %3786 = vmatpush1.bf16.msra.mxu0 %v3770
          %3787 = vmatprep.subr.bf16.mxu0 0
          %3788 = vmatpush1.bf16.msra.mxu0 %v3769
          %3789 = vmatprep.subr.bf16.mxu0 0
          %3790 = vmatpush1.bf16.msra.mxu0 %v3768
          %3791 = vmatprep.subr.bf16.mxu0 0
          %3792 = vmatpush1.bf16.msra.mxu0 %v3767
          %3793 = vmatprep.subr.bf16.mxu0 0
          %3794 = vmatpush1.bf16.msra.mxu0 %v3766
          %3795 = vmatprep.subr.bf16.mxu0 0
          %3796 = vmatpush1.bf16.msra.mxu0 %v3765
          %3797 = vmatprep.subr.bf16.mxu0 0
          %3798 = vmatpush2.bf16.msra.mxu0 0
          %3799 = vmatprep.subr.bf16.mxu0 0
          %3800 = vmatpush2.bf16.msra.mxu0 0
          %3801 = vmatprep.subr.bf16.mxu0 0
          %3802 = vmatpush2.bf16.msra.mxu0 0
          %3803 = vmatprep.subr.bf16.mxu0 0
          %3804 = vmatpush2.bf16.msra.mxu0 0
          %3805 = vmatprep.subr.bf16.mxu0 0
          %3806 = vmatpush2.bf16.msra.mxu0 0
          %3807 = vmatprep.subr.bf16.mxu0 0
          %3808 = vmatpush2.bf16.msra.mxu0 0
          %3809 = vmatprep.subr.bf16.mxu0 0
          %3810 = vmatpush2.bf16.msra.mxu0 0
          %3811 = vmatprep.subr.bf16.mxu0 0
          %3812 = vmatpush2.bf16.msra.mxu0 0
          %3813 = vmatprep.mubr.bf16.mxu0 0
          %3814 = vmatmul.mubr.bf16.gmra.mxu0 %v3004
          %v3815 = vpop.f32.mrf.mxu0
          %v3816 = vadd.f32 %v3607, %v3815
          %v3817 = vpop.f32.mrf.mxu0
          %v3818 = vpop.f32.mrf.mxu0
          %v3819 = vadd.f32 %v3610, %v3818
          %v3820 = vpop.f32.mrf.mxu0
          %3821 = vmatprep.mubr.bf16.mxu0 0
          %3822 = vmatmul.mubr.bf16.gmra.mxu0 %v3005
          %v3823 = vpop.f32.mrf.mxu0
          %v3824 = vadd.f32 %v3615, %v3823
          %v3825 = vpop.f32.mrf.mxu0
          %v3826 = vpop.f32.mrf.mxu0
          %v3827 = vadd.f32 %v3618, %v3826
          %v3828 = vpop.f32.mrf.mxu0
          %3829 = vmatprep.mubr.bf16.mxu0 0
          %3830 = vmatmul.mubr.bf16.gmra.mxu0 %v3006
          %v3831 = vpop.f32.mrf.mxu0
          %v3832 = vadd.f32 %v3623, %v3831
          %v3833 = vpop.f32.mrf.mxu0
          %v3834 = vpop.f32.mrf.mxu0
          %v3835 = vadd.f32 %v3626, %v3834
          %v3836 = vpop.f32.mrf.mxu0
          %3837 = vmatprep.mubr.bf16.mxu0 0
          %3838 = vmatmul.mubr.bf16.gmra.mxu0 %v3007
          %v3839 = vpop.f32.mrf.mxu0
          %v3840 = vadd.f32 %v3631, %v3839
          %v3841 = vpop.f32.mrf.mxu0
          %v3842 = vpop.f32.mrf.mxu0
          %v3843 = vadd.f32 %v3634, %v3842
          %v3844 = vpop.f32.mrf.mxu0
          %3845 = vmatprep.mubr.bf16.mxu0 0
          %3846 = vmatmul.mubr.bf16.gmra.mxu0 %v3008
          %v3847 = vpop.f32.mrf.mxu0
          %v3848 = vadd.f32 %v3639, %v3847
          %v3849 = vpop.f32.mrf.mxu0
          %v3850 = vpop.f32.mrf.mxu0
          %v3851 = vadd.f32 %v3642, %v3850
          %v3852 = vpop.f32.mrf.mxu0
          %3853 = vmatprep.mubr.bf16.mxu0 0
          %3854 = vmatmul.mubr.bf16.gmra.mxu0 %v3009
          %v3855 = vpop.f32.mrf.mxu0
          %v3856 = vadd.f32 %v3647, %v3855
          %v3857 = vpop.f32.mrf.mxu0
          %v3858 = vpop.f32.mrf.mxu0
          %v3859 = vadd.f32 %v3650, %v3858
          %v3860 = vpop.f32.mrf.mxu0
          %3861 = vmatprep.mubr.bf16.mxu0 0
          %3862 = vmatmul.mubr.bf16.gmra.mxu0 %v3010
          %v3863 = vpop.f32.mrf.mxu0
          %v3864 = vadd.f32 %v3655, %v3863
          %v3865 = vpop.f32.mrf.mxu0
          %v3866 = vpop.f32.mrf.mxu0
          %v3867 = vadd.f32 %v3658, %v3866
          %v3868 = vpop.f32.mrf.mxu0
          %3869 = vmatprep.mubr.bf16.mxu0 0
          %3870 = vmatmul.mubr.bf16.gmra.mxu0 %v3011
          %v3871 = vpop.f32.mrf.mxu0
          %v3872 = vadd.f32 %v3663, %v3871
          %v3873 = vpop.f32.mrf.mxu0
          %v3874 = vpop.f32.mrf.mxu0
          %v3875 = vadd.f32 %v3666, %v3874
          %v3876 = vpop.f32.mrf.mxu0
          %3877 = vmatprep.mubr.bf16.mxu0 0
          %3878 = vmatmul.mubr.bf16.gmra.mxu0 %v3012
          %v3879 = vpop.f32.mrf.mxu0
          %v3880 = vadd.f32 %v3671, %v3879
          %v3881 = vpop.f32.mrf.mxu0
          %v3882 = vpop.f32.mrf.mxu0
          %v3883 = vadd.f32 %v3674, %v3882
          %v3884 = vpop.f32.mrf.mxu0
          %3885 = vmatprep.mubr.bf16.mxu0 0
          %3886 = vmatmul.mubr.bf16.gmra.mxu0 %v3013
          %v3887 = vpop.f32.mrf.mxu0
          %v3888 = vadd.f32 %v3679, %v3887
          %v3889 = vpop.f32.mrf.mxu0
          %v3890 = vpop.f32.mrf.mxu0
          %v3891 = vadd.f32 %v3682, %v3890
          %v3892 = vpop.f32.mrf.mxu0
          %3893 = vmatprep.mubr.bf16.mxu0 0
          %3894 = vmatmul.mubr.bf16.gmra.mxu0 %v3014
          %v3895 = vpop.f32.mrf.mxu0
          %v3896 = vadd.f32 %v3687, %v3895
          %v3897 = vpop.f32.mrf.mxu0
          %v3898 = vpop.f32.mrf.mxu0
          %v3899 = vadd.f32 %v3690, %v3898
          %v3900 = vpop.f32.mrf.mxu0
          %3901 = vmatprep.mubr.bf16.mxu0 0
          %3902 = vmatmul.mubr.bf16.gmra.mxu0 %v3015
          %v3903 = vpop.f32.mrf.mxu0
          %v3904 = vadd.f32 %v3695, %v3903
          %v3905 = vpop.f32.mrf.mxu0
          %v3906 = vpop.f32.mrf.mxu0
          %v3907 = vadd.f32 %v3698, %v3906
          %v3908 = vpop.f32.mrf.mxu0
          %3909 = vmatprep.mubr.bf16.mxu0 0
          %3910 = vmatmul.mubr.bf16.gmra.mxu0 %v3016
          %v3911 = vpop.f32.mrf.mxu0
          %v3912 = vadd.f32 %v3703, %v3911
          %v3913 = vpop.f32.mrf.mxu0
          %v3914 = vpop.f32.mrf.mxu0
          %v3915 = vadd.f32 %v3706, %v3914
          %v3916 = vpop.f32.mrf.mxu0
          %3917 = vmatprep.mubr.bf16.mxu0 0
          %3918 = vmatmul.mubr.bf16.gmra.mxu0 %v3017
          %v3919 = vpop.f32.mrf.mxu0
          %v3920 = vadd.f32 %v3711, %v3919
          %v3921 = vpop.f32.mrf.mxu0
          %v3922 = vpop.f32.mrf.mxu0
          %v3923 = vadd.f32 %v3714, %v3922
          %v3924 = vpop.f32.mrf.mxu0
          %3925 = vmatprep.mubr.bf16.mxu0 0
          %3926 = vmatmul.mubr.bf16.gmra.mxu0 %v3018
          %v3927 = vpop.f32.mrf.mxu0
          %v3928 = vadd.f32 %v3719, %v3927
          %v3929 = vpop.f32.mrf.mxu0
          %v3930 = vpop.f32.mrf.mxu0
          %v3931 = vadd.f32 %v3722, %v3930
          %v3932 = vpop.f32.mrf.mxu0
          %3933 = vmatprep.mubr.bf16.mxu0 0
          %3934 = vmatmul.mubr.bf16.gmra.mxu0 %v3019
          %v3935 = vpop.f32.mrf.mxu0
          %v3936 = vadd.f32 %v3727, %v3935
          %v3937 = vpop.f32.mrf.mxu0
          %v3938 = vpop.f32.mrf.mxu0
          %v3939 = vadd.f32 %v3730, %v3938
          %v3940 = vpop.f32.mrf.mxu0
          %3941 = vdwg.mxu0
          %v3942 = vld [vmem:[%s12] sm:$0x1]
          %v3944 = vlaneseq
          %v3945 = vshrl.u32 %v3944, 7
          %v3946 = vsub.s32 0, %v3945
          %v3947 = vrot.slane %v3942, %v3946
          %v3949 = vadd.f32 %v3816, %v3947
          %v3950 = vadd.f32 %v3819, %v3947
          %v3951 = vadd.f32 %v3824, %v3947
          %v3952 = vadd.f32 %v3827, %v3947
          %v3953 = vadd.f32 %v3832, %v3947
          %v3954 = vadd.f32 %v3835, %v3947
          %v3955 = vadd.f32 %v3840, %v3947
          %v3956 = vadd.f32 %v3843, %v3947
          %v3957 = vadd.f32 %v3848, %v3947
          %v3958 = vadd.f32 %v3851, %v3947
          %v3959 = vadd.f32 %v3856, %v3947
          %v3960 = vadd.f32 %v3859, %v3947
          %v3961 = vadd.f32 %v3864, %v3947
          %v3962 = vadd.f32 %v3867, %v3947
          %v3963 = vadd.f32 %v3872, %v3947
          %v3964 = vadd.f32 %v3875, %v3947
          %v3965 = vadd.f32 %v3880, %v3947
          %v3966 = vadd.f32 %v3883, %v3947
          %v3967 = vadd.f32 %v3888, %v3947
          %v3968 = vadd.f32 %v3891, %v3947
          %v3969 = vadd.f32 %v3896, %v3947
          %v3970 = vadd.f32 %v3899, %v3947
          %v3971 = vadd.f32 %v3904, %v3947
          %v3972 = vadd.f32 %v3907, %v3947
          %v3973 = vadd.f32 %v3912, %v3947
          %v3974 = vadd.f32 %v3915, %v3947
          %v3975 = vadd.f32 %v3920, %v3947
          %v3976 = vadd.f32 %v3923, %v3947
          %v3977 = vadd.f32 %v3928, %v3947
          %v3978 = vadd.f32 %v3931, %v3947
          %v3979 = vadd.f32 %v3936, %v3947
          %v3980 = vadd.f32 %v3939, %v3947
          %3981 = vst [vmem:[#allocation18] sm:$0xff] %v3949
          %3982 = vst [vmem:[#allocation18 + $0x8] sm:$0xff] %v3950
          %3983 = vst [vmem:[#allocation18 + $0x10] sm:$0xff] %v3951
          %3984 = vst [vmem:[#allocation18 + $0x18] sm:$0xff] %v3952
          %3985 = vst [vmem:[#allocation18 + $0x20] sm:$0xff] %v3953
          %3986 = vst [vmem:[#allocation18 + $0x28] sm:$0xff] %v3954
          %3987 = vst [vmem:[#allocation18 + $0x30] sm:$0xff] %v3955
          %3988 = vst [vmem:[#allocation18 + $0x38] sm:$0xff] %v3956
          %3989 = vst [vmem:[#allocation18 + $0x40] sm:$0xff] %v3957
          %3990 = vst [vmem:[#allocation18 + $0x48] sm:$0xff] %v3958
          %3991 = vst [vmem:[#allocation18 + $0x50] sm:$0xff] %v3959
          %3992 = vst [vmem:[#allocation18 + $0x58] sm:$0xff] %v3960
          %3993 = vst [vmem:[#allocation18 + $0x60] sm:$0xff] %v3961
          %3994 = vst [vmem:[#allocation18 + $0x68] sm:$0xff] %v3962
          %3995 = vst [vmem:[#allocation18 + $0x70] sm:$0xff] %v3963
          %3996 = vst [vmem:[#allocation18 + $0x78] sm:$0xff] %v3964
          %3997 = vst [vmem:[#allocation18 + $0x80] sm:$0xff] %v3965
          %3998 = vst [vmem:[#allocation18 + $0x88] sm:$0xff] %v3966
          %3999 = vst [vmem:[#allocation18 + $0x90] sm:$0xff] %v3967
          %4000 = vst [vmem:[#allocation18 + $0x98] sm:$0xff] %v3968
          %4001 = vst [vmem:[#allocation18 + $0xa0] sm:$0xff] %v3969
          %4002 = vst [vmem:[#allocation18 + $0xa8] sm:$0xff] %v3970
          %4003 = vst [vmem:[#allocation18 + $0xb0] sm:$0xff] %v3971
          %4004 = vst [vmem:[#allocation18 + $0xb8] sm:$0xff] %v3972
          %4005 = vst [vmem:[#allocation18 + $0xc0] sm:$0xff] %v3973
          %4006 = vst [vmem:[#allocation18 + $0xc8] sm:$0xff] %v3974
          %4007 = vst [vmem:[#allocation18 + $0xd0] sm:$0xff] %v3975
          %4008 = vst [vmem:[#allocation18 + $0xd8] sm:$0xff] %v3976
          %4009 = vst [vmem:[#allocation18 + $0xe0] sm:$0xff] %v3977
          %4010 = vst [vmem:[#allocation18 + $0xe8] sm:$0xff] %v3978
          %4011 = vst [vmem:[#allocation18 + $0xf0] sm:$0xff] %v3979
          %4012 = vst [vmem:[#allocation18 + $0xf8] sm:$0xff] %v3980
        $region112: #{tpu_custom_call.1} parent=71 // pred_fallthru
          _
        // Predicated region
        $region113: #{tpu_custom_call.1} parent=71 // pred_check
          %p4013 = pneg %p343
        $region114: #{tpu_custom_call.1} parent=71 // pred_check_branch
          %4015 = sbr.rel (%p4013) target = $region116
        $region115: #{tpu_custom_call.1} parent=71 // pred_region
          %s4016 = smul.u32 32, %s35
          %s4018 = ssub.s32 4096, 4096
          %4019 = vsyncadd [#allocation6], %s4018
          %s4020 = smul.addr %s4016, 128
          %s4021 = scalar_lea.hbm %s13, %s4020
          %s4022 = sshll.u32 [#allocation18], 4
          %s4023 = int_to_ptr.vmem [resolvable:$true] %s4022
          %4028 = dma.vmem_to_hbm [thread:$0]  %s4023, 4096, %s4021, [#allocation6], 128, 128, 8
        $region116: #{tpu_custom_call.1} parent=71 // pred_fallthru
          _
        // Predicated region
        $region117: #{tpu_custom_call.1} parent=71 // pred_check
          %p4029 = pneg %p343
        $region118: #{tpu_custom_call.1} parent=71 // pred_check_branch
          %4031 = sbr.rel (%p4029) target = $region120
        $region119: #{tpu_custom_call.1} parent=71 // pred_region
          %4032 = dma.done [#allocation6], 4096
        $region120: #{tpu_custom_call.1} parent=71 // pred_fallthru
          _
      $region72: #{tpu_custom_call.1} parent=5 // pred_fallthru
        _
      %p4033 = scmp.le.s32.totalorder 2, %s25
      // Predicated region
      $region121: #{tpu_custom_call.1} parent=5 // pred_check
        %p4034 = pneg %p4033
      $region122: #{tpu_custom_call.1} parent=5 // pred_check_branch
        %4036 = sbr.rel (%p4034) target = $region124
      $region123: #{tpu_custom_call.1} parent=5 // pred_region
        %s4037 = ssub.s32 %s25, 2
      $region124: #{tpu_custom_call.1} parent=5 // pred_fallthru
        _
    $region6: #{tpu_custom_call.1} parent=1 // loop_footer
      %s29 = sadd.s32 1, %s25
    $region7: #{tpu_custom_call.1} parent=1 // loop_footer_branch
      %24 = sbr.rel target = $region3
    $region8: #{tpu_custom_call.1} parent=1 // loop_exit
      _
    %4038 = vsyncpa [#allocation5], 1
    %s4039 = scalar_lea.sflag [#allocation5], 1
    %4040 = vsyncpa %s4039, 1
    %4041 = vsyncpa [#allocation8], 1
    %4042 = vsyncpa [#allocation11], 1
    %4043 = vsyncpa [#allocation14], 1
    %4044 = vsyncpa [#allocation17], 1
    %4045 = vsyncpa [#allocation6], 1
    %s4046 = scalar_lea.sflag [#allocation6], 1
    %4047 = vsyncpa %s4046, 1

</llo_original>
